<compile_context>
chip_gen: v6e
topology: v6e:2x2x1
jax: 0.10.0
libtpu: 0.0.40
codegen_flags: <defaults>
</compile_context>

<pallas_src>
import jax
import jax.numpy as jnp
from jax.experimental import pallas as pl
from jax.experimental.pallas import tpu as pltpu


# ---------------------------------------------------------------------------
# Wrapper + fused kernel (kernel is a closure over static packing offsets)
# ---------------------------------------------------------------------------

def millies_rnn_forward(data, params, h0_v, h0_m):
    """data: (N, L, input_size).  Returns outputs_m: (N, L, output_size)."""
    N, L, I = data.shape
    H = params["w_h2h"].shape[0]
    O = params["w_h2o"].shape[1]
    f32 = jnp.float32

    # Time-major flattened input: row t*N + n  (tiny XLA transpose in the wrapper).
    x_tm = jnp.transpose(data.astype(f32), (1, 0, 2)).reshape(L * N, I)

    # Pre-summed input/recurrent biases (one fewer VALU add per step).
    b_v = (params["b_i2h"] + params["b_h2h"]).astype(f32)            # (1, H)
    b_m = (params["b_i2h_dos"] + params["b_h2h_dos"]).astype(f32)    # (1, H)

    def pack(parts):
        """Stack arrays along axis 0 into one slab; pad each section to 8 rows."""
        offs, chunks, cur = {}, [], 0
        for name, arr in parts:
            arr = arr.astype(f32)
            offs[name] = cur
            pad = (-arr.shape[0]) % 8
            if pad:
                arr = jnp.concatenate(
                    [arr, jnp.zeros((pad, arr.shape[1]), f32)], axis=0)
            chunks.append(arr)
            cur += arr.shape[0]
        return jnp.concatenate(chunks, axis=0), offs, cur

    slab_h, offH, RH = pack([                 # everything with last dim == H
        ("w_i2h",     params["w_i2h"]),       # (I, H)
        ("b_v",       b_v),                   # (1, H)
        ("w_h2h",     params["w_h2h"]),       # (H, H)
        ("w_i2h_dos", params["w_i2h_dos"]),   # (O, H)
        ("b_m",       b_m),                   # (1, H)
        ("w_h2h_dos", params["w_h2h_dos"]),   # (H, H)
        ("h0_v",      h0_v),                  # (N, H)
        ("h0_m",      h0_m),                  # (N, H)
    ])
    slab_o, offO, RO = pack([                 # everything with last dim == O
        ("w_h2o",     params["w_h2o"]),       # (H, O)
        ("b_h2o",     params["b_h2o"]),       # (1, O)
        ("w_thal",    params["w_thal"]),      # (O, O)
        ("b_thal",    params["b_thal"]),      # (1, O)
        ("w_h2o_dos", params["w_h2o_dos"]),   # (H, O)
        ("b_h2o_dos", params["b_h2o_dos"]),   # (1, O)
    ])

    def retanh(v):
        return jnp.tanh(jnp.maximum(v, 0.0))

    def kernel(x_ref, sh_ref, so_ref, out_ref, hm_buf):
        # ---- hoisted, one-time loads of every weight/bias (static slab slices) ----
        w_i2h  = sh_ref[offH["w_i2h"]:offH["w_i2h"] + I, :]
        b_vv   = sh_ref[offH["b_v"]:offH["b_v"] + 1, :]
        w_h2h  = sh_ref[offH["w_h2h"]:offH["w_h2h"] + H, :]
        w_i2hd = sh_ref[offH["w_i2h_dos"]:offH["w_i2h_dos"] + O, :]
        b_mm   = sh_ref[offH["b_m"]:offH["b_m"] + 1, :]
        w_h2hd = sh_ref[offH["w_h2h_dos"]:offH["w_h2h_dos"] + H, :]
        h_v    = sh_ref[offH["h0_v"]:offH["h0_v"] + N, :]
        h_m    = sh_ref[offH["h0_m"]:offH["h0_m"] + N, :]

        w_h2o  = so_ref[offO["w_h2o"]:offO["w_h2o"] + H, :]
        b_h2o  = so_ref[offO["b_h2o"]:offO["b_h2o"] + 1, :]
        w_thal = so_ref[offO["w_thal"]:offO["w_thal"] + O, :]
        b_thal = so_ref[offO["b_thal"]:offO["b_thal"] + 1, :]
        w_h2od = so_ref[offO["w_h2o_dos"]:offO["w_h2o_dos"] + H, :]
        b_h2od = so_ref[offO["b_h2o_dos"]:offO["b_h2o_dos"] + 1, :]

        # ---- batched visual input projection (off the recurrent chain): 1 MXU op ----
        xp = (jnp.dot(x_ref[...], w_i2h, preferred_element_type=jnp.float32)
              + b_vv)                                            # (L*N, H), time-major

        # ---- interleaved recurrences: visual at step t, motor one step behind ------
        # visual : h_v(t) = retanh(xp(t) + h_v(t-1)@W_h2h)
        #          out_t(t) = retanh((h_v(t)@W_h2o + b_h2o)@W_thal + b_thal)
        # motor  : h_m(t) = retanh(out_t(t)@W_i2h_dos + h_m(t-1)@W_h2h_dos + b_m)
        # The two chains are independent within one iteration -> overlap on the MXU.
        out_t_prev = None
        for t in range(L + 1):                 # static, fully unrolled
            if t < L:
                h_v = retanh(xp[t * N:(t + 1) * N, :]
                             + jnp.dot(h_v, w_h2h,
                                       preferred_element_type=jnp.float32))
                out_v = (jnp.dot(h_v, w_h2o,
                                 preferred_element_type=jnp.float32) + b_h2o)
                out_t = retanh(jnp.dot(out_v, w_thal,
                                       preferred_element_type=jnp.float32) + b_thal)
            if t > 0:
                h_m = retanh(jnp.dot(out_t_prev, w_i2hd,
                                     preferred_element_type=jnp.float32)
                             + jnp.dot(h_m, w_h2hd,
                                       preferred_element_type=jnp.float32)
                             + b_mm)
                hm_buf[(t - 1) * N:t * N, :] = h_m   # contiguous time-major rows
            if t < L:
                out_t_prev = out_t

        # ---- batched final projection + single store of the whole output ----------
        out = (jnp.dot(hm_buf[...], w_h2od,
                       preferred_element_type=jnp.float32) + b_h2od)
        out_ref[...] = out

    out_tm = pl.pallas_call(
        kernel,
        out_shape=jax.ShapeDtypeStruct((L * N, O), jnp.float32),
        in_specs=[
            pl.BlockSpec((L * N, I), lambda: (0, 0)),   # x, time-major
            pl.BlockSpec((RH, H), lambda: (0, 0)),      # H-wide weight slab
            pl.BlockSpec((RO, O), lambda: (0, 0)),      # O-wide weight slab
        ],
        out_specs=pl.BlockSpec((L * N, O), lambda: (0, 0)),
        scratch_shapes=[
            pltpu.VMEM((L * N, H), jnp.float32),        # motor hidden states (time-major)
        ],
    )(x_tm, slab_h, slab_o)

    return out_tm.reshape(L, N, O).transpose(1, 0, 2)   # back to (N, L, O)


# ---------------------------------------------------------------------------
# Pure-JAX reference (original module structure) for verification
# ---------------------------------------------------------------------------

def _retanh(x):
    return jnp.tanh(jnp.maximum(x, 0.0))


def reference_forward(data, params, h0_v, h0_m):
    N, L, I = data.shape
    outs_v = []
    h = h0_v
    for i in range(L):
        x = data[:, i, :]
        h = _retanh(x @ params["w_i2h"] + params["b_i2h"][0]
                    + h @ params["w_h2h"] + params["b_h2h"][0])
        outs_v.append(h @ params["w_h2o"] + params["b_h2o"][0])
    outputs_v = jnp.stack(outs_v, axis=1)  # (N, L, O)
    outputs_t = _retanh(outputs_v @ params["w_thal"] + params["b_thal"][0])
    outs_m = []
    h = h0_m
    for i in range(L):
        x = outputs_t[:, i, :]
        h = _retanh(x @ params["w_i2h_dos"] + params["b_i2h_dos"][0]
                    + h @ params["w_h2h_dos"] + params["b_h2h_dos"][0])
        outs_m.append(h @ params["w_h2o_dos"] + params["b_h2o_dos"][0])
    return jnp.stack(outs_m, axis=1)  # (N, L, O)


# ---------------------------------------------------------------------------
# Main
# ---------------------------------------------------------------------------

if __name__ == "__main__":
    input_size, hidden_size, output_size = 16, 32, 8
    batch, seq = 2, 8

    key = jax.random.PRNGKey(0)
    keys = jax.random.split(key, 20)

    def lin(kw, kb, fan_in, fan_out):
        # Deterministic stand-in for nn.Linear init (weights pre-transposed to (in, out)).
        bound = 1.0 / jnp.sqrt(fan_in)
        w = jax.random.uniform(kw, (fan_in, fan_out), jnp.float32, -bound, bound)
        b = jax.random.uniform(kb, (1, fan_out), jnp.float32, -bound, bound)
        return w, b

    params = {}
    params["w_i2h"], params["b_i2h"] = lin(keys[0], keys[1], input_size, hidden_size)
    params["w_h2h"], params["b_h2h"] = lin(keys[2], keys[3], hidden_size, hidden_size)
    params["w_h2o"], params["b_h2o"] = lin(keys[4], keys[5], hidden_size, output_size)
    params["w_thal"], params["b_thal"] = lin(keys[6], keys[7], output_size, output_size)
    params["w_i2h_dos"], params["b_i2h_dos"] = lin(keys[8], keys[9], output_size, hidden_size)
    params["w_h2h_dos"], params["b_h2h_dos"] = lin(keys[10], keys[11], hidden_size, hidden_size)
    params["w_h2o_dos"], params["b_h2o_dos"] = lin(keys[12], keys[13], hidden_size, output_size)

    # Deterministic replacement for init_hidden's kaiming_uniform draws.
    gain = jnp.sqrt(2.0) * jnp.sqrt(3.0 / hidden_size)
    h0_v = jax.random.uniform(keys[14], (batch, hidden_size), jnp.float32, -gain, gain)
    h0_m = jax.random.uniform(keys[15], (batch, hidden_size), jnp.float32, -gain, gain)

    data = jax.random.normal(keys[16], (batch, seq, input_size), jnp.float32)

    out = millies_rnn_forward(data, params, h0_v, h0_m)
    out = jax.block_until_ready(out)

    ref = reference_forward(data, params, h0_v, h0_m)
    assert out.shape == (batch, seq, output_size)
    assert jnp.allclose(out, ref, atol=1e-5, rtol=1e-5), "mismatch vs pure-JAX reference"

    print("KERNEL_OK")
</pallas_src>

<mosaic_0001>
module attributes {stable_mosaic.version = 11 : i64} {
  func.func @kernel(%arg0: memref<16x16xf32, #tpu.memory_space<vmem>>, %arg1: memref<120x32xf32, #tpu.memory_space<vmem>>, %arg2: memref<96x8xf32, #tpu.memory_space<vmem>>, %arg3: memref<16x8xf32, #tpu.memory_space<vmem>>, %arg4: memref<16x32xf32, #tpu.memory_space<vmem>>) attributes {dimension_semantics = [], scalar_prefetch = 0 : i64, scratch_operands = 1 : i64, tpu.core_type = #tpu.core_type<tc>} {
    %c0 = arith.constant 0 : index
    %c0_0 = arith.constant 0 : index
    %0 = vector.load %arg1[%c0, %c0_0] : memref<120x32xf32, #tpu.memory_space<vmem>>, vector<16x32xf32>
    %c16 = arith.constant 16 : index
    %c0_1 = arith.constant 0 : index
    %1 = vector.load %arg1[%c16, %c0_1] : memref<120x32xf32, #tpu.memory_space<vmem>>, vector<1x32xf32>
    %c24 = arith.constant 24 : index
    %c0_2 = arith.constant 0 : index
    %2 = vector.load %arg1[%c24, %c0_2] : memref<120x32xf32, #tpu.memory_space<vmem>>, vector<32x32xf32>
    %c56 = arith.constant 56 : index
    %c0_3 = arith.constant 0 : index
    %3 = vector.load %arg1[%c56, %c0_3] : memref<120x32xf32, #tpu.memory_space<vmem>>, vector<8x32xf32>
    %c64 = arith.constant 64 : index
    %c0_4 = arith.constant 0 : index
    %4 = vector.load %arg1[%c64, %c0_4] : memref<120x32xf32, #tpu.memory_space<vmem>>, vector<1x32xf32>
    %c72 = arith.constant 72 : index
    %c0_5 = arith.constant 0 : index
    %5 = vector.load %arg1[%c72, %c0_5] : memref<120x32xf32, #tpu.memory_space<vmem>>, vector<32x32xf32>
    %c104 = arith.constant 104 : index
    %c0_6 = arith.constant 0 : index
    %6 = vector.load %arg1[%c104, %c0_6] : memref<120x32xf32, #tpu.memory_space<vmem>>, vector<2x32xf32>
    %c112 = arith.constant 112 : index
    %c0_7 = arith.constant 0 : index
    %7 = vector.load %arg1[%c112, %c0_7] : memref<120x32xf32, #tpu.memory_space<vmem>>, vector<2x32xf32>
    %c0_8 = arith.constant 0 : index
    %c0_9 = arith.constant 0 : index
    %8 = vector.load %arg2[%c0_8, %c0_9] : memref<96x8xf32, #tpu.memory_space<vmem>>, vector<32x8xf32>
    %c32 = arith.constant 32 : index
    %c0_10 = arith.constant 0 : index
    %9 = vector.load %arg2[%c32, %c0_10] : memref<96x8xf32, #tpu.memory_space<vmem>>, vector<1x8xf32>
    %c40 = arith.constant 40 : index
    %c0_11 = arith.constant 0 : index
    %10 = vector.load %arg2[%c40, %c0_11] : memref<96x8xf32, #tpu.memory_space<vmem>>, vector<8x8xf32>
    %c48 = arith.constant 48 : index
    %c0_12 = arith.constant 0 : index
    %11 = vector.load %arg2[%c48, %c0_12] : memref<96x8xf32, #tpu.memory_space<vmem>>, vector<1x8xf32>
    %c56_13 = arith.constant 56 : index
    %c0_14 = arith.constant 0 : index
    %12 = vector.load %arg2[%c56_13, %c0_14] : memref<96x8xf32, #tpu.memory_space<vmem>>, vector<32x8xf32>
    %c88 = arith.constant 88 : index
    %c0_15 = arith.constant 0 : index
    %13 = vector.load %arg2[%c88, %c0_15] : memref<96x8xf32, #tpu.memory_space<vmem>>, vector<1x8xf32>
    %c0_16 = arith.constant 0 : index
    %c0_17 = arith.constant 0 : index
    %14 = vector.load %arg0[%c0_16, %c0_17] : memref<16x16xf32, #tpu.memory_space<vmem>>, vector<16x16xf32>
    %cst = arith.constant dense<0.000000e+00> : vector<16x32xf32>
    %15 = tpu.matmul %14, %0, %cst {dimension_numbers = #tpu.dot_dimension_numbers<[1], [0], [0], [1], [0, 0, 1, 1], [], []>} : vector<16x16xf32>, vector<16x32xf32>, vector<16x32xf32> -> vector<16x32xf32>
    %16 = vector.broadcast %1 : vector<1x32xf32> to vector<16x32xf32>
    %17 = arith.addf %15, %16 : vector<16x32xf32>
    %18 = vector.extract_strided_slice %17 {offsets = [0, 0], sizes = [2, 32], strides = [1, 1]} : vector<16x32xf32> to vector<2x32xf32>
    %cst_18 = arith.constant dense<0.000000e+00> : vector<2x32xf32>
    %19 = tpu.matmul %6, %2, %cst_18 {dimension_numbers = #tpu.dot_dimension_numbers<[1], [0], [0], [1], [0, 0, 1, 1], [], []>} : vector<2x32xf32>, vector<32x32xf32>, vector<2x32xf32> -> vector<2x32xf32>
    %20 = arith.addf %18, %19 : vector<2x32xf32>
    %cst_19 = arith.constant 0.000000e+00 : f32
    %21 = vector.broadcast %cst_19 : f32 to vector<2x32xf32>
    %22 = arith.maximumf %20, %21 : vector<2x32xf32>
    %23 = math.tanh %22 : vector<2x32xf32>
    %cst_20 = arith.constant dense<0.000000e+00> : vector<2x8xf32>
    %24 = tpu.matmul %23, %8, %cst_20 {dimension_numbers = #tpu.dot_dimension_numbers<[1], [0], [0], [1], [0, 0, 1, 1], [], []>} : vector<2x32xf32>, vector<32x8xf32>, vector<2x8xf32> -> vector<2x8xf32>
    %25 = vector.broadcast %9 : vector<1x8xf32> to vector<2x8xf32>
    %26 = arith.addf %24, %25 : vector<2x8xf32>
    %cst_21 = arith.constant dense<0.000000e+00> : vector<2x8xf32>
    %27 = tpu.matmul %26, %10, %cst_21 {dimension_numbers = #tpu.dot_dimension_numbers<[1], [0], [0], [1], [0, 0, 1, 1], [], []>} : vector<2x8xf32>, vector<8x8xf32>, vector<2x8xf32> -> vector<2x8xf32>
    %28 = vector.broadcast %11 : vector<1x8xf32> to vector<2x8xf32>
    %29 = arith.addf %27, %28 : vector<2x8xf32>
    %cst_22 = arith.constant 0.000000e+00 : f32
    %30 = vector.broadcast %cst_22 : f32 to vector<2x8xf32>
    %31 = arith.maximumf %29, %30 : vector<2x8xf32>
    %32 = math.tanh %31 : vector<2x8xf32>
    %33 = vector.extract_strided_slice %17 {offsets = [2, 0], sizes = [2, 32], strides = [1, 1]} : vector<16x32xf32> to vector<2x32xf32>
    %cst_23 = arith.constant dense<0.000000e+00> : vector<2x32xf32>
    %34 = tpu.matmul %23, %2, %cst_23 {dimension_numbers = #tpu.dot_dimension_numbers<[1], [0], [0], [1], [0, 0, 1, 1], [], []>} : vector<2x32xf32>, vector<32x32xf32>, vector<2x32xf32> -> vector<2x32xf32>
    %35 = arith.addf %33, %34 : vector<2x32xf32>
    %cst_24 = arith.constant 0.000000e+00 : f32
    %36 = vector.broadcast %cst_24 : f32 to vector<2x32xf32>
    %37 = arith.maximumf %35, %36 : vector<2x32xf32>
    %38 = math.tanh %37 : vector<2x32xf32>
    %cst_25 = arith.constant dense<0.000000e+00> : vector<2x8xf32>
    %39 = tpu.matmul %38, %8, %cst_25 {dimension_numbers = #tpu.dot_dimension_numbers<[1], [0], [0], [1], [0, 0, 1, 1], [], []>} : vector<2x32xf32>, vector<32x8xf32>, vector<2x8xf32> -> vector<2x8xf32>
    %40 = vector.broadcast %9 : vector<1x8xf32> to vector<2x8xf32>
    %41 = arith.addf %39, %40 : vector<2x8xf32>
    %cst_26 = arith.constant dense<0.000000e+00> : vector<2x8xf32>
    %42 = tpu.matmul %41, %10, %cst_26 {dimension_numbers = #tpu.dot_dimension_numbers<[1], [0], [0], [1], [0, 0, 1, 1], [], []>} : vector<2x8xf32>, vector<8x8xf32>, vector<2x8xf32> -> vector<2x8xf32>
    %43 = vector.broadcast %11 : vector<1x8xf32> to vector<2x8xf32>
    %44 = arith.addf %42, %43 : vector<2x8xf32>
    %cst_27 = arith.constant 0.000000e+00 : f32
    %45 = vector.broadcast %cst_27 : f32 to vector<2x8xf32>
    %46 = arith.maximumf %44, %45 : vector<2x8xf32>
    %47 = math.tanh %46 : vector<2x8xf32>
    %cst_28 = arith.constant dense<0.000000e+00> : vector<2x32xf32>
    %48 = tpu.matmul %32, %3, %cst_28 {dimension_numbers = #tpu.dot_dimension_numbers<[1], [0], [0], [1], [0, 0, 1, 1], [], []>} : vector<2x8xf32>, vector<8x32xf32>, vector<2x32xf32> -> vector<2x32xf32>
    %cst_29 = arith.constant dense<0.000000e+00> : vector<2x32xf32>
    %49 = tpu.matmul %7, %5, %cst_29 {dimension_numbers = #tpu.dot_dimension_numbers<[1], [0], [0], [1], [0, 0, 1, 1], [], []>} : vector<2x32xf32>, vector<32x32xf32>, vector<2x32xf32> -> vector<2x32xf32>
    %50 = arith.addf %48, %49 : vector<2x32xf32>
    %51 = vector.broadcast %4 : vector<1x32xf32> to vector<2x32xf32>
    %52 = arith.addf %50, %51 : vector<2x32xf32>
    %cst_30 = arith.constant 0.000000e+00 : f32
    %53 = vector.broadcast %cst_30 : f32 to vector<2x32xf32>
    %54 = arith.maximumf %52, %53 : vector<2x32xf32>
    %55 = math.tanh %54 : vector<2x32xf32>
    %c0_31 = arith.constant 0 : index
    %c0_32 = arith.constant 0 : index
    %56 = vector.load %arg4[%c0_31, %c0_32] : memref<16x32xf32, #tpu.memory_space<vmem>>, vector<2x32xf32>
    tpu.vector_store %arg4[%c0_31, %c0_32], %55 {strides = array<i32>} : memref<16x32xf32, #tpu.memory_space<vmem>>, vector<2x32xf32>,
    %57 = vector.extract_strided_slice %17 {offsets = [4, 0], sizes = [2, 32], strides = [1, 1]} : vector<16x32xf32> to vector<2x32xf32>
    %cst_33 = arith.constant dense<0.000000e+00> : vector<2x32xf32>
    %58 = tpu.matmul %38, %2, %cst_33 {dimension_numbers = #tpu.dot_dimension_numbers<[1], [0], [0], [1], [0, 0, 1, 1], [], []>} : vector<2x32xf32>, vector<32x32xf32>, vector<2x32xf32> -> vector<2x32xf32>
    %59 = arith.addf %57, %58 : vector<2x32xf32>
    %cst_34 = arith.constant 0.000000e+00 : f32
    %60 = vector.broadcast %cst_34 : f32 to vector<2x32xf32>
    %61 = arith.maximumf %59, %60 : vector<2x32xf32>
    %62 = math.tanh %61 : vector<2x32xf32>
    %cst_35 = arith.constant dense<0.000000e+00> : vector<2x8xf32>
    %63 = tpu.matmul %62, %8, %cst_35 {dimension_numbers = #tpu.dot_dimension_numbers<[1], [0], [0], [1], [0, 0, 1, 1], [], []>} : vector<2x32xf32>, vector<32x8xf32>, vector<2x8xf32> -> vector<2x8xf32>
    %64 = vector.broadcast %9 : vector<1x8xf32> to vector<2x8xf32>
    %65 = arith.addf %63, %64 : vector<2x8xf32>
    %cst_36 = arith.constant dense<0.000000e+00> : vector<2x8xf32>
    %66 = tpu.matmul %65, %10, %cst_36 {dimension_numbers = #tpu.dot_dimension_numbers<[1], [0], [0], [1], [0, 0, 1, 1], [], []>} : vector<2x8xf32>, vector<8x8xf32>, vector<2x8xf32> -> vector<2x8xf32>
    %67 = vector.broadcast %11 : vector<1x8xf32> to vector<2x8xf32>
    %68 = arith.addf %66, %67 : vector<2x8xf32>
    %cst_37 = arith.constant 0.000000e+00 : f32
    %69 = vector.broadcast %cst_37 : f32 to vector<2x8xf32>
    %70 = arith.maximumf %68, %69 : vector<2x8xf32>
    %71 = math.tanh %70 : vector<2x8xf32>
    %cst_38 = arith.constant dense<0.000000e+00> : vector<2x32xf32>
    %72 = tpu.matmul %47, %3, %cst_38 {dimension_numbers = #tpu.dot_dimension_numbers<[1], [0], [0], [1], [0, 0, 1, 1], [], []>} : vector<2x8xf32>, vector<8x32xf32>, vector<2x32xf32> -> vector<2x32xf32>
    %cst_39 = arith.constant dense<0.000000e+00> : vector<2x32xf32>
    %73 = tpu.matmul %55, %5, %cst_39 {dimension_numbers = #tpu.dot_dimension_numbers<[1], [0], [0], [1], [0, 0, 1, 1], [], []>} : vector<2x32xf32>, vector<32x32xf32>, vector<2x32xf32> -> vector<2x32xf32>
    %74 = arith.addf %72, %73 : vector<2x32xf32>
    %75 = vector.broadcast %4 : vector<1x32xf32> to vector<2x32xf32>
    %76 = arith.addf %74, %75 : vector<2x32xf32>
    %cst_40 = arith.constant 0.000000e+00 : f32
    %77 = vector.broadcast %cst_40 : f32 to vector<2x32xf32>
    %78 = arith.maximumf %76, %77 : vector<2x32xf32>
    %79 = math.tanh %78 : vector<2x32xf32>
    %c2 = arith.constant 2 : index
    %c0_41 = arith.constant 0 : index
    %80 = vector.load %arg4[%c2, %c0_41] : memref<16x32xf32, #tpu.memory_space<vmem>>, vector<2x32xf32>
    tpu.vector_store %arg4[%c2, %c0_41], %79 {strides = array<i32>} : memref<16x32xf32, #tpu.memory_space<vmem>>, vector<2x32xf32>,
    %81 = vector.extract_strided_slice %17 {offsets = [6, 0], sizes = [2, 32], strides = [1, 1]} : vector<16x32xf32> to vector<2x32xf32>
    %cst_42 = arith.constant dense<0.000000e+00> : vector<2x32xf32>
    %82 = tpu.matmul %62, %2, %cst_42 {dimension_numbers = #tpu.dot_dimension_numbers<[1], [0], [0], [1], [0, 0, 1, 1], [], []>} : vector<2x32xf32>, vector<32x32xf32>, vector<2x32xf32> -> vector<2x32xf32>
    %83 = arith.addf %81, %82 : vector<2x32xf32>
    %cst_43 = arith.constant 0.000000e+00 : f32
    %84 = vector.broadcast %cst_43 : f32 to vector<2x32xf32>
    %85 = arith.maximumf %83, %84 : vector<2x32xf32>
    %86 = math.tanh %85 : vector<2x32xf32>
    %cst_44 = arith.constant dense<0.000000e+00> : vector<2x8xf32>
    %87 = tpu.matmul %86, %8, %cst_44 {dimension_numbers = #tpu.dot_dimension_numbers<[1], [0], [0], [1], [0, 0, 1, 1], [], []>} : vector<2x32xf32>, vector<32x8xf32>, vector<2x8xf32> -> vector<2x8xf32>
    %88 = vector.broadcast %9 : vector<1x8xf32> to vector<2x8xf32>
    %89 = arith.addf %87, %88 : vector<2x8xf32>
    %cst_45 = arith.constant dense<0.000000e+00> : vector<2x8xf32>
    %90 = tpu.matmul %89, %10, %cst_45 {dimension_numbers = #tpu.dot_dimension_numbers<[1], [0], [0], [1], [0, 0, 1, 1], [], []>} : vector<2x8xf32>, vector<8x8xf32>, vector<2x8xf32> -> vector<2x8xf32>
    %91 = vector.broadcast %11 : vector<1x8xf32> to vector<2x8xf32>
    %92 = arith.addf %90, %91 : vector<2x8xf32>
    %cst_46 = arith.constant 0.000000e+00 : f32
    %93 = vector.broadcast %cst_46 : f32 to vector<2x8xf32>
    %94 = arith.maximumf %92, %93 : vector<2x8xf32>
    %95 = math.tanh %94 : vector<2x8xf32>
    %cst_47 = arith.constant dense<0.000000e+00> : vector<2x32xf32>
    %96 = tpu.matmul %71, %3, %cst_47 {dimension_numbers = #tpu.dot_dimension_numbers<[1], [0], [0], [1], [0, 0, 1, 1], [], []>} : vector<2x8xf32>, vector<8x32xf32>, vector<2x32xf32> -> vector<2x32xf32>
    %cst_48 = arith.constant dense<0.000000e+00> : vector<2x32xf32>
    %97 = tpu.matmul %79, %5, %cst_48 {dimension_numbers = #tpu.dot_dimension_numbers<[1], [0], [0], [1], [0, 0, 1, 1], [], []>} : vector<2x32xf32>, vector<32x32xf32>, vector<2x32xf32> -> vector<2x32xf32>
    %98 = arith.addf %96, %97 : vector<2x32xf32>
    %99 = vector.broadcast %4 : vector<1x32xf32> to vector<2x32xf32>
    %100 = arith.addf %98, %99 : vector<2x32xf32>
    %cst_49 = arith.constant 0.000000e+00 : f32
    %101 = vector.broadcast %cst_49 : f32 to vector<2x32xf32>
    %102 = arith.maximumf %100, %101 : vector<2x32xf32>
    %103 = math.tanh %102 : vector<2x32xf32>
    %c4 = arith.constant 4 : index
    %c0_50 = arith.constant 0 : index
    %104 = vector.load %arg4[%c4, %c0_50] : memref<16x32xf32, #tpu.memory_space<vmem>>, vector<2x32xf32>
    tpu.vector_store %arg4[%c4, %c0_50], %103 {strides = array<i32>} : memref<16x32xf32, #tpu.memory_space<vmem>>, vector<2x32xf32>,
    %105 = vector.extract_strided_slice %17 {offsets = [8, 0], sizes = [2, 32], strides = [1, 1]} : vector<16x32xf32> to vector<2x32xf32>
    %cst_51 = arith.constant dense<0.000000e+00> : vector<2x32xf32>
    %106 = tpu.matmul %86, %2, %cst_51 {dimension_numbers = #tpu.dot_dimension_numbers<[1], [0], [0], [1], [0, 0, 1, 1], [], []>} : vector<2x32xf32>, vector<32x32xf32>, vector<2x32xf32> -> vector<2x32xf32>
    %107 = arith.addf %105, %106 : vector<2x32xf32>
    %cst_52 = arith.constant 0.000000e+00 : f32
    %108 = vector.broadcast %cst_52 : f32 to vector<2x32xf32>
    %109 = arith.maximumf %107, %108 : vector<2x32xf32>
    %110 = math.tanh %109 : vector<2x32xf32>
    %cst_53 = arith.constant dense<0.000000e+00> : vector<2x8xf32>
    %111 = tpu.matmul %110, %8, %cst_53 {dimension_numbers = #tpu.dot_dimension_numbers<[1], [0], [0], [1], [0, 0, 1, 1], [], []>} : vector<2x32xf32>, vector<32x8xf32>, vector<2x8xf32> -> vector<2x8xf32>
    %112 = vector.broadcast %9 : vector<1x8xf32> to vector<2x8xf32>
    %113 = arith.addf %111, %112 : vector<2x8xf32>
    %cst_54 = arith.constant dense<0.000000e+00> : vector<2x8xf32>
    %114 = tpu.matmul %113, %10, %cst_54 {dimension_numbers = #tpu.dot_dimension_numbers<[1], [0], [0], [1], [0, 0, 1, 1], [], []>} : vector<2x8xf32>, vector<8x8xf32>, vector<2x8xf32> -> vector<2x8xf32>
    %115 = vector.broadcast %11 : vector<1x8xf32> to vector<2x8xf32>
    %116 = arith.addf %114, %115 : vector<2x8xf32>
    %cst_55 = arith.constant 0.000000e+00 : f32
    %117 = vector.broadcast %cst_55 : f32 to vector<2x8xf32>
    %118 = arith.maximumf %116, %117 : vector<2x8xf32>
    %119 = math.tanh %118 : vector<2x8xf32>
    %cst_56 = arith.constant dense<0.000000e+00> : vector<2x32xf32>
    %120 = tpu.matmul %95, %3, %cst_56 {dimension_numbers = #tpu.dot_dimension_numbers<[1], [0], [0], [1], [0, 0, 1, 1], [], []>} : vector<2x8xf32>, vector<8x32xf32>, vector<2x32xf32> -> vector<2x32xf32>
    %cst_57 = arith.constant dense<0.000000e+00> : vector<2x32xf32>
    %121 = tpu.matmul %103, %5, %cst_57 {dimension_numbers = #tpu.dot_dimension_numbers<[1], [0], [0], [1], [0, 0, 1, 1], [], []>} : vector<2x32xf32>, vector<32x32xf32>, vector<2x32xf32> -> vector<2x32xf32>
    %122 = arith.addf %120, %121 : vector<2x32xf32>
    %123 = vector.broadcast %4 : vector<1x32xf32> to vector<2x32xf32>
    %124 = arith.addf %122, %123 : vector<2x32xf32>
    %cst_58 = arith.constant 0.000000e+00 : f32
    %125 = vector.broadcast %cst_58 : f32 to vector<2x32xf32>
    %126 = arith.maximumf %124, %125 : vector<2x32xf32>
    %127 = math.tanh %126 : vector<2x32xf32>
    %c6 = arith.constant 6 : index
    %c0_59 = arith.constant 0 : index
    %128 = vector.load %arg4[%c6, %c0_59] : memref<16x32xf32, #tpu.memory_space<vmem>>, vector<2x32xf32>
    tpu.vector_store %arg4[%c6, %c0_59], %127 {strides = array<i32>} : memref<16x32xf32, #tpu.memory_space<vmem>>, vector<2x32xf32>,
    %129 = vector.extract_strided_slice %17 {offsets = [10, 0], sizes = [2, 32], strides = [1, 1]} : vector<16x32xf32> to vector<2x32xf32>
    %cst_60 = arith.constant dense<0.000000e+00> : vector<2x32xf32>
    %130 = tpu.matmul %110, %2, %cst_60 {dimension_numbers = #tpu.dot_dimension_numbers<[1], [0], [0], [1], [0, 0, 1, 1], [], []>} : vector<2x32xf32>, vector<32x32xf32>, vector<2x32xf32> -> vector<2x32xf32>
    %131 = arith.addf %129, %130 : vector<2x32xf32>
    %cst_61 = arith.constant 0.000000e+00 : f32
    %132 = vector.broadcast %cst_61 : f32 to vector<2x32xf32>
    %133 = arith.maximumf %131, %132 : vector<2x32xf32>
    %134 = math.tanh %133 : vector<2x32xf32>
    %cst_62 = arith.constant dense<0.000000e+00> : vector<2x8xf32>
    %135 = tpu.matmul %134, %8, %cst_62 {dimension_numbers = #tpu.dot_dimension_numbers<[1], [0], [0], [1], [0, 0, 1, 1], [], []>} : vector<2x32xf32>, vector<32x8xf32>, vector<2x8xf32> -> vector<2x8xf32>
    %136 = vector.broadcast %9 : vector<1x8xf32> to vector<2x8xf32>
    %137 = arith.addf %135, %136 : vector<2x8xf32>
    %cst_63 = arith.constant dense<0.000000e+00> : vector<2x8xf32>
    %138 = tpu.matmul %137, %10, %cst_63 {dimension_numbers = #tpu.dot_dimension_numbers<[1], [0], [0], [1], [0, 0, 1, 1], [], []>} : vector<2x8xf32>, vector<8x8xf32>, vector<2x8xf32> -> vector<2x8xf32>
    %139 = vector.broadcast %11 : vector<1x8xf32> to vector<2x8xf32>
    %140 = arith.addf %138, %139 : vector<2x8xf32>
    %cst_64 = arith.constant 0.000000e+00 : f32
    %141 = vector.broadcast %cst_64 : f32 to vector<2x8xf32>
    %142 = arith.maximumf %140, %141 : vector<2x8xf32>
    %143 = math.tanh %142 : vector<2x8xf32>
    %cst_65 = arith.constant dense<0.000000e+00> : vector<2x32xf32>
    %144 = tpu.matmul %119, %3, %cst_65 {dimension_numbers = #tpu.dot_dimension_numbers<[1], [0], [0], [1], [0, 0, 1, 1], [], []>} : vector<2x8xf32>, vector<8x32xf32>, vector<2x32xf32> -> vector<2x32xf32>
    %cst_66 = arith.constant dense<0.000000e+00> : vector<2x32xf32>
    %145 = tpu.matmul %127, %5, %cst_66 {dimension_numbers = #tpu.dot_dimension_numbers<[1], [0], [0], [1], [0, 0, 1, 1], [], []>} : vector<2x32xf32>, vector<32x32xf32>, vector<2x32xf32> -> vector<2x32xf32>
    %146 = arith.addf %144, %145 : vector<2x32xf32>
    %147 = vector.broadcast %4 : vector<1x32xf32> to vector<2x32xf32>
    %148 = arith.addf %146, %147 : vector<2x32xf32>
    %cst_67 = arith.constant 0.000000e+00 : f32
    %149 = vector.broadcast %cst_67 : f32 to vector<2x32xf32>
    %150 = arith.maximumf %148, %149 : vector<2x32xf32>
    %151 = math.tanh %150 : vector<2x32xf32>
    %c8 = arith.constant 8 : index
    %c0_68 = arith.constant 0 : index
    %152 = vector.load %arg4[%c8, %c0_68] : memref<16x32xf32, #tpu.memory_space<vmem>>, vector<2x32xf32>
    tpu.vector_store %arg4[%c8, %c0_68], %151 {strides = array<i32>} : memref<16x32xf32, #tpu.memory_space<vmem>>, vector<2x32xf32>,
    %153 = vector.extract_strided_slice %17 {offsets = [12, 0], sizes = [2, 32], strides = [1, 1]} : vector<16x32xf32> to vector<2x32xf32>
    %cst_69 = arith.constant dense<0.000000e+00> : vector<2x32xf32>
    %154 = tpu.matmul %134, %2, %cst_69 {dimension_numbers = #tpu.dot_dimension_numbers<[1], [0], [0], [1], [0, 0, 1, 1], [], []>} : vector<2x32xf32>, vector<32x32xf32>, vector<2x32xf32> -> vector<2x32xf32>
    %155 = arith.addf %153, %154 : vector<2x32xf32>
    %cst_70 = arith.constant 0.000000e+00 : f32
    %156 = vector.broadcast %cst_70 : f32 to vector<2x32xf32>
    %157 = arith.maximumf %155, %156 : vector<2x32xf32>
    %158 = math.tanh %157 : vector<2x32xf32>
    %cst_71 = arith.constant dense<0.000000e+00> : vector<2x8xf32>
    %159 = tpu.matmul %158, %8, %cst_71 {dimension_numbers = #tpu.dot_dimension_numbers<[1], [0], [0], [1], [0, 0, 1, 1], [], []>} : vector<2x32xf32>, vector<32x8xf32>, vector<2x8xf32> -> vector<2x8xf32>
    %160 = vector.broadcast %9 : vector<1x8xf32> to vector<2x8xf32>
    %161 = arith.addf %159, %160 : vector<2x8xf32>
    %cst_72 = arith.constant dense<0.000000e+00> : vector<2x8xf32>
    %162 = tpu.matmul %161, %10, %cst_72 {dimension_numbers = #tpu.dot_dimension_numbers<[1], [0], [0], [1], [0, 0, 1, 1], [], []>} : vector<2x8xf32>, vector<8x8xf32>, vector<2x8xf32> -> vector<2x8xf32>
    %163 = vector.broadcast %11 : vector<1x8xf32> to vector<2x8xf32>
    %164 = arith.addf %162, %163 : vector<2x8xf32>
    %cst_73 = arith.constant 0.000000e+00 : f32
    %165 = vector.broadcast %cst_73 : f32 to vector<2x8xf32>
    %166 = arith.maximumf %164, %165 : vector<2x8xf32>
    %167 = math.tanh %166 : vector<2x8xf32>
    %cst_74 = arith.constant dense<0.000000e+00> : vector<2x32xf32>
    %168 = tpu.matmul %143, %3, %cst_74 {dimension_numbers = #tpu.dot_dimension_numbers<[1], [0], [0], [1], [0, 0, 1, 1], [], []>} : vector<2x8xf32>, vector<8x32xf32>, vector<2x32xf32> -> vector<2x32xf32>
    %cst_75 = arith.constant dense<0.000000e+00> : vector<2x32xf32>
    %169 = tpu.matmul %151, %5, %cst_75 {dimension_numbers = #tpu.dot_dimension_numbers<[1], [0], [0], [1], [0, 0, 1, 1], [], []>} : vector<2x32xf32>, vector<32x32xf32>, vector<2x32xf32> -> vector<2x32xf32>
    %170 = arith.addf %168, %169 : vector<2x32xf32>
    %171 = vector.broadcast %4 : vector<1x32xf32> to vector<2x32xf32>
    %172 = arith.addf %170, %171 : vector<2x32xf32>
    %cst_76 = arith.constant 0.000000e+00 : f32
    %173 = vector.broadcast %cst_76 : f32 to vector<2x32xf32>
    %174 = arith.maximumf %172, %173 : vector<2x32xf32>
    %175 = math.tanh %174 : vector<2x32xf32>
    %c10 = arith.constant 10 : index
    %c0_77 = arith.constant 0 : index
    %176 = vector.load %arg4[%c10, %c0_77] : memref<16x32xf32, #tpu.memory_space<vmem>>, vector<2x32xf32>
    tpu.vector_store %arg4[%c10, %c0_77], %175 {strides = array<i32>} : memref<16x32xf32, #tpu.memory_space<vmem>>, vector<2x32xf32>,
    %177 = vector.extract_strided_slice %17 {offsets = [14, 0], sizes = [2, 32], strides = [1, 1]} : vector<16x32xf32> to vector<2x32xf32>
    %cst_78 = arith.constant dense<0.000000e+00> : vector<2x32xf32>
    %178 = tpu.matmul %158, %2, %cst_78 {dimension_numbers = #tpu.dot_dimension_numbers<[1], [0], [0], [1], [0, 0, 1, 1], [], []>} : vector<2x32xf32>, vector<32x32xf32>, vector<2x32xf32> -> vector<2x32xf32>
    %179 = arith.addf %177, %178 : vector<2x32xf32>
    %cst_79 = arith.constant 0.000000e+00 : f32
    %180 = vector.broadcast %cst_79 : f32 to vector<2x32xf32>
    %181 = arith.maximumf %179, %180 : vector<2x32xf32>
    %182 = math.tanh %181 : vector<2x32xf32>
    %cst_80 = arith.constant dense<0.000000e+00> : vector<2x8xf32>
    %183 = tpu.matmul %182, %8, %cst_80 {dimension_numbers = #tpu.dot_dimension_numbers<[1], [0], [0], [1], [0, 0, 1, 1], [], []>} : vector<2x32xf32>, vector<32x8xf32>, vector<2x8xf32> -> vector<2x8xf32>
    %184 = vector.broadcast %9 : vector<1x8xf32> to vector<2x8xf32>
    %185 = arith.addf %183, %184 : vector<2x8xf32>
    %cst_81 = arith.constant dense<0.000000e+00> : vector<2x8xf32>
    %186 = tpu.matmul %185, %10, %cst_81 {dimension_numbers = #tpu.dot_dimension_numbers<[1], [0], [0], [1], [0, 0, 1, 1], [], []>} : vector<2x8xf32>, vector<8x8xf32>, vector<2x8xf32> -> vector<2x8xf32>
    %187 = vector.broadcast %11 : vector<1x8xf32> to vector<2x8xf32>
    %188 = arith.addf %186, %187 : vector<2x8xf32>
    %cst_82 = arith.constant 0.000000e+00 : f32
    %189 = vector.broadcast %cst_82 : f32 to vector<2x8xf32>
    %190 = arith.maximumf %188, %189 : vector<2x8xf32>
    %191 = math.tanh %190 : vector<2x8xf32>
    %cst_83 = arith.constant dense<0.000000e+00> : vector<2x32xf32>
    %192 = tpu.matmul %167, %3, %cst_83 {dimension_numbers = #tpu.dot_dimension_numbers<[1], [0], [0], [1], [0, 0, 1, 1], [], []>} : vector<2x8xf32>, vector<8x32xf32>, vector<2x32xf32> -> vector<2x32xf32>
    %cst_84 = arith.constant dense<0.000000e+00> : vector<2x32xf32>
    %193 = tpu.matmul %175, %5, %cst_84 {dimension_numbers = #tpu.dot_dimension_numbers<[1], [0], [0], [1], [0, 0, 1, 1], [], []>} : vector<2x32xf32>, vector<32x32xf32>, vector<2x32xf32> -> vector<2x32xf32>
    %194 = arith.addf %192, %193 : vector<2x32xf32>
    %195 = vector.broadcast %4 : vector<1x32xf32> to vector<2x32xf32>
    %196 = arith.addf %194, %195 : vector<2x32xf32>
    %cst_85 = arith.constant 0.000000e+00 : f32
    %197 = vector.broadcast %cst_85 : f32 to vector<2x32xf32>
    %198 = arith.maximumf %196, %197 : vector<2x32xf32>
    %199 = math.tanh %198 : vector<2x32xf32>
    %c12 = arith.constant 12 : index
    %c0_86 = arith.constant 0 : index
    %200 = vector.load %arg4[%c12, %c0_86] : memref<16x32xf32, #tpu.memory_space<vmem>>, vector<2x32xf32>
    tpu.vector_store %arg4[%c12, %c0_86], %199 {strides = array<i32>} : memref<16x32xf32, #tpu.memory_space<vmem>>, vector<2x32xf32>,
    %cst_87 = arith.constant dense<0.000000e+00> : vector<2x32xf32>
    %201 = tpu.matmul %191, %3, %cst_87 {dimension_numbers = #tpu.dot_dimension_numbers<[1], [0], [0], [1], [0, 0, 1, 1], [], []>} : vector<2x8xf32>, vector<8x32xf32>, vector<2x32xf32> -> vector<2x32xf32>
    %cst_88 = arith.constant dense<0.000000e+00> : vector<2x32xf32>
    %202 = tpu.matmul %199, %5, %cst_88 {dimension_numbers = #tpu.dot_dimension_numbers<[1], [0], [0], [1], [0, 0, 1, 1], [], []>} : vector<2x32xf32>, vector<32x32xf32>, vector<2x32xf32> -> vector<2x32xf32>
    %203 = arith.addf %201, %202 : vector<2x32xf32>
    %204 = vector.broadcast %4 : vector<1x32xf32> to vector<2x32xf32>
    %205 = arith.addf %203, %204 : vector<2x32xf32>
    %cst_89 = arith.constant 0.000000e+00 : f32
    %206 = vector.broadcast %cst_89 : f32 to vector<2x32xf32>
    %207 = arith.maximumf %205, %206 : vector<2x32xf32>
    %208 = math.tanh %207 : vector<2x32xf32>
    %c14 = arith.constant 14 : index
    %c0_90 = arith.constant 0 : index
    %209 = vector.load %arg4[%c14, %c0_90] : memref<16x32xf32, #tpu.memory_space<vmem>>, vector<2x32xf32>
    tpu.vector_store %arg4[%c14, %c0_90], %208 {strides = array<i32>} : memref<16x32xf32, #tpu.memory_space<vmem>>, vector<2x32xf32>,
    %c0_91 = arith.constant 0 : index
    %c0_92 = arith.constant 0 : index
    %210 = vector.load %arg4[%c0_91, %c0_92] : memref<16x32xf32, #tpu.memory_space<vmem>>, vector<16x32xf32>
    %cst_93 = arith.constant dense<0.000000e+00> : vector<16x8xf32>
    %211 = tpu.matmul %210, %12, %cst_93 {dimension_numbers = #tpu.dot_dimension_numbers<[1], [0], [0], [1], [0, 0, 1, 1], [], []>} : vector<16x32xf32>, vector<32x8xf32>, vector<16x8xf32> -> vector<16x8xf32>
    %212 = vector.broadcast %13 : vector<1x8xf32> to vector<16x8xf32>
    %213 = arith.addf %211, %212 : vector<16x8xf32>
    %c0_94 = arith.constant 0 : index
    %c0_95 = arith.constant 0 : index
    %214 = vector.load %arg3[%c0_94, %c0_95] : memref<16x8xf32, #tpu.memory_space<vmem>>, vector<16x8xf32>
    tpu.vector_store %arg3[%c0_94, %c0_95], %213 {strides = array<i32>} : memref<16x8xf32, #tpu.memory_space<vmem>>, vector<16x8xf32>,
    return
  }
}

</mosaic_0001>

<llo_original>
// kernel: tpu_custom_call.1
$region0: #{tpu_custom_call.1}
  #allocation0 [shape = 'u32[]', space=smem, size = 0x4, offset = 0x4, fixed_abs, tag = 'smem constant byte address 0x4 - core index']
  #allocation1 [shape = 'u32[144,128]{1,0:T(1,128)}', space=vmem, size = 0x12000, scoped, tag = 'internal scratch']
  #allocation2 [shape = 'f32[16,32]{1,0:T(8,128)}', space=vmem, size = 0x2000, scoped, tag = 'scratch operand']
  %s0 = inlined_call_operand.vmem [shape: f32[16,16], index: 0, kind: input, shape index: {}]
  %s1 = inlined_call_operand.vmem [shape: f32[120,32], index: 1, kind: input, shape index: {}]
  %s2 = inlined_call_operand.vmem [shape: f32[96,8], index: 2, kind: input, shape index: {}]
  %s3 = inlined_call_operand.vmem [shape: f32[16,8], index: 3, kind: output, shape index: {}]
  %s4 = sld [smem:[#allocation0]]
  $region22: #{tpu_custom_call.1} parent=0
    _
  %s6 = ssub.s32 1, %s4
  %s7 = scalar_select 0, %s6, %s4
  // Predicated region
  $region2: #{tpu_custom_call.1} parent=0 // pred_check
    _
  $region3: #{tpu_custom_call.1} parent=0 // pred_check_branch
    %9 = sbr.rel (0) target = $region5
  $region4: #{tpu_custom_call.1} parent=0 // pred_region
    _
  $region5: #{tpu_custom_call.1} parent=0 // pred_fallthru
    _
  // Predicated region
  $region6: #{tpu_custom_call.1} parent=0 // pred_check
    _
  $region7: #{tpu_custom_call.1} parent=0 // pred_check_branch
    %11 = sbr.rel (0) target = $region9
  $region8: #{tpu_custom_call.1} parent=0 // pred_region
    _
  $region9: #{tpu_custom_call.1} parent=0 // pred_fallthru
    _
  // Predicated region
  $region10: #{tpu_custom_call.1} parent=0 // pred_check
    _
  $region11: #{tpu_custom_call.1} parent=0 // pred_check_branch
    %13 = sbr.rel (0) target = $region13
  $region12: #{tpu_custom_call.1} parent=0 // pred_region
    _
  $region13: #{tpu_custom_call.1} parent=0 // pred_fallthru
    _
  %v14 = vld [vmem:[%s1] sm:$0xff]
  %v15 = vld [vmem:[%s1 + $0x8] sm:$0xff]
  %v16 = vld [vmem:[%s1 + $0x10] sm:$0x1]
  %v17 = vld [vmem:[%s1 + $0x18] sm:$0xff]
  %v18 = vld [vmem:[%s1 + $0x20] sm:$0xff]
  %v19 = vld [vmem:[%s1 + $0x28] sm:$0xff]
  %v20 = vld [vmem:[%s1 + $0x30] sm:$0xff]
  %v21 = vld [vmem:[%s1 + $0x38] sm:$0xff]
  %v22 = vld [vmem:[%s1 + $0x40] sm:$0x1]
  %v23 = vld [vmem:[%s1 + $0x48] sm:$0xff]
  %v24 = vld [vmem:[%s1 + $0x50] sm:$0xff]
  %v25 = vld [vmem:[%s1 + $0x58] sm:$0xff]
  %v26 = vld [vmem:[%s1 + $0x60] sm:$0xff]
  %v27 = vld [vmem:[%s1 + $0x68] sm:$0x3]
  %v28 = vld [vmem:[%s1 + $0x70] sm:$0x3]
  %v29 = vld [vmem:[%s2] sm:$0xff]
  %v30 = vld [vmem:[%s2 + $0x8] sm:$0xff]
  %v31 = vld [vmem:[%s2 + $0x10] sm:$0xff]
  %v32 = vld [vmem:[%s2 + $0x18] sm:$0xff]
  %v33 = vld [vmem:[%s2 + $0x20] sm:$0x1]
  %v34 = vld [vmem:[%s2 + $0x28] sm:$0xff]
  %v35 = vld [vmem:[%s2 + $0x30] sm:$0x1]
  %v36 = vld [vmem:[%s2 + $0x38] sm:$0xff]
  %v37 = vld [vmem:[%s2 + $0x40] sm:$0xff]
  %v38 = vld [vmem:[%s2 + $0x48] sm:$0xff]
  %v39 = vld [vmem:[%s2 + $0x50] sm:$0xff]
  %v40 = vld [vmem:[%s2 + $0x58] sm:$0x1]
  %v41 = vld [vmem:[%s0] sm:$0xff]
  %v42 = vld [vmem:[%s0 + $0x8] sm:$0xff]
  %v43 = vlaneseq
  %v44 = vshrl.u32 %v43, 7
  %v45 = vsub.s32 0, %v44
  %v46 = vrot.slane %v16, %v45
  %vm47 = vcmask 130048
  %v49 = vsel %vm47, %v41, 0
  %v52 = vsel %vm47, %v42, 0
  %54 = vmatprep.subr.mxu0 0.0
  %55 = vmatpush1.msra.mxu0 0.0
  %56 = vmatprep.subr.mxu0 0.0
  %57 = vmatpush1.msra.mxu0 0.0
  %58 = vmatprep.subr.mxu0 0.0
  %59 = vmatpush1.msra.mxu0 0.0
  %60 = vmatprep.subr.mxu0 0.0
  %61 = vmatpush1.msra.mxu0 0.0
  %62 = vmatprep.subr.mxu0 0.0
  %63 = vmatpush1.msra.mxu0 0.0
  %64 = vmatprep.subr.mxu0 0.0
  %65 = vmatpush1.msra.mxu0 0.0
  %66 = vmatprep.subr.mxu0 0.0
  %67 = vmatpush1.msra.mxu0 0.0
  %68 = vmatprep.subr.mxu0 0.0
  %69 = vmatpush1.msra.mxu0 0.0
  %70 = vmatprep.subr.mxu0 0.0
  %71 = vmatpush1.msra.mxu0 0.0
  %72 = vmatprep.subr.mxu0 0.0
  %73 = vmatpush1.msra.mxu0 0.0
  %74 = vmatprep.subr.mxu0 0.0
  %75 = vmatpush1.msra.mxu0 0.0
  %76 = vmatprep.subr.mxu0 0.0
  %77 = vmatpush1.msra.mxu0 0.0
  %78 = vmatprep.subr.mxu0 0.0
  %79 = vmatpush1.msra.mxu0 0.0
  %80 = vmatprep.subr.mxu0 0.0
  %81 = vmatpush1.msra.mxu0 0.0
  %82 = vmatprep.subr.mxu0 0.0
  %83 = vmatpush1.msra.mxu0 %v15
  %84 = vmatprep.subr.mxu0 0.0
  %85 = vmatpush1.msra.mxu0 %v14
  %86 = vmatprep.subr.mxu0 0.0
  %87 = vmatpush2.msra.mxu0 0.0
  %88 = vmatprep.subr.mxu0 0.0
  %89 = vmatpush2.msra.mxu0 0.0
  %90 = vmatprep.subr.mxu0 0.0
  %91 = vmatpush2.msra.mxu0 0.0
  %92 = vmatprep.subr.mxu0 0.0
  %93 = vmatpush2.msra.mxu0 0.0
  %94 = vmatprep.subr.mxu0 0.0
  %95 = vmatpush2.msra.mxu0 0.0
  %96 = vmatprep.subr.mxu0 0.0
  %97 = vmatpush2.msra.mxu0 0.0
  %98 = vmatprep.subr.mxu0 0.0
  %99 = vmatpush2.msra.mxu0 0.0
  %100 = vmatprep.subr.mxu0 0.0
  %101 = vmatpush2.msra.mxu0 0.0
  %102 = vmatprep.subr.mxu0 0.0
  %103 = vmatpush2.msra.mxu0 0.0
  %104 = vmatprep.subr.mxu0 0.0
  %105 = vmatpush2.msra.mxu0 0.0
  %106 = vmatprep.subr.mxu0 0.0
  %107 = vmatpush2.msra.mxu0 0.0
  %108 = vmatprep.subr.mxu0 0.0
  %109 = vmatpush2.msra.mxu0 0.0
  %110 = vmatprep.subr.mxu0 0.0
  %111 = vmatpush2.msra.mxu0 0.0
  %112 = vmatprep.subr.mxu0 0.0
  %113 = vmatpush2.msra.mxu0 0.0
  %114 = vmatprep.subr.mxu0 0.0
  %115 = vmatpush2.msra.mxu0 0.0
  %116 = vmatprep.subr.mxu0 0.0
  %117 = vmatpush2.msra.mxu0 0.0
  %118 = vmatprep.mubr.f32.mxu0 0.0
  %119 = vmatmul.mubr.f32.gmra.mxu0 %v49
  %v120 = vpop.f32.mrf.mxu0
  %v121 = vadd.f32 %v46, %v120
  %v122 = vpop.f32.mrf.mxu0
  %123 = vmatprep.mubr.f32.mxu0 0.0
  %124 = vmatmul.mubr.f32.gmra.mxu0 %v52
  %v125 = vpop.f32.mrf.mxu0
  %v126 = vadd.f32 %v46, %v125
  %v127 = vpop.f32.mrf.mxu0
  %128 = vdwg.mxu0
  %vm129 = vcmask 261120
  %v131 = vsel %vm129, %v27, 0
  %133 = vmatprep.subr.mxu0 0.0
  %134 = vmatpush1.msra.mxu0 0.0
  %135 = vmatprep.subr.mxu0 0.0
  %136 = vmatpush1.msra.mxu0 0.0
  %137 = vmatprep.subr.mxu0 0.0
  %138 = vmatpush1.msra.mxu0 0.0
  %139 = vmatprep.subr.mxu0 0.0
  %140 = vmatpush1.msra.mxu0 0.0
  %141 = vmatprep.subr.mxu0 0.0
  %142 = vmatpush1.msra.mxu0 0.0
  %143 = vmatprep.subr.mxu0 0.0
  %144 = vmatpush1.msra.mxu0 0.0
  %145 = vmatprep.subr.mxu0 0.0
  %146 = vmatpush1.msra.mxu0 0.0
  %147 = vmatprep.subr.mxu0 0.0
  %148 = vmatpush1.msra.mxu0 0.0
  %149 = vmatprep.subr.mxu0 0.0
  %150 = vmatpush1.msra.mxu0 0.0
  %151 = vmatprep.subr.mxu0 0.0
  %152 = vmatpush1.msra.mxu0 0.0
  %153 = vmatprep.subr.mxu0 0.0
  %154 = vmatpush1.msra.mxu0 0.0
  %155 = vmatprep.subr.mxu0 0.0
  %156 = vmatpush1.msra.mxu0 0.0
  %157 = vmatprep.subr.mxu0 0.0
  %158 = vmatpush1.msra.mxu0 %v20
  %159 = vmatprep.subr.mxu0 0.0
  %160 = vmatpush1.msra.mxu0 %v19
  %161 = vmatprep.subr.mxu0 0.0
  %162 = vmatpush1.msra.mxu0 %v18
  %163 = vmatprep.subr.mxu0 0.0
  %164 = vmatpush1.msra.mxu0 %v17
  %165 = vmatprep.subr.mxu0 0.0
  %166 = vmatpush2.msra.mxu0 0.0
  %167 = vmatprep.subr.mxu0 0.0
  %168 = vmatpush2.msra.mxu0 0.0
  %169 = vmatprep.subr.mxu0 0.0
  %170 = vmatpush2.msra.mxu0 0.0
  %171 = vmatprep.subr.mxu0 0.0
  %172 = vmatpush2.msra.mxu0 0.0
  %173 = vmatprep.subr.mxu0 0.0
  %174 = vmatpush2.msra.mxu0 0.0
  %175 = vmatprep.subr.mxu0 0.0
  %176 = vmatpush2.msra.mxu0 0.0
  %177 = vmatprep.subr.mxu0 0.0
  %178 = vmatpush2.msra.mxu0 0.0
  %179 = vmatprep.subr.mxu0 0.0
  %180 = vmatpush2.msra.mxu0 0.0
  %181 = vmatprep.subr.mxu0 0.0
  %182 = vmatpush2.msra.mxu0 0.0
  %183 = vmatprep.subr.mxu0 0.0
  %184 = vmatpush2.msra.mxu0 0.0
  %185 = vmatprep.subr.mxu0 0.0
  %186 = vmatpush2.msra.mxu0 0.0
  %187 = vmatprep.subr.mxu0 0.0
  %188 = vmatpush2.msra.mxu0 0.0
  %189 = vmatprep.subr.mxu0 0.0
  %190 = vmatpush2.msra.mxu0 0.0
  %191 = vmatprep.subr.mxu0 0.0
  %192 = vmatpush2.msra.mxu0 0.0
  %193 = vmatprep.subr.mxu0 0.0
  %194 = vmatpush2.msra.mxu0 0.0
  %195 = vmatprep.subr.mxu0 0.0
  %196 = vmatpush2.msra.mxu0 0.0
  %197 = vmatprep.mubr.f32.mxu0 0.0
  %198 = vmatmul.mubr.f32.gmra.mxu0 %v131
  %v199 = vpop.f32.mrf.mxu0
  %v200 = vadd.f32 0.0, %v199
  %v201 = vpop.f32.mrf.mxu0
  %202 = vdwg.mxu0
  %v203 = vadd.f32 %v121, %v200
  %v204 = vmax.f32 %v203, 0.0
  %v205 = vtanh.pop %v204
  %v206 = vlaneseq
  %v207 = vshrl.u32 %v206, 7
  %v208 = vsub.s32 0, %v207
  %v209 = vrot.slane %v33, %v208
  %v211 = vsel %vm129, %v205, 0
  %213 = vmatprep.subr.mxu0 0.0
  %214 = vmatpush1.msra.mxu0 0.0
  %215 = vmatprep.subr.mxu0 0.0
  %216 = vmatpush1.msra.mxu0 0.0
  %217 = vmatprep.subr.mxu0 0.0
  %218 = vmatpush1.msra.mxu0 0.0
  %219 = vmatprep.subr.mxu0 0.0
  %220 = vmatpush1.msra.mxu0 0.0
  %221 = vmatprep.subr.mxu0 0.0
  %222 = vmatpush1.msra.mxu0 0.0
  %223 = vmatprep.subr.mxu0 0.0
  %224 = vmatpush1.msra.mxu0 0.0
  %225 = vmatprep.subr.mxu0 0.0
  %226 = vmatpush1.msra.mxu0 0.0
  %227 = vmatprep.subr.mxu0 0.0
  %228 = vmatpush1.msra.mxu0 0.0
  %229 = vmatprep.subr.mxu0 0.0
  %230 = vmatpush1.msra.mxu0 0.0
  %231 = vmatprep.subr.mxu0 0.0
  %232 = vmatpush1.msra.mxu0 0.0
  %233 = vmatprep.subr.mxu0 0.0
  %234 = vmatpush1.msra.mxu0 0.0
  %235 = vmatprep.subr.mxu0 0.0
  %236 = vmatpush1.msra.mxu0 0.0
  %237 = vmatprep.subr.mxu0 0.0
  %238 = vmatpush1.msra.mxu0 %v32
  %239 = vmatprep.subr.mxu0 0.0
  %240 = vmatpush1.msra.mxu0 %v31
  %241 = vmatprep.subr.mxu0 0.0
  %242 = vmatpush1.msra.mxu0 %v30
  %243 = vmatprep.subr.mxu0 0.0
  %244 = vmatpush1.msra.mxu0 %v29
  %245 = vmatprep.subr.mxu0 0.0
  %246 = vmatpush2.msra.mxu0 0.0
  %247 = vmatprep.subr.mxu0 0.0
  %248 = vmatpush2.msra.mxu0 0.0
  %249 = vmatprep.subr.mxu0 0.0
  %250 = vmatpush2.msra.mxu0 0.0
  %251 = vmatprep.subr.mxu0 0.0
  %252 = vmatpush2.msra.mxu0 0.0
  %253 = vmatprep.subr.mxu0 0.0
  %254 = vmatpush2.msra.mxu0 0.0
  %255 = vmatprep.subr.mxu0 0.0
  %256 = vmatpush2.msra.mxu0 0.0
  %257 = vmatprep.subr.mxu0 0.0
  %258 = vmatpush2.msra.mxu0 0.0
  %259 = vmatprep.subr.mxu0 0.0
  %260 = vmatpush2.msra.mxu0 0.0
  %261 = vmatprep.subr.mxu0 0.0
  %262 = vmatpush2.msra.mxu0 0.0
  %263 = vmatprep.subr.mxu0 0.0
  %264 = vmatpush2.msra.mxu0 0.0
  %265 = vmatprep.subr.mxu0 0.0
  %266 = vmatpush2.msra.mxu0 0.0
  %267 = vmatprep.subr.mxu0 0.0
  %268 = vmatpush2.msra.mxu0 0.0
  %269 = vmatprep.subr.mxu0 0.0
  %270 = vmatpush2.msra.mxu0 0.0
  %271 = vmatprep.subr.mxu0 0.0
  %272 = vmatpush2.msra.mxu0 0.0
  %273 = vmatprep.subr.mxu0 0.0
  %274 = vmatpush2.msra.mxu0 0.0
  %275 = vmatprep.subr.mxu0 0.0
  %276 = vmatpush2.msra.mxu0 0.0
  %277 = vmatprep.mubr.f32.mxu0 0.0
  %278 = vmatmul.mubr.f32.gmra.mxu0 %v211
  %v279 = vpop.f32.mrf.mxu0
  %v280 = vadd.f32 %v209, %v279
  %v281 = vpop.f32.mrf.mxu0
  %282 = vdwg.mxu0
  %v283 = vlaneseq
  %v284 = vshrl.u32 %v283, 7
  %v285 = vsub.s32 0, %v284
  %v286 = vrot.slane %v35, %v285
  %vm287 = vcmask 64512
  %v289 = vsel %vm287, %v280, 0
  %291 = vmatprep.subr.mxu0 0.0
  %292 = vmatpush1.msra.mxu0 0.0
  %293 = vmatprep.subr.mxu0 0.0
  %294 = vmatpush1.msra.mxu0 0.0
  %295 = vmatprep.subr.mxu0 0.0
  %296 = vmatpush1.msra.mxu0 0.0
  %297 = vmatprep.subr.mxu0 0.0
  %298 = vmatpush1.msra.mxu0 0.0
  %299 = vmatprep.subr.mxu0 0.0
  %300 = vmatpush1.msra.mxu0 0.0
  %301 = vmatprep.subr.mxu0 0.0
  %302 = vmatpush1.msra.mxu0 0.0
  %303 = vmatprep.subr.mxu0 0.0
  %304 = vmatpush1.msra.mxu0 0.0
  %305 = vmatprep.subr.mxu0 0.0
  %306 = vmatpush1.msra.mxu0 0.0
  %307 = vmatprep.subr.mxu0 0.0
  %308 = vmatpush1.msra.mxu0 0.0
  %309 = vmatprep.subr.mxu0 0.0
  %310 = vmatpush1.msra.mxu0 0.0
  %311 = vmatprep.subr.mxu0 0.0
  %312 = vmatpush1.msra.mxu0 0.0
  %313 = vmatprep.subr.mxu0 0.0
  %314 = vmatpush1.msra.mxu0 0.0
  %315 = vmatprep.subr.mxu0 0.0
  %316 = vmatpush1.msra.mxu0 0.0
  %317 = vmatprep.subr.mxu0 0.0
  %318 = vmatpush1.msra.mxu0 0.0
  %319 = vmatprep.subr.mxu0 0.0
  %320 = vmatpush1.msra.mxu0 0.0
  %321 = vmatprep.subr.mxu0 0.0
  %322 = vmatpush1.msra.mxu0 %v34
  %323 = vmatprep.subr.mxu0 0.0
  %324 = vmatpush2.msra.mxu0 0.0
  %325 = vmatprep.subr.mxu0 0.0
  %326 = vmatpush2.msra.mxu0 0.0
  %327 = vmatprep.subr.mxu0 0.0
  %328 = vmatpush2.msra.mxu0 0.0
  %329 = vmatprep.subr.mxu0 0.0
  %330 = vmatpush2.msra.mxu0 0.0
  %331 = vmatprep.subr.mxu0 0.0
  %332 = vmatpush2.msra.mxu0 0.0
  %333 = vmatprep.subr.mxu0 0.0
  %334 = vmatpush2.msra.mxu0 0.0
  %335 = vmatprep.subr.mxu0 0.0
  %336 = vmatpush2.msra.mxu0 0.0
  %337 = vmatprep.subr.mxu0 0.0
  %338 = vmatpush2.msra.mxu0 0.0
  %339 = vmatprep.subr.mxu0 0.0
  %340 = vmatpush2.msra.mxu0 0.0
  %341 = vmatprep.subr.mxu0 0.0
  %342 = vmatpush2.msra.mxu0 0.0
  %343 = vmatprep.subr.mxu0 0.0
  %344 = vmatpush2.msra.mxu0 0.0
  %345 = vmatprep.subr.mxu0 0.0
  %346 = vmatpush2.msra.mxu0 0.0
  %347 = vmatprep.subr.mxu0 0.0
  %348 = vmatpush2.msra.mxu0 0.0
  %349 = vmatprep.subr.mxu0 0.0
  %350 = vmatpush2.msra.mxu0 0.0
  %351 = vmatprep.subr.mxu0 0.0
  %352 = vmatpush2.msra.mxu0 0.0
  %353 = vmatprep.subr.mxu0 0.0
  %354 = vmatpush2.msra.mxu0 0.0
  %355 = vmatprep.mubr.f32.mxu0 0.0
  %356 = vmatmul.mubr.f32.gmra.mxu0 %v289
  %v357 = vpop.f32.mrf.mxu0
  %v358 = vadd.f32 %v286, %v357
  %v359 = vpop.f32.mrf.mxu0
  %360 = vdwg.mxu0
  %v361 = vmax.f32 %v358, 0.0
  %v362 = vtanh.pop %v361
  %363 = vmatprep.subr.mxu0 0.0
  %364 = vmatpush1.msra.mxu0 0.0
  %365 = vmatprep.subr.mxu0 0.0
  %366 = vmatpush1.msra.mxu0 0.0
  %367 = vmatprep.subr.mxu0 0.0
  %368 = vmatpush1.msra.mxu0 0.0
  %369 = vmatprep.subr.mxu0 0.0
  %370 = vmatpush1.msra.mxu0 0.0
  %371 = vmatprep.subr.mxu0 0.0
  %372 = vmatpush1.msra.mxu0 0.0
  %373 = vmatprep.subr.mxu0 0.0
  %374 = vmatpush1.msra.mxu0 0.0
  %375 = vmatprep.subr.mxu0 0.0
  %376 = vmatpush1.msra.mxu0 0.0
  %377 = vmatprep.subr.mxu0 0.0
  %378 = vmatpush1.msra.mxu0 0.0
  %379 = vmatprep.subr.mxu0 0.0
  %380 = vmatpush1.msra.mxu0 0.0
  %381 = vmatprep.subr.mxu0 0.0
  %382 = vmatpush1.msra.mxu0 0.0
  %383 = vmatprep.subr.mxu0 0.0
  %384 = vmatpush1.msra.mxu0 0.0
  %385 = vmatprep.subr.mxu0 0.0
  %386 = vmatpush1.msra.mxu0 0.0
  %387 = vmatprep.subr.mxu0 0.0
  %388 = vmatpush1.msra.mxu0 %v20
  %389 = vmatprep.subr.mxu0 0.0
  %390 = vmatpush1.msra.mxu0 %v19
  %391 = vmatprep.subr.mxu0 0.0
  %392 = vmatpush1.msra.mxu0 %v18
  %393 = vmatprep.subr.mxu0 0.0
  %394 = vmatpush1.msra.mxu0 %v17
  %395 = vmatprep.subr.mxu0 0.0
  %396 = vmatpush2.msra.mxu0 0.0
  %397 = vmatprep.subr.mxu0 0.0
  %398 = vmatpush2.msra.mxu0 0.0
  %399 = vmatprep.subr.mxu0 0.0
  %400 = vmatpush2.msra.mxu0 0.0
  %401 = vmatprep.subr.mxu0 0.0
  %402 = vmatpush2.msra.mxu0 0.0
  %403 = vmatprep.subr.mxu0 0.0
  %404 = vmatpush2.msra.mxu0 0.0
  %405 = vmatprep.subr.mxu0 0.0
  %406 = vmatpush2.msra.mxu0 0.0
  %407 = vmatprep.subr.mxu0 0.0
  %408 = vmatpush2.msra.mxu0 0.0
  %409 = vmatprep.subr.mxu0 0.0
  %410 = vmatpush2.msra.mxu0 0.0
  %411 = vmatprep.subr.mxu0 0.0
  %412 = vmatpush2.msra.mxu0 0.0
  %413 = vmatprep.subr.mxu0 0.0
  %414 = vmatpush2.msra.mxu0 0.0
  %415 = vmatprep.subr.mxu0 0.0
  %416 = vmatpush2.msra.mxu0 0.0
  %417 = vmatprep.subr.mxu0 0.0
  %418 = vmatpush2.msra.mxu0 0.0
  %419 = vmatprep.subr.mxu0 0.0
  %420 = vmatpush2.msra.mxu0 0.0
  %421 = vmatprep.subr.mxu0 0.0
  %422 = vmatpush2.msra.mxu0 0.0
  %423 = vmatprep.subr.mxu0 0.0
  %424 = vmatpush2.msra.mxu0 0.0
  %425 = vmatprep.subr.mxu0 0.0
  %426 = vmatpush2.msra.mxu0 0.0
  %427 = vmatprep.mubr.f32.mxu0 0.0
  %428 = vmatmul.mubr.f32.gmra.mxu0 %v211
  %v429 = vpop.f32.mrf.mxu0
  %v430 = vadd.f32 0.0, %v429
  %v431 = vpop.f32.mrf.mxu0
  %432 = vdwg.mxu0
  %v434 = vrot.slane %v430, 6
  %v436 = vadd.f32 %v121, %v434
  %v437 = vmax.f32 %v436, 0.0
  %v438 = vtanh.pop %v437
  %v440 = vrot.slane %v438, 2
  %v441 = vsel %vm129, %v440, 0
  %443 = vmatprep.subr.mxu0 0.0
  %444 = vmatpush1.msra.mxu0 0.0
  %445 = vmatprep.subr.mxu0 0.0
  %446 = vmatpush1.msra.mxu0 0.0
  %447 = vmatprep.subr.mxu0 0.0
  %448 = vmatpush1.msra.mxu0 0.0
  %449 = vmatprep.subr.mxu0 0.0
  %450 = vmatpush1.msra.mxu0 0.0
  %451 = vmatprep.subr.mxu0 0.0
  %452 = vmatpush1.msra.mxu0 0.0
  %453 = vmatprep.subr.mxu0 0.0
  %454 = vmatpush1.msra.mxu0 0.0
  %455 = vmatprep.subr.mxu0 0.0
  %456 = vmatpush1.msra.mxu0 0.0
  %457 = vmatprep.subr.mxu0 0.0
  %458 = vmatpush1.msra.mxu0 0.0
  %459 = vmatprep.subr.mxu0 0.0
  %460 = vmatpush1.msra.mxu0 0.0
  %461 = vmatprep.subr.mxu0 0.0
  %462 = vmatpush1.msra.mxu0 0.0
  %463 = vmatprep.subr.mxu0 0.0
  %464 = vmatpush1.msra.mxu0 0.0
  %465 = vmatprep.subr.mxu0 0.0
  %466 = vmatpush1.msra.mxu0 0.0
  %467 = vmatprep.subr.mxu0 0.0
  %468 = vmatpush1.msra.mxu0 %v32
  %469 = vmatprep.subr.mxu0 0.0
  %470 = vmatpush1.msra.mxu0 %v31
  %471 = vmatprep.subr.mxu0 0.0
  %472 = vmatpush1.msra.mxu0 %v30
  %473 = vmatprep.subr.mxu0 0.0
  %474 = vmatpush1.msra.mxu0 %v29
  %475 = vmatprep.subr.mxu0 0.0
  %476 = vmatpush2.msra.mxu0 0.0
  %477 = vmatprep.subr.mxu0 0.0
  %478 = vmatpush2.msra.mxu0 0.0
  %479 = vmatprep.subr.mxu0 0.0
  %480 = vmatpush2.msra.mxu0 0.0
  %481 = vmatprep.subr.mxu0 0.0
  %482 = vmatpush2.msra.mxu0 0.0
  %483 = vmatprep.subr.mxu0 0.0
  %484 = vmatpush2.msra.mxu0 0.0
  %485 = vmatprep.subr.mxu0 0.0
  %486 = vmatpush2.msra.mxu0 0.0
  %487 = vmatprep.subr.mxu0 0.0
  %488 = vmatpush2.msra.mxu0 0.0
  %489 = vmatprep.subr.mxu0 0.0
  %490 = vmatpush2.msra.mxu0 0.0
  %491 = vmatprep.subr.mxu0 0.0
  %492 = vmatpush2.msra.mxu0 0.0
  %493 = vmatprep.subr.mxu0 0.0
  %494 = vmatpush2.msra.mxu0 0.0
  %495 = vmatprep.subr.mxu0 0.0
  %496 = vmatpush2.msra.mxu0 0.0
  %497 = vmatprep.subr.mxu0 0.0
  %498 = vmatpush2.msra.mxu0 0.0
  %499 = vmatprep.subr.mxu0 0.0
  %500 = vmatpush2.msra.mxu0 0.0
  %501 = vmatprep.subr.mxu0 0.0
  %502 = vmatpush2.msra.mxu0 0.0
  %503 = vmatprep.subr.mxu0 0.0
  %504 = vmatpush2.msra.mxu0 0.0
  %505 = vmatprep.subr.mxu0 0.0
  %506 = vmatpush2.msra.mxu0 0.0
  %507 = vmatprep.mubr.f32.mxu0 0.0
  %508 = vmatmul.mubr.f32.gmra.mxu0 %v441
  %v509 = vpop.f32.mrf.mxu0
  %v510 = vadd.f32 %v209, %v509
  %v511 = vpop.f32.mrf.mxu0
  %512 = vdwg.mxu0
  %v514 = vsel %vm287, %v510, 0
  %516 = vmatprep.subr.mxu0 0.0
  %517 = vmatpush1.msra.mxu0 0.0
  %518 = vmatprep.subr.mxu0 0.0
  %519 = vmatpush1.msra.mxu0 0.0
  %520 = vmatprep.subr.mxu0 0.0
  %521 = vmatpush1.msra.mxu0 0.0
  %522 = vmatprep.subr.mxu0 0.0
  %523 = vmatpush1.msra.mxu0 0.0
  %524 = vmatprep.subr.mxu0 0.0
  %525 = vmatpush1.msra.mxu0 0.0
  %526 = vmatprep.subr.mxu0 0.0
  %527 = vmatpush1.msra.mxu0 0.0
  %528 = vmatprep.subr.mxu0 0.0
  %529 = vmatpush1.msra.mxu0 0.0
  %530 = vmatprep.subr.mxu0 0.0
  %531 = vmatpush1.msra.mxu0 0.0
  %532 = vmatprep.subr.mxu0 0.0
  %533 = vmatpush1.msra.mxu0 0.0
  %534 = vmatprep.subr.mxu0 0.0
  %535 = vmatpush1.msra.mxu0 0.0
  %536 = vmatprep.subr.mxu0 0.0
  %537 = vmatpush1.msra.mxu0 0.0
  %538 = vmatprep.subr.mxu0 0.0
  %539 = vmatpush1.msra.mxu0 0.0
  %540 = vmatprep.subr.mxu0 0.0
  %541 = vmatpush1.msra.mxu0 0.0
  %542 = vmatprep.subr.mxu0 0.0
  %543 = vmatpush1.msra.mxu0 0.0
  %544 = vmatprep.subr.mxu0 0.0
  %545 = vmatpush1.msra.mxu0 0.0
  %546 = vmatprep.subr.mxu0 0.0
  %547 = vmatpush1.msra.mxu0 %v34
  %548 = vmatprep.subr.mxu0 0.0
  %549 = vmatpush2.msra.mxu0 0.0
  %550 = vmatprep.subr.mxu0 0.0
  %551 = vmatpush2.msra.mxu0 0.0
  %552 = vmatprep.subr.mxu0 0.0
  %553 = vmatpush2.msra.mxu0 0.0
  %554 = vmatprep.subr.mxu0 0.0
  %555 = vmatpush2.msra.mxu0 0.0
  %556 = vmatprep.subr.mxu0 0.0
  %557 = vmatpush2.msra.mxu0 0.0
  %558 = vmatprep.subr.mxu0 0.0
  %559 = vmatpush2.msra.mxu0 0.0
  %560 = vmatprep.subr.mxu0 0.0
  %561 = vmatpush2.msra.mxu0 0.0
  %562 = vmatprep.subr.mxu0 0.0
  %563 = vmatpush2.msra.mxu0 0.0
  %564 = vmatprep.subr.mxu0 0.0
  %565 = vmatpush2.msra.mxu0 0.0
  %566 = vmatprep.subr.mxu0 0.0
  %567 = vmatpush2.msra.mxu0 0.0
  %568 = vmatprep.subr.mxu0 0.0
  %569 = vmatpush2.msra.mxu0 0.0
  %570 = vmatprep.subr.mxu0 0.0
  %571 = vmatpush2.msra.mxu0 0.0
  %572 = vmatprep.subr.mxu0 0.0
  %573 = vmatpush2.msra.mxu0 0.0
  %574 = vmatprep.subr.mxu0 0.0
  %575 = vmatpush2.msra.mxu0 0.0
  %576 = vmatprep.subr.mxu0 0.0
  %577 = vmatpush2.msra.mxu0 0.0
  %578 = vmatprep.subr.mxu0 0.0
  %579 = vmatpush2.msra.mxu0 0.0
  %580 = vmatprep.mubr.f32.mxu0 0.0
  %581 = vmatmul.mubr.f32.gmra.mxu0 %v514
  %v582 = vpop.f32.mrf.mxu0
  %v583 = vadd.f32 %v286, %v582
  %v584 = vpop.f32.mrf.mxu0
  %585 = vdwg.mxu0
  %v586 = vmax.f32 %v583, 0.0
  %v587 = vtanh.pop %v586
  %v589 = vsel %vm129, %v28, 0
  %591 = vmatprep.subr.mxu0 0.0
  %592 = vmatpush1.msra.mxu0 0.0
  %593 = vmatprep.subr.mxu0 0.0
  %594 = vmatpush1.msra.mxu0 0.0
  %595 = vmatprep.subr.mxu0 0.0
  %596 = vmatpush1.msra.mxu0 0.0
  %597 = vmatprep.subr.mxu0 0.0
  %598 = vmatpush1.msra.mxu0 0.0
  %599 = vmatprep.subr.mxu0 0.0
  %600 = vmatpush1.msra.mxu0 0.0
  %601 = vmatprep.subr.mxu0 0.0
  %602 = vmatpush1.msra.mxu0 0.0
  %603 = vmatprep.subr.mxu0 0.0
  %604 = vmatpush1.msra.mxu0 0.0
  %605 = vmatprep.subr.mxu0 0.0
  %606 = vmatpush1.msra.mxu0 0.0
  %607 = vmatprep.subr.mxu0 0.0
  %608 = vmatpush1.msra.mxu0 0.0
  %609 = vmatprep.subr.mxu0 0.0
  %610 = vmatpush1.msra.mxu0 0.0
  %611 = vmatprep.subr.mxu0 0.0
  %612 = vmatpush1.msra.mxu0 0.0
  %613 = vmatprep.subr.mxu0 0.0
  %614 = vmatpush1.msra.mxu0 0.0
  %615 = vmatprep.subr.mxu0 0.0
  %616 = vmatpush1.msra.mxu0 %v26
  %617 = vmatprep.subr.mxu0 0.0
  %618 = vmatpush1.msra.mxu0 %v25
  %619 = vmatprep.subr.mxu0 0.0
  %620 = vmatpush1.msra.mxu0 %v24
  %621 = vmatprep.subr.mxu0 0.0
  %622 = vmatpush1.msra.mxu0 %v23
  %623 = vmatprep.subr.mxu0 0.0
  %624 = vmatpush2.msra.mxu0 0.0
  %625 = vmatprep.subr.mxu0 0.0
  %626 = vmatpush2.msra.mxu0 0.0
  %627 = vmatprep.subr.mxu0 0.0
  %628 = vmatpush2.msra.mxu0 0.0
  %629 = vmatprep.subr.mxu0 0.0
  %630 = vmatpush2.msra.mxu0 0.0
  %631 = vmatprep.subr.mxu0 0.0
  %632 = vmatpush2.msra.mxu0 0.0
  %633 = vmatprep.subr.mxu0 0.0
  %634 = vmatpush2.msra.mxu0 0.0
  %635 = vmatprep.subr.mxu0 0.0
  %636 = vmatpush2.msra.mxu0 0.0
  %637 = vmatprep.subr.mxu0 0.0
  %638 = vmatpush2.msra.mxu0 0.0
  %639 = vmatprep.subr.mxu0 0.0
  %640 = vmatpush2.msra.mxu0 0.0
  %641 = vmatprep.subr.mxu0 0.0
  %642 = vmatpush2.msra.mxu0 0.0
  %643 = vmatprep.subr.mxu0 0.0
  %644 = vmatpush2.msra.mxu0 0.0
  %645 = vmatprep.subr.mxu0 0.0
  %646 = vmatpush2.msra.mxu0 0.0
  %647 = vmatprep.subr.mxu0 0.0
  %648 = vmatpush2.msra.mxu0 0.0
  %649 = vmatprep.subr.mxu0 0.0
  %650 = vmatpush2.msra.mxu0 0.0
  %651 = vmatprep.subr.mxu0 0.0
  %652 = vmatpush2.msra.mxu0 0.0
  %653 = vmatprep.subr.mxu0 0.0
  %654 = vmatpush2.msra.mxu0 0.0
  %655 = vmatprep.mubr.f32.mxu0 0.0
  %656 = vmatmul.mubr.f32.gmra.mxu0 %v589
  %v657 = vpop.f32.mrf.mxu0
  %v658 = vadd.f32 0.0, %v657
  %v659 = vpop.f32.mrf.mxu0
  %660 = vdwg.mxu0
  %v662 = vsel %vm287, %v362, 0
  %664 = vmatprep.subr.mxu0 0.0
  %665 = vmatpush1.msra.mxu0 0.0
  %666 = vmatprep.subr.mxu0 0.0
  %667 = vmatpush1.msra.mxu0 0.0
  %668 = vmatprep.subr.mxu0 0.0
  %669 = vmatpush1.msra.mxu0 0.0
  %670 = vmatprep.subr.mxu0 0.0
  %671 = vmatpush1.msra.mxu0 0.0
  %672 = vmatprep.subr.mxu0 0.0
  %673 = vmatpush1.msra.mxu0 0.0
  %674 = vmatprep.subr.mxu0 0.0
  %675 = vmatpush1.msra.mxu0 0.0
  %676 = vmatprep.subr.mxu0 0.0
  %677 = vmatpush1.msra.mxu0 0.0
  %678 = vmatprep.subr.mxu0 0.0
  %679 = vmatpush1.msra.mxu0 0.0
  %680 = vmatprep.subr.mxu0 0.0
  %681 = vmatpush1.msra.mxu0 0.0
  %682 = vmatprep.subr.mxu0 0.0
  %683 = vmatpush1.msra.mxu0 0.0
  %684 = vmatprep.subr.mxu0 0.0
  %685 = vmatpush1.msra.mxu0 0.0
  %686 = vmatprep.subr.mxu0 0.0
  %687 = vmatpush1.msra.mxu0 0.0
  %688 = vmatprep.subr.mxu0 0.0
  %689 = vmatpush1.msra.mxu0 0.0
  %690 = vmatprep.subr.mxu0 0.0
  %691 = vmatpush1.msra.mxu0 0.0
  %692 = vmatprep.subr.mxu0 0.0
  %693 = vmatpush1.msra.mxu0 0.0
  %694 = vmatprep.subr.mxu0 0.0
  %695 = vmatpush1.msra.mxu0 %v21
  %696 = vmatprep.subr.mxu0 0.0
  %697 = vmatpush2.msra.mxu0 0.0
  %698 = vmatprep.subr.mxu0 0.0
  %699 = vmatpush2.msra.mxu0 0.0
  %700 = vmatprep.subr.mxu0 0.0
  %701 = vmatpush2.msra.mxu0 0.0
  %702 = vmatprep.subr.mxu0 0.0
  %703 = vmatpush2.msra.mxu0 0.0
  %704 = vmatprep.subr.mxu0 0.0
  %705 = vmatpush2.msra.mxu0 0.0
  %706 = vmatprep.subr.mxu0 0.0
  %707 = vmatpush2.msra.mxu0 0.0
  %708 = vmatprep.subr.mxu0 0.0
  %709 = vmatpush2.msra.mxu0 0.0
  %710 = vmatprep.subr.mxu0 0.0
  %711 = vmatpush2.msra.mxu0 0.0
  %712 = vmatprep.subr.mxu0 0.0
  %713 = vmatpush2.msra.mxu0 0.0
  %714 = vmatprep.subr.mxu0 0.0
  %715 = vmatpush2.msra.mxu0 0.0
  %716 = vmatprep.subr.mxu0 0.0
  %717 = vmatpush2.msra.mxu0 0.0
  %718 = vmatprep.subr.mxu0 0.0
  %719 = vmatpush2.msra.mxu0 0.0
  %720 = vmatprep.subr.mxu0 0.0
  %721 = vmatpush2.msra.mxu0 0.0
  %722 = vmatprep.subr.mxu0 0.0
  %723 = vmatpush2.msra.mxu0 0.0
  %724 = vmatprep.subr.mxu0 0.0
  %725 = vmatpush2.msra.mxu0 0.0
  %726 = vmatprep.subr.mxu0 0.0
  %727 = vmatpush2.msra.mxu0 0.0
  %728 = vmatprep.mubr.f32.mxu0 0.0
  %729 = vmatmul.mubr.f32.gmra.mxu0 %v662
  %v730 = vpop.f32.mrf.mxu0
  %v731 = vadd.f32 %v658, %v730
  %v732 = vpop.f32.mrf.mxu0
  %733 = vdwg.mxu0
  %v734 = vlaneseq
  %v735 = vshrl.u32 %v734, 7
  %v736 = vsub.s32 0, %v735
  %v737 = vrot.slane %v22, %v736
  %v738 = vadd.f32 %v731, %v737
  %v739 = vmax.f32 %v738, 0.0
  %v740 = vtanh.pop %v739
  %vm741 = vcmask 254976
  %742 = vst.msk [vmem:[#allocation2] sm:$0x3] %vm741, %v740
  %743 = vmatprep.subr.mxu0 0.0
  %744 = vmatpush1.msra.mxu0 0.0
  %745 = vmatprep.subr.mxu0 0.0
  %746 = vmatpush1.msra.mxu0 0.0
  %747 = vmatprep.subr.mxu0 0.0
  %748 = vmatpush1.msra.mxu0 0.0
  %749 = vmatprep.subr.mxu0 0.0
  %750 = vmatpush1.msra.mxu0 0.0
  %751 = vmatprep.subr.mxu0 0.0
  %752 = vmatpush1.msra.mxu0 0.0
  %753 = vmatprep.subr.mxu0 0.0
  %754 = vmatpush1.msra.mxu0 0.0
  %755 = vmatprep.subr.mxu0 0.0
  %756 = vmatpush1.msra.mxu0 0.0
  %757 = vmatprep.subr.mxu0 0.0
  %758 = vmatpush1.msra.mxu0 0.0
  %759 = vmatprep.subr.mxu0 0.0
  %760 = vmatpush1.msra.mxu0 0.0
  %761 = vmatprep.subr.mxu0 0.0
  %762 = vmatpush1.msra.mxu0 0.0
  %763 = vmatprep.subr.mxu0 0.0
  %764 = vmatpush1.msra.mxu0 0.0
  %765 = vmatprep.subr.mxu0 0.0
  %766 = vmatpush1.msra.mxu0 0.0
  %767 = vmatprep.subr.mxu0 0.0
  %768 = vmatpush1.msra.mxu0 %v20
  %769 = vmatprep.subr.mxu0 0.0
  %770 = vmatpush1.msra.mxu0 %v19
  %771 = vmatprep.subr.mxu0 0.0
  %772 = vmatpush1.msra.mxu0 %v18
  %773 = vmatprep.subr.mxu0 0.0
  %774 = vmatpush1.msra.mxu0 %v17
  %775 = vmatprep.subr.mxu0 0.0
  %776 = vmatpush2.msra.mxu0 0.0
  %777 = vmatprep.subr.mxu0 0.0
  %778 = vmatpush2.msra.mxu0 0.0
  %779 = vmatprep.subr.mxu0 0.0
  %780 = vmatpush2.msra.mxu0 0.0
  %781 = vmatprep.subr.mxu0 0.0
  %782 = vmatpush2.msra.mxu0 0.0
  %783 = vmatprep.subr.mxu0 0.0
  %784 = vmatpush2.msra.mxu0 0.0
  %785 = vmatprep.subr.mxu0 0.0
  %786 = vmatpush2.msra.mxu0 0.0
  %787 = vmatprep.subr.mxu0 0.0
  %788 = vmatpush2.msra.mxu0 0.0
  %789 = vmatprep.subr.mxu0 0.0
  %790 = vmatpush2.msra.mxu0 0.0
  %791 = vmatprep.subr.mxu0 0.0
  %792 = vmatpush2.msra.mxu0 0.0
  %793 = vmatprep.subr.mxu0 0.0
  %794 = vmatpush2.msra.mxu0 0.0
  %795 = vmatprep.subr.mxu0 0.0
  %796 = vmatpush2.msra.mxu0 0.0
  %797 = vmatprep.subr.mxu0 0.0
  %798 = vmatpush2.msra.mxu0 0.0
  %799 = vmatprep.subr.mxu0 0.0
  %800 = vmatpush2.msra.mxu0 0.0
  %801 = vmatprep.subr.mxu0 0.0
  %802 = vmatpush2.msra.mxu0 0.0
  %803 = vmatprep.subr.mxu0 0.0
  %804 = vmatpush2.msra.mxu0 0.0
  %805 = vmatprep.subr.mxu0 0.0
  %806 = vmatpush2.msra.mxu0 0.0
  %807 = vmatprep.mubr.f32.mxu0 0.0
  %808 = vmatmul.mubr.f32.gmra.mxu0 %v441
  %v809 = vpop.f32.mrf.mxu0
  %v810 = vadd.f32 0.0, %v809
  %v811 = vpop.f32.mrf.mxu0
  %812 = vdwg.mxu0
  %v814 = vrot.slane %v810, 4
  %v816 = vadd.f32 %v121, %v814
  %v817 = vmax.f32 %v816, 0.0
  %v818 = vtanh.pop %v817
  %v820 = vrot.slane %v818, 4
  %v821 = vsel %vm129, %v820, 0
  %823 = vmatprep.subr.mxu0 0.0
  %824 = vmatpush1.msra.mxu0 0.0
  %825 = vmatprep.subr.mxu0 0.0
  %826 = vmatpush1.msra.mxu0 0.0
  %827 = vmatprep.subr.mxu0 0.0
  %828 = vmatpush1.msra.mxu0 0.0
  %829 = vmatprep.subr.mxu0 0.0
  %830 = vmatpush1.msra.mxu0 0.0
  %831 = vmatprep.subr.mxu0 0.0
  %832 = vmatpush1.msra.mxu0 0.0
  %833 = vmatprep.subr.mxu0 0.0
  %834 = vmatpush1.msra.mxu0 0.0
  %835 = vmatprep.subr.mxu0 0.0
  %836 = vmatpush1.msra.mxu0 0.0
  %837 = vmatprep.subr.mxu0 0.0
  %838 = vmatpush1.msra.mxu0 0.0
  %839 = vmatprep.subr.mxu0 0.0
  %840 = vmatpush1.msra.mxu0 0.0
  %841 = vmatprep.subr.mxu0 0.0
  %842 = vmatpush1.msra.mxu0 0.0
  %843 = vmatprep.subr.mxu0 0.0
  %844 = vmatpush1.msra.mxu0 0.0
  %845 = vmatprep.subr.mxu0 0.0
  %846 = vmatpush1.msra.mxu0 0.0
  %847 = vmatprep.subr.mxu0 0.0
  %848 = vmatpush1.msra.mxu0 %v32
  %849 = vmatprep.subr.mxu0 0.0
  %850 = vmatpush1.msra.mxu0 %v31
  %851 = vmatprep.subr.mxu0 0.0
  %852 = vmatpush1.msra.mxu0 %v30
  %853 = vmatprep.subr.mxu0 0.0
  %854 = vmatpush1.msra.mxu0 %v29
  %855 = vmatprep.subr.mxu0 0.0
  %856 = vmatpush2.msra.mxu0 0.0
  %857 = vmatprep.subr.mxu0 0.0
  %858 = vmatpush2.msra.mxu0 0.0
  %859 = vmatprep.subr.mxu0 0.0
  %860 = vmatpush2.msra.mxu0 0.0
  %861 = vmatprep.subr.mxu0 0.0
  %862 = vmatpush2.msra.mxu0 0.0
  %863 = vmatprep.subr.mxu0 0.0
  %864 = vmatpush2.msra.mxu0 0.0
  %865 = vmatprep.subr.mxu0 0.0
  %866 = vmatpush2.msra.mxu0 0.0
  %867 = vmatprep.subr.mxu0 0.0
  %868 = vmatpush2.msra.mxu0 0.0
  %869 = vmatprep.subr.mxu0 0.0
  %870 = vmatpush2.msra.mxu0 0.0
  %871 = vmatprep.subr.mxu0 0.0
  %872 = vmatpush2.msra.mxu0 0.0
  %873 = vmatprep.subr.mxu0 0.0
  %874 = vmatpush2.msra.mxu0 0.0
  %875 = vmatprep.subr.mxu0 0.0
  %876 = vmatpush2.msra.mxu0 0.0
  %877 = vmatprep.subr.mxu0 0.0
  %878 = vmatpush2.msra.mxu0 0.0
  %879 = vmatprep.subr.mxu0 0.0
  %880 = vmatpush2.msra.mxu0 0.0
  %881 = vmatprep.subr.mxu0 0.0
  %882 = vmatpush2.msra.mxu0 0.0
  %883 = vmatprep.subr.mxu0 0.0
  %884 = vmatpush2.msra.mxu0 0.0
  %885 = vmatprep.subr.mxu0 0.0
  %886 = vmatpush2.msra.mxu0 0.0
  %887 = vmatprep.mubr.f32.mxu0 0.0
  %888 = vmatmul.mubr.f32.gmra.mxu0 %v821
  %v889 = vpop.f32.mrf.mxu0
  %v890 = vadd.f32 %v209, %v889
  %v891 = vpop.f32.mrf.mxu0
  %892 = vdwg.mxu0
  %v894 = vsel %vm287, %v890, 0
  %896 = vmatprep.subr.mxu0 0.0
  %897 = vmatpush1.msra.mxu0 0.0
  %898 = vmatprep.subr.mxu0 0.0
  %899 = vmatpush1.msra.mxu0 0.0
  %900 = vmatprep.subr.mxu0 0.0
  %901 = vmatpush1.msra.mxu0 0.0
  %902 = vmatprep.subr.mxu0 0.0
  %903 = vmatpush1.msra.mxu0 0.0
  %904 = vmatprep.subr.mxu0 0.0
  %905 = vmatpush1.msra.mxu0 0.0
  %906 = vmatprep.subr.mxu0 0.0
  %907 = vmatpush1.msra.mxu0 0.0
  %908 = vmatprep.subr.mxu0 0.0
  %909 = vmatpush1.msra.mxu0 0.0
  %910 = vmatprep.subr.mxu0 0.0
  %911 = vmatpush1.msra.mxu0 0.0
  %912 = vmatprep.subr.mxu0 0.0
  %913 = vmatpush1.msra.mxu0 0.0
  %914 = vmatprep.subr.mxu0 0.0
  %915 = vmatpush1.msra.mxu0 0.0
  %916 = vmatprep.subr.mxu0 0.0
  %917 = vmatpush1.msra.mxu0 0.0
  %918 = vmatprep.subr.mxu0 0.0
  %919 = vmatpush1.msra.mxu0 0.0
  %920 = vmatprep.subr.mxu0 0.0
  %921 = vmatpush1.msra.mxu0 0.0
  %922 = vmatprep.subr.mxu0 0.0
  %923 = vmatpush1.msra.mxu0 0.0
  %924 = vmatprep.subr.mxu0 0.0
  %925 = vmatpush1.msra.mxu0 0.0
  %926 = vmatprep.subr.mxu0 0.0
  %927 = vmatpush1.msra.mxu0 %v34
  %928 = vmatprep.subr.mxu0 0.0
  %929 = vmatpush2.msra.mxu0 0.0
  %930 = vmatprep.subr.mxu0 0.0
  %931 = vmatpush2.msra.mxu0 0.0
  %932 = vmatprep.subr.mxu0 0.0
  %933 = vmatpush2.msra.mxu0 0.0
  %934 = vmatprep.subr.mxu0 0.0
  %935 = vmatpush2.msra.mxu0 0.0
  %936 = vmatprep.subr.mxu0 0.0
  %937 = vmatpush2.msra.mxu0 0.0
  %938 = vmatprep.subr.mxu0 0.0
  %939 = vmatpush2.msra.mxu0 0.0
  %940 = vmatprep.subr.mxu0 0.0
  %941 = vmatpush2.msra.mxu0 0.0
  %942 = vmatprep.subr.mxu0 0.0
  %943 = vmatpush2.msra.mxu0 0.0
  %944 = vmatprep.subr.mxu0 0.0
  %945 = vmatpush2.msra.mxu0 0.0
  %946 = vmatprep.subr.mxu0 0.0
  %947 = vmatpush2.msra.mxu0 0.0
  %948 = vmatprep.subr.mxu0 0.0
  %949 = vmatpush2.msra.mxu0 0.0
  %950 = vmatprep.subr.mxu0 0.0
  %951 = vmatpush2.msra.mxu0 0.0
  %952 = vmatprep.subr.mxu0 0.0
  %953 = vmatpush2.msra.mxu0 0.0
  %954 = vmatprep.subr.mxu0 0.0
  %955 = vmatpush2.msra.mxu0 0.0
  %956 = vmatprep.subr.mxu0 0.0
  %957 = vmatpush2.msra.mxu0 0.0
  %958 = vmatprep.subr.mxu0 0.0
  %959 = vmatpush2.msra.mxu0 0.0
  %960 = vmatprep.mubr.f32.mxu0 0.0
  %961 = vmatmul.mubr.f32.gmra.mxu0 %v894
  %v962 = vpop.f32.mrf.mxu0
  %v963 = vadd.f32 %v286, %v962
  %v964 = vpop.f32.mrf.mxu0
  %965 = vdwg.mxu0
  %v966 = vmax.f32 %v963, 0.0
  %v967 = vtanh.pop %v966
  %v969 = vsel %vm129, %v740, 0
  %971 = vmatprep.subr.mxu0 0.0
  %972 = vmatpush1.msra.mxu0 0.0
  %973 = vmatprep.subr.mxu0 0.0
  %974 = vmatpush1.msra.mxu0 0.0
  %975 = vmatprep.subr.mxu0 0.0
  %976 = vmatpush1.msra.mxu0 0.0
  %977 = vmatprep.subr.mxu0 0.0
  %978 = vmatpush1.msra.mxu0 0.0
  %979 = vmatprep.subr.mxu0 0.0
  %980 = vmatpush1.msra.mxu0 0.0
  %981 = vmatprep.subr.mxu0 0.0
  %982 = vmatpush1.msra.mxu0 0.0
  %983 = vmatprep.subr.mxu0 0.0
  %984 = vmatpush1.msra.mxu0 0.0
  %985 = vmatprep.subr.mxu0 0.0
  %986 = vmatpush1.msra.mxu0 0.0
  %987 = vmatprep.subr.mxu0 0.0
  %988 = vmatpush1.msra.mxu0 0.0
  %989 = vmatprep.subr.mxu0 0.0
  %990 = vmatpush1.msra.mxu0 0.0
  %991 = vmatprep.subr.mxu0 0.0
  %992 = vmatpush1.msra.mxu0 0.0
  %993 = vmatprep.subr.mxu0 0.0
  %994 = vmatpush1.msra.mxu0 0.0
  %995 = vmatprep.subr.mxu0 0.0
  %996 = vmatpush1.msra.mxu0 %v26
  %997 = vmatprep.subr.mxu0 0.0
  %998 = vmatpush1.msra.mxu0 %v25
  %999 = vmatprep.subr.mxu0 0.0
  %1000 = vmatpush1.msra.mxu0 %v24
  %1001 = vmatprep.subr.mxu0 0.0
  %1002 = vmatpush1.msra.mxu0 %v23
  %1003 = vmatprep.subr.mxu0 0.0
  %1004 = vmatpush2.msra.mxu0 0.0
  %1005 = vmatprep.subr.mxu0 0.0
  %1006 = vmatpush2.msra.mxu0 0.0
  %1007 = vmatprep.subr.mxu0 0.0
  %1008 = vmatpush2.msra.mxu0 0.0
  %1009 = vmatprep.subr.mxu0 0.0
  %1010 = vmatpush2.msra.mxu0 0.0
  %1011 = vmatprep.subr.mxu0 0.0
  %1012 = vmatpush2.msra.mxu0 0.0
  %1013 = vmatprep.subr.mxu0 0.0
  %1014 = vmatpush2.msra.mxu0 0.0
  %1015 = vmatprep.subr.mxu0 0.0
  %1016 = vmatpush2.msra.mxu0 0.0
  %1017 = vmatprep.subr.mxu0 0.0
  %1018 = vmatpush2.msra.mxu0 0.0
  %1019 = vmatprep.subr.mxu0 0.0
  %1020 = vmatpush2.msra.mxu0 0.0
  %1021 = vmatprep.subr.mxu0 0.0
  %1022 = vmatpush2.msra.mxu0 0.0
  %1023 = vmatprep.subr.mxu0 0.0
  %1024 = vmatpush2.msra.mxu0 0.0
  %1025 = vmatprep.subr.mxu0 0.0
  %1026 = vmatpush2.msra.mxu0 0.0
  %1027 = vmatprep.subr.mxu0 0.0
  %1028 = vmatpush2.msra.mxu0 0.0
  %1029 = vmatprep.subr.mxu0 0.0
  %1030 = vmatpush2.msra.mxu0 0.0
  %1031 = vmatprep.subr.mxu0 0.0
  %1032 = vmatpush2.msra.mxu0 0.0
  %1033 = vmatprep.subr.mxu0 0.0
  %1034 = vmatpush2.msra.mxu0 0.0
  %1035 = vmatprep.mubr.f32.mxu0 0.0
  %1036 = vmatmul.mubr.f32.gmra.mxu0 %v969
  %v1037 = vpop.f32.mrf.mxu0
  %v1038 = vadd.f32 0.0, %v1037
  %v1039 = vpop.f32.mrf.mxu0
  %1040 = vdwg.mxu0
  %v1042 = vsel %vm287, %v587, 0
  %1044 = vmatprep.subr.mxu0 0.0
  %1045 = vmatpush1.msra.mxu0 0.0
  %1046 = vmatprep.subr.mxu0 0.0
  %1047 = vmatpush1.msra.mxu0 0.0
  %1048 = vmatprep.subr.mxu0 0.0
  %1049 = vmatpush1.msra.mxu0 0.0
  %1050 = vmatprep.subr.mxu0 0.0
  %1051 = vmatpush1.msra.mxu0 0.0
  %1052 = vmatprep.subr.mxu0 0.0
  %1053 = vmatpush1.msra.mxu0 0.0
  %1054 = vmatprep.subr.mxu0 0.0
  %1055 = vmatpush1.msra.mxu0 0.0
  %1056 = vmatprep.subr.mxu0 0.0
  %1057 = vmatpush1.msra.mxu0 0.0
  %1058 = vmatprep.subr.mxu0 0.0
  %1059 = vmatpush1.msra.mxu0 0.0
  %1060 = vmatprep.subr.mxu0 0.0
  %1061 = vmatpush1.msra.mxu0 0.0
  %1062 = vmatprep.subr.mxu0 0.0
  %1063 = vmatpush1.msra.mxu0 0.0
  %1064 = vmatprep.subr.mxu0 0.0
  %1065 = vmatpush1.msra.mxu0 0.0
  %1066 = vmatprep.subr.mxu0 0.0
  %1067 = vmatpush1.msra.mxu0 0.0
  %1068 = vmatprep.subr.mxu0 0.0
  %1069 = vmatpush1.msra.mxu0 0.0
  %1070 = vmatprep.subr.mxu0 0.0
  %1071 = vmatpush1.msra.mxu0 0.0
  %1072 = vmatprep.subr.mxu0 0.0
  %1073 = vmatpush1.msra.mxu0 0.0
  %1074 = vmatprep.subr.mxu0 0.0
  %1075 = vmatpush1.msra.mxu0 %v21
  %1076 = vmatprep.subr.mxu0 0.0
  %1077 = vmatpush2.msra.mxu0 0.0
  %1078 = vmatprep.subr.mxu0 0.0
  %1079 = vmatpush2.msra.mxu0 0.0
  %1080 = vmatprep.subr.mxu0 0.0
  %1081 = vmatpush2.msra.mxu0 0.0
  %1082 = vmatprep.subr.mxu0 0.0
  %1083 = vmatpush2.msra.mxu0 0.0
  %1084 = vmatprep.subr.mxu0 0.0
  %1085 = vmatpush2.msra.mxu0 0.0
  %1086 = vmatprep.subr.mxu0 0.0
  %1087 = vmatpush2.msra.mxu0 0.0
  %1088 = vmatprep.subr.mxu0 0.0
  %1089 = vmatpush2.msra.mxu0 0.0
  %1090 = vmatprep.subr.mxu0 0.0
  %1091 = vmatpush2.msra.mxu0 0.0
  %1092 = vmatprep.subr.mxu0 0.0
  %1093 = vmatpush2.msra.mxu0 0.0
  %1094 = vmatprep.subr.mxu0 0.0
  %1095 = vmatpush2.msra.mxu0 0.0
  %1096 = vmatprep.subr.mxu0 0.0
  %1097 = vmatpush2.msra.mxu0 0.0
  %1098 = vmatprep.subr.mxu0 0.0
  %1099 = vmatpush2.msra.mxu0 0.0
  %1100 = vmatprep.subr.mxu0 0.0
  %1101 = vmatpush2.msra.mxu0 0.0
  %1102 = vmatprep.subr.mxu0 0.0
  %1103 = vmatpush2.msra.mxu0 0.0
  %1104 = vmatprep.subr.mxu0 0.0
  %1105 = vmatpush2.msra.mxu0 0.0
  %1106 = vmatprep.subr.mxu0 0.0
  %1107 = vmatpush2.msra.mxu0 0.0
  %1108 = vmatprep.mubr.f32.mxu0 0.0
  %1109 = vmatmul.mubr.f32.gmra.mxu0 %v1042
  %v1110 = vpop.f32.mrf.mxu0
  %v1111 = vadd.f32 %v1038, %v1110
  %v1112 = vpop.f32.mrf.mxu0
  %1113 = vdwg.mxu0
  %v1114 = vadd.f32 %v1111, %v737
  %v1115 = vmax.f32 %v1114, 0.0
  %v1116 = vtanh.pop %v1115
  %1117 = vst.msk [vmem:[#allocation2 + $0x2] sm:$0x3] %vm741, %v1116
  %1118 = vmatprep.subr.mxu0 0.0
  %1119 = vmatpush1.msra.mxu0 0.0
  %1120 = vmatprep.subr.mxu0 0.0
  %1121 = vmatpush1.msra.mxu0 0.0
  %1122 = vmatprep.subr.mxu0 0.0
  %1123 = vmatpush1.msra.mxu0 0.0
  %1124 = vmatprep.subr.mxu0 0.0
  %1125 = vmatpush1.msra.mxu0 0.0
  %1126 = vmatprep.subr.mxu0 0.0
  %1127 = vmatpush1.msra.mxu0 0.0
  %1128 = vmatprep.subr.mxu0 0.0
  %1129 = vmatpush1.msra.mxu0 0.0
  %1130 = vmatprep.subr.mxu0 0.0
  %1131 = vmatpush1.msra.mxu0 0.0
  %1132 = vmatprep.subr.mxu0 0.0
  %1133 = vmatpush1.msra.mxu0 0.0
  %1134 = vmatprep.subr.mxu0 0.0
  %1135 = vmatpush1.msra.mxu0 0.0
  %1136 = vmatprep.subr.mxu0 0.0
  %1137 = vmatpush1.msra.mxu0 0.0
  %1138 = vmatprep.subr.mxu0 0.0
  %1139 = vmatpush1.msra.mxu0 0.0
  %1140 = vmatprep.subr.mxu0 0.0
  %1141 = vmatpush1.msra.mxu0 0.0
  %1142 = vmatprep.subr.mxu0 0.0
  %1143 = vmatpush1.msra.mxu0 %v20
  %1144 = vmatprep.subr.mxu0 0.0
  %1145 = vmatpush1.msra.mxu0 %v19
  %1146 = vmatprep.subr.mxu0 0.0
  %1147 = vmatpush1.msra.mxu0 %v18
  %1148 = vmatprep.subr.mxu0 0.0
  %1149 = vmatpush1.msra.mxu0 %v17
  %1150 = vmatprep.subr.mxu0 0.0
  %1151 = vmatpush2.msra.mxu0 0.0
  %1152 = vmatprep.subr.mxu0 0.0
  %1153 = vmatpush2.msra.mxu0 0.0
  %1154 = vmatprep.subr.mxu0 0.0
  %1155 = vmatpush2.msra.mxu0 0.0
  %1156 = vmatprep.subr.mxu0 0.0
  %1157 = vmatpush2.msra.mxu0 0.0
  %1158 = vmatprep.subr.mxu0 0.0
  %1159 = vmatpush2.msra.mxu0 0.0
  %1160 = vmatprep.subr.mxu0 0.0
  %1161 = vmatpush2.msra.mxu0 0.0
  %1162 = vmatprep.subr.mxu0 0.0
  %1163 = vmatpush2.msra.mxu0 0.0
  %1164 = vmatprep.subr.mxu0 0.0
  %1165 = vmatpush2.msra.mxu0 0.0
  %1166 = vmatprep.subr.mxu0 0.0
  %1167 = vmatpush2.msra.mxu0 0.0
  %1168 = vmatprep.subr.mxu0 0.0
  %1169 = vmatpush2.msra.mxu0 0.0
  %1170 = vmatprep.subr.mxu0 0.0
  %1171 = vmatpush2.msra.mxu0 0.0
  %1172 = vmatprep.subr.mxu0 0.0
  %1173 = vmatpush2.msra.mxu0 0.0
  %1174 = vmatprep.subr.mxu0 0.0
  %1175 = vmatpush2.msra.mxu0 0.0
  %1176 = vmatprep.subr.mxu0 0.0
  %1177 = vmatpush2.msra.mxu0 0.0
  %1178 = vmatprep.subr.mxu0 0.0
  %1179 = vmatpush2.msra.mxu0 0.0
  %1180 = vmatprep.subr.mxu0 0.0
  %1181 = vmatpush2.msra.mxu0 0.0
  %1182 = vmatprep.mubr.f32.mxu0 0.0
  %1183 = vmatmul.mubr.f32.gmra.mxu0 %v821
  %v1184 = vpop.f32.mrf.mxu0
  %v1185 = vadd.f32 0.0, %v1184
  %v1186 = vpop.f32.mrf.mxu0
  %1187 = vdwg.mxu0
  %v1189 = vrot.slane %v1185, 2
  %v1191 = vadd.f32 %v121, %v1189
  %v1192 = vmax.f32 %v1191, 0.0
  %v1193 = vtanh.pop %v1192
  %v1195 = vrot.slane %v1193, 6
  %v1196 = vsel %vm129, %v1195, 0
  %1198 = vmatprep.subr.mxu0 0.0
  %1199 = vmatpush1.msra.mxu0 0.0
  %1200 = vmatprep.subr.mxu0 0.0
  %1201 = vmatpush1.msra.mxu0 0.0
  %1202 = vmatprep.subr.mxu0 0.0
  %1203 = vmatpush1.msra.mxu0 0.0
  %1204 = vmatprep.subr.mxu0 0.0
  %1205 = vmatpush1.msra.mxu0 0.0
  %1206 = vmatprep.subr.mxu0 0.0
  %1207 = vmatpush1.msra.mxu0 0.0
  %1208 = vmatprep.subr.mxu0 0.0
  %1209 = vmatpush1.msra.mxu0 0.0
  %1210 = vmatprep.subr.mxu0 0.0
  %1211 = vmatpush1.msra.mxu0 0.0
  %1212 = vmatprep.subr.mxu0 0.0
  %1213 = vmatpush1.msra.mxu0 0.0
  %1214 = vmatprep.subr.mxu0 0.0
  %1215 = vmatpush1.msra.mxu0 0.0
  %1216 = vmatprep.subr.mxu0 0.0
  %1217 = vmatpush1.msra.mxu0 0.0
  %1218 = vmatprep.subr.mxu0 0.0
  %1219 = vmatpush1.msra.mxu0 0.0
  %1220 = vmatprep.subr.mxu0 0.0
  %1221 = vmatpush1.msra.mxu0 0.0
  %1222 = vmatprep.subr.mxu0 0.0
  %1223 = vmatpush1.msra.mxu0 %v32
  %1224 = vmatprep.subr.mxu0 0.0
  %1225 = vmatpush1.msra.mxu0 %v31
  %1226 = vmatprep.subr.mxu0 0.0
  %1227 = vmatpush1.msra.mxu0 %v30
  %1228 = vmatprep.subr.mxu0 0.0
  %1229 = vmatpush1.msra.mxu0 %v29
  %1230 = vmatprep.subr.mxu0 0.0
  %1231 = vmatpush2.msra.mxu0 0.0
  %1232 = vmatprep.subr.mxu0 0.0
  %1233 = vmatpush2.msra.mxu0 0.0
  %1234 = vmatprep.subr.mxu0 0.0
  %1235 = vmatpush2.msra.mxu0 0.0
  %1236 = vmatprep.subr.mxu0 0.0
  %1237 = vmatpush2.msra.mxu0 0.0
  %1238 = vmatprep.subr.mxu0 0.0
  %1239 = vmatpush2.msra.mxu0 0.0
  %1240 = vmatprep.subr.mxu0 0.0
  %1241 = vmatpush2.msra.mxu0 0.0
  %1242 = vmatprep.subr.mxu0 0.0
  %1243 = vmatpush2.msra.mxu0 0.0
  %1244 = vmatprep.subr.mxu0 0.0
  %1245 = vmatpush2.msra.mxu0 0.0
  %1246 = vmatprep.subr.mxu0 0.0
  %1247 = vmatpush2.msra.mxu0 0.0
  %1248 = vmatprep.subr.mxu0 0.0
  %1249 = vmatpush2.msra.mxu0 0.0
  %1250 = vmatprep.subr.mxu0 0.0
  %1251 = vmatpush2.msra.mxu0 0.0
  %1252 = vmatprep.subr.mxu0 0.0
  %1253 = vmatpush2.msra.mxu0 0.0
  %1254 = vmatprep.subr.mxu0 0.0
  %1255 = vmatpush2.msra.mxu0 0.0
  %1256 = vmatprep.subr.mxu0 0.0
  %1257 = vmatpush2.msra.mxu0 0.0
  %1258 = vmatprep.subr.mxu0 0.0
  %1259 = vmatpush2.msra.mxu0 0.0
  %1260 = vmatprep.subr.mxu0 0.0
  %1261 = vmatpush2.msra.mxu0 0.0
  %1262 = vmatprep.mubr.f32.mxu0 0.0
  %1263 = vmatmul.mubr.f32.gmra.mxu0 %v1196
  %v1264 = vpop.f32.mrf.mxu0
  %v1265 = vadd.f32 %v209, %v1264
  %v1266 = vpop.f32.mrf.mxu0
  %1267 = vdwg.mxu0
  %v1269 = vsel %vm287, %v1265, 0
  %1271 = vmatprep.subr.mxu0 0.0
  %1272 = vmatpush1.msra.mxu0 0.0
  %1273 = vmatprep.subr.mxu0 0.0
  %1274 = vmatpush1.msra.mxu0 0.0
  %1275 = vmatprep.subr.mxu0 0.0
  %1276 = vmatpush1.msra.mxu0 0.0
  %1277 = vmatprep.subr.mxu0 0.0
  %1278 = vmatpush1.msra.mxu0 0.0
  %1279 = vmatprep.subr.mxu0 0.0
  %1280 = vmatpush1.msra.mxu0 0.0
  %1281 = vmatprep.subr.mxu0 0.0
  %1282 = vmatpush1.msra.mxu0 0.0
  %1283 = vmatprep.subr.mxu0 0.0
  %1284 = vmatpush1.msra.mxu0 0.0
  %1285 = vmatprep.subr.mxu0 0.0
  %1286 = vmatpush1.msra.mxu0 0.0
  %1287 = vmatprep.subr.mxu0 0.0
  %1288 = vmatpush1.msra.mxu0 0.0
  %1289 = vmatprep.subr.mxu0 0.0
  %1290 = vmatpush1.msra.mxu0 0.0
  %1291 = vmatprep.subr.mxu0 0.0
  %1292 = vmatpush1.msra.mxu0 0.0
  %1293 = vmatprep.subr.mxu0 0.0
  %1294 = vmatpush1.msra.mxu0 0.0
  %1295 = vmatprep.subr.mxu0 0.0
  %1296 = vmatpush1.msra.mxu0 0.0
  %1297 = vmatprep.subr.mxu0 0.0
  %1298 = vmatpush1.msra.mxu0 0.0
  %1299 = vmatprep.subr.mxu0 0.0
  %1300 = vmatpush1.msra.mxu0 0.0
  %1301 = vmatprep.subr.mxu0 0.0
  %1302 = vmatpush1.msra.mxu0 %v34
  %1303 = vmatprep.subr.mxu0 0.0
  %1304 = vmatpush2.msra.mxu0 0.0
  %1305 = vmatprep.subr.mxu0 0.0
  %1306 = vmatpush2.msra.mxu0 0.0
  %1307 = vmatprep.subr.mxu0 0.0
  %1308 = vmatpush2.msra.mxu0 0.0
  %1309 = vmatprep.subr.mxu0 0.0
  %1310 = vmatpush2.msra.mxu0 0.0
  %1311 = vmatprep.subr.mxu0 0.0
  %1312 = vmatpush2.msra.mxu0 0.0
  %1313 = vmatprep.subr.mxu0 0.0
  %1314 = vmatpush2.msra.mxu0 0.0
  %1315 = vmatprep.subr.mxu0 0.0
  %1316 = vmatpush2.msra.mxu0 0.0
  %1317 = vmatprep.subr.mxu0 0.0
  %1318 = vmatpush2.msra.mxu0 0.0
  %1319 = vmatprep.subr.mxu0 0.0
  %1320 = vmatpush2.msra.mxu0 0.0
  %1321 = vmatprep.subr.mxu0 0.0
  %1322 = vmatpush2.msra.mxu0 0.0
  %1323 = vmatprep.subr.mxu0 0.0
  %1324 = vmatpush2.msra.mxu0 0.0
  %1325 = vmatprep.subr.mxu0 0.0
  %1326 = vmatpush2.msra.mxu0 0.0
  %1327 = vmatprep.subr.mxu0 0.0
  %1328 = vmatpush2.msra.mxu0 0.0
  %1329 = vmatprep.subr.mxu0 0.0
  %1330 = vmatpush2.msra.mxu0 0.0
  %1331 = vmatprep.subr.mxu0 0.0
  %1332 = vmatpush2.msra.mxu0 0.0
  %1333 = vmatprep.subr.mxu0 0.0
  %1334 = vmatpush2.msra.mxu0 0.0
  %1335 = vmatprep.mubr.f32.mxu0 0.0
  %1336 = vmatmul.mubr.f32.gmra.mxu0 %v1269
  %v1337 = vpop.f32.mrf.mxu0
  %v1338 = vadd.f32 %v286, %v1337
  %v1339 = vpop.f32.mrf.mxu0
  %1340 = vdwg.mxu0
  %v1341 = vmax.f32 %v1338, 0.0
  %v1342 = vtanh.pop %v1341
  %v1344 = vsel %vm129, %v1116, 0
  %1346 = vmatprep.subr.mxu0 0.0
  %1347 = vmatpush1.msra.mxu0 0.0
  %1348 = vmatprep.subr.mxu0 0.0
  %1349 = vmatpush1.msra.mxu0 0.0
  %1350 = vmatprep.subr.mxu0 0.0
  %1351 = vmatpush1.msra.mxu0 0.0
  %1352 = vmatprep.subr.mxu0 0.0
  %1353 = vmatpush1.msra.mxu0 0.0
  %1354 = vmatprep.subr.mxu0 0.0
  %1355 = vmatpush1.msra.mxu0 0.0
  %1356 = vmatprep.subr.mxu0 0.0
  %1357 = vmatpush1.msra.mxu0 0.0
  %1358 = vmatprep.subr.mxu0 0.0
  %1359 = vmatpush1.msra.mxu0 0.0
  %1360 = vmatprep.subr.mxu0 0.0
  %1361 = vmatpush1.msra.mxu0 0.0
  %1362 = vmatprep.subr.mxu0 0.0
  %1363 = vmatpush1.msra.mxu0 0.0
  %1364 = vmatprep.subr.mxu0 0.0
  %1365 = vmatpush1.msra.mxu0 0.0
  %1366 = vmatprep.subr.mxu0 0.0
  %1367 = vmatpush1.msra.mxu0 0.0
  %1368 = vmatprep.subr.mxu0 0.0
  %1369 = vmatpush1.msra.mxu0 0.0
  %1370 = vmatprep.subr.mxu0 0.0
  %1371 = vmatpush1.msra.mxu0 %v26
  %1372 = vmatprep.subr.mxu0 0.0
  %1373 = vmatpush1.msra.mxu0 %v25
  %1374 = vmatprep.subr.mxu0 0.0
  %1375 = vmatpush1.msra.mxu0 %v24
  %1376 = vmatprep.subr.mxu0 0.0
  %1377 = vmatpush1.msra.mxu0 %v23
  %1378 = vmatprep.subr.mxu0 0.0
  %1379 = vmatpush2.msra.mxu0 0.0
  %1380 = vmatprep.subr.mxu0 0.0
  %1381 = vmatpush2.msra.mxu0 0.0
  %1382 = vmatprep.subr.mxu0 0.0
  %1383 = vmatpush2.msra.mxu0 0.0
  %1384 = vmatprep.subr.mxu0 0.0
  %1385 = vmatpush2.msra.mxu0 0.0
  %1386 = vmatprep.subr.mxu0 0.0
  %1387 = vmatpush2.msra.mxu0 0.0
  %1388 = vmatprep.subr.mxu0 0.0
  %1389 = vmatpush2.msra.mxu0 0.0
  %1390 = vmatprep.subr.mxu0 0.0
  %1391 = vmatpush2.msra.mxu0 0.0
  %1392 = vmatprep.subr.mxu0 0.0
  %1393 = vmatpush2.msra.mxu0 0.0
  %1394 = vmatprep.subr.mxu0 0.0
  %1395 = vmatpush2.msra.mxu0 0.0
  %1396 = vmatprep.subr.mxu0 0.0
  %1397 = vmatpush2.msra.mxu0 0.0
  %1398 = vmatprep.subr.mxu0 0.0
  %1399 = vmatpush2.msra.mxu0 0.0
  %1400 = vmatprep.subr.mxu0 0.0
  %1401 = vmatpush2.msra.mxu0 0.0
  %1402 = vmatprep.subr.mxu0 0.0
  %1403 = vmatpush2.msra.mxu0 0.0
  %1404 = vmatprep.subr.mxu0 0.0
  %1405 = vmatpush2.msra.mxu0 0.0
  %1406 = vmatprep.subr.mxu0 0.0
  %1407 = vmatpush2.msra.mxu0 0.0
  %1408 = vmatprep.subr.mxu0 0.0
  %1409 = vmatpush2.msra.mxu0 0.0
  %1410 = vmatprep.mubr.f32.mxu0 0.0
  %1411 = vmatmul.mubr.f32.gmra.mxu0 %v1344
  %v1412 = vpop.f32.mrf.mxu0
  %v1413 = vadd.f32 0.0, %v1412
  %v1414 = vpop.f32.mrf.mxu0
  %1415 = vdwg.mxu0
  %v1417 = vsel %vm287, %v967, 0
  %1419 = vmatprep.subr.mxu0 0.0
  %1420 = vmatpush1.msra.mxu0 0.0
  %1421 = vmatprep.subr.mxu0 0.0
  %1422 = vmatpush1.msra.mxu0 0.0
  %1423 = vmatprep.subr.mxu0 0.0
  %1424 = vmatpush1.msra.mxu0 0.0
  %1425 = vmatprep.subr.mxu0 0.0
  %1426 = vmatpush1.msra.mxu0 0.0
  %1427 = vmatprep.subr.mxu0 0.0
  %1428 = vmatpush1.msra.mxu0 0.0
  %1429 = vmatprep.subr.mxu0 0.0
  %1430 = vmatpush1.msra.mxu0 0.0
  %1431 = vmatprep.subr.mxu0 0.0
  %1432 = vmatpush1.msra.mxu0 0.0
  %1433 = vmatprep.subr.mxu0 0.0
  %1434 = vmatpush1.msra.mxu0 0.0
  %1435 = vmatprep.subr.mxu0 0.0
  %1436 = vmatpush1.msra.mxu0 0.0
  %1437 = vmatprep.subr.mxu0 0.0
  %1438 = vmatpush1.msra.mxu0 0.0
  %1439 = vmatprep.subr.mxu0 0.0
  %1440 = vmatpush1.msra.mxu0 0.0
  %1441 = vmatprep.subr.mxu0 0.0
  %1442 = vmatpush1.msra.mxu0 0.0
  %1443 = vmatprep.subr.mxu0 0.0
  %1444 = vmatpush1.msra.mxu0 0.0
  %1445 = vmatprep.subr.mxu0 0.0
  %1446 = vmatpush1.msra.mxu0 0.0
  %1447 = vmatprep.subr.mxu0 0.0
  %1448 = vmatpush1.msra.mxu0 0.0
  %1449 = vmatprep.subr.mxu0 0.0
  %1450 = vmatpush1.msra.mxu0 %v21
  %1451 = vmatprep.subr.mxu0 0.0
  %1452 = vmatpush2.msra.mxu0 0.0
  %1453 = vmatprep.subr.mxu0 0.0
  %1454 = vmatpush2.msra.mxu0 0.0
  %1455 = vmatprep.subr.mxu0 0.0
  %1456 = vmatpush2.msra.mxu0 0.0
  %1457 = vmatprep.subr.mxu0 0.0
  %1458 = vmatpush2.msra.mxu0 0.0
  %1459 = vmatprep.subr.mxu0 0.0
  %1460 = vmatpush2.msra.mxu0 0.0
  %1461 = vmatprep.subr.mxu0 0.0
  %1462 = vmatpush2.msra.mxu0 0.0
  %1463 = vmatprep.subr.mxu0 0.0
  %1464 = vmatpush2.msra.mxu0 0.0
  %1465 = vmatprep.subr.mxu0 0.0
  %1466 = vmatpush2.msra.mxu0 0.0
  %1467 = vmatprep.subr.mxu0 0.0
  %1468 = vmatpush2.msra.mxu0 0.0
  %1469 = vmatprep.subr.mxu0 0.0
  %1470 = vmatpush2.msra.mxu0 0.0
  %1471 = vmatprep.subr.mxu0 0.0
  %1472 = vmatpush2.msra.mxu0 0.0
  %1473 = vmatprep.subr.mxu0 0.0
  %1474 = vmatpush2.msra.mxu0 0.0
  %1475 = vmatprep.subr.mxu0 0.0
  %1476 = vmatpush2.msra.mxu0 0.0
  %1477 = vmatprep.subr.mxu0 0.0
  %1478 = vmatpush2.msra.mxu0 0.0
  %1479 = vmatprep.subr.mxu0 0.0
  %1480 = vmatpush2.msra.mxu0 0.0
  %1481 = vmatprep.subr.mxu0 0.0
  %1482 = vmatpush2.msra.mxu0 0.0
  %1483 = vmatprep.mubr.f32.mxu0 0.0
  %1484 = vmatmul.mubr.f32.gmra.mxu0 %v1417
  %v1485 = vpop.f32.mrf.mxu0
  %v1486 = vadd.f32 %v1413, %v1485
  %v1487 = vpop.f32.mrf.mxu0
  %1488 = vdwg.mxu0
  %v1489 = vadd.f32 %v1486, %v737
  %v1490 = vmax.f32 %v1489, 0.0
  %v1491 = vtanh.pop %v1490
  %1492 = vst.msk [vmem:[#allocation2 + $0x4] sm:$0x3] %vm741, %v1491
  %1493 = vmatprep.subr.mxu0 0.0
  %1494 = vmatpush1.msra.mxu0 0.0
  %1495 = vmatprep.subr.mxu0 0.0
  %1496 = vmatpush1.msra.mxu0 0.0
  %1497 = vmatprep.subr.mxu0 0.0
  %1498 = vmatpush1.msra.mxu0 0.0
  %1499 = vmatprep.subr.mxu0 0.0
  %1500 = vmatpush1.msra.mxu0 0.0
  %1501 = vmatprep.subr.mxu0 0.0
  %1502 = vmatpush1.msra.mxu0 0.0
  %1503 = vmatprep.subr.mxu0 0.0
  %1504 = vmatpush1.msra.mxu0 0.0
  %1505 = vmatprep.subr.mxu0 0.0
  %1506 = vmatpush1.msra.mxu0 0.0
  %1507 = vmatprep.subr.mxu0 0.0
  %1508 = vmatpush1.msra.mxu0 0.0
  %1509 = vmatprep.subr.mxu0 0.0
  %1510 = vmatpush1.msra.mxu0 0.0
  %1511 = vmatprep.subr.mxu0 0.0
  %1512 = vmatpush1.msra.mxu0 0.0
  %1513 = vmatprep.subr.mxu0 0.0
  %1514 = vmatpush1.msra.mxu0 0.0
  %1515 = vmatprep.subr.mxu0 0.0
  %1516 = vmatpush1.msra.mxu0 0.0
  %1517 = vmatprep.subr.mxu0 0.0
  %1518 = vmatpush1.msra.mxu0 %v20
  %1519 = vmatprep.subr.mxu0 0.0
  %1520 = vmatpush1.msra.mxu0 %v19
  %1521 = vmatprep.subr.mxu0 0.0
  %1522 = vmatpush1.msra.mxu0 %v18
  %1523 = vmatprep.subr.mxu0 0.0
  %1524 = vmatpush1.msra.mxu0 %v17
  %1525 = vmatprep.subr.mxu0 0.0
  %1526 = vmatpush2.msra.mxu0 0.0
  %1527 = vmatprep.subr.mxu0 0.0
  %1528 = vmatpush2.msra.mxu0 0.0
  %1529 = vmatprep.subr.mxu0 0.0
  %1530 = vmatpush2.msra.mxu0 0.0
  %1531 = vmatprep.subr.mxu0 0.0
  %1532 = vmatpush2.msra.mxu0 0.0
  %1533 = vmatprep.subr.mxu0 0.0
  %1534 = vmatpush2.msra.mxu0 0.0
  %1535 = vmatprep.subr.mxu0 0.0
  %1536 = vmatpush2.msra.mxu0 0.0
  %1537 = vmatprep.subr.mxu0 0.0
  %1538 = vmatpush2.msra.mxu0 0.0
  %1539 = vmatprep.subr.mxu0 0.0
  %1540 = vmatpush2.msra.mxu0 0.0
  %1541 = vmatprep.subr.mxu0 0.0
  %1542 = vmatpush2.msra.mxu0 0.0
  %1543 = vmatprep.subr.mxu0 0.0
  %1544 = vmatpush2.msra.mxu0 0.0
  %1545 = vmatprep.subr.mxu0 0.0
  %1546 = vmatpush2.msra.mxu0 0.0
  %1547 = vmatprep.subr.mxu0 0.0
  %1548 = vmatpush2.msra.mxu0 0.0
  %1549 = vmatprep.subr.mxu0 0.0
  %1550 = vmatpush2.msra.mxu0 0.0
  %1551 = vmatprep.subr.mxu0 0.0
  %1552 = vmatpush2.msra.mxu0 0.0
  %1553 = vmatprep.subr.mxu0 0.0
  %1554 = vmatpush2.msra.mxu0 0.0
  %1555 = vmatprep.subr.mxu0 0.0
  %1556 = vmatpush2.msra.mxu0 0.0
  %1557 = vmatprep.mubr.f32.mxu0 0.0
  %1558 = vmatmul.mubr.f32.gmra.mxu0 %v1196
  %v1559 = vpop.f32.mrf.mxu0
  %v1560 = vadd.f32 0.0, %v1559
  %v1561 = vpop.f32.mrf.mxu0
  %1562 = vdwg.mxu0
  %v1563 = vadd.f32 %v126, %v1560
  %v1564 = vmax.f32 %v1563, 0.0
  %v1565 = vtanh.pop %v1564
  %v1567 = vsel %vm129, %v1565, 0
  %1569 = vmatprep.subr.mxu0 0.0
  %1570 = vmatpush1.msra.mxu0 0.0
  %1571 = vmatprep.subr.mxu0 0.0
  %1572 = vmatpush1.msra.mxu0 0.0
  %1573 = vmatprep.subr.mxu0 0.0
  %1574 = vmatpush1.msra.mxu0 0.0
  %1575 = vmatprep.subr.mxu0 0.0
  %1576 = vmatpush1.msra.mxu0 0.0
  %1577 = vmatprep.subr.mxu0 0.0
  %1578 = vmatpush1.msra.mxu0 0.0
  %1579 = vmatprep.subr.mxu0 0.0
  %1580 = vmatpush1.msra.mxu0 0.0
  %1581 = vmatprep.subr.mxu0 0.0
  %1582 = vmatpush1.msra.mxu0 0.0
  %1583 = vmatprep.subr.mxu0 0.0
  %1584 = vmatpush1.msra.mxu0 0.0
  %1585 = vmatprep.subr.mxu0 0.0
  %1586 = vmatpush1.msra.mxu0 0.0
  %1587 = vmatprep.subr.mxu0 0.0
  %1588 = vmatpush1.msra.mxu0 0.0
  %1589 = vmatprep.subr.mxu0 0.0
  %1590 = vmatpush1.msra.mxu0 0.0
  %1591 = vmatprep.subr.mxu0 0.0
  %1592 = vmatpush1.msra.mxu0 0.0
  %1593 = vmatprep.subr.mxu0 0.0
  %1594 = vmatpush1.msra.mxu0 %v32
  %1595 = vmatprep.subr.mxu0 0.0
  %1596 = vmatpush1.msra.mxu0 %v31
  %1597 = vmatprep.subr.mxu0 0.0
  %1598 = vmatpush1.msra.mxu0 %v30
  %1599 = vmatprep.subr.mxu0 0.0
  %1600 = vmatpush1.msra.mxu0 %v29
  %1601 = vmatprep.subr.mxu0 0.0
  %1602 = vmatpush2.msra.mxu0 0.0
  %1603 = vmatprep.subr.mxu0 0.0
  %1604 = vmatpush2.msra.mxu0 0.0
  %1605 = vmatprep.subr.mxu0 0.0
  %1606 = vmatpush2.msra.mxu0 0.0
  %1607 = vmatprep.subr.mxu0 0.0
  %1608 = vmatpush2.msra.mxu0 0.0
  %1609 = vmatprep.subr.mxu0 0.0
  %1610 = vmatpush2.msra.mxu0 0.0
  %1611 = vmatprep.subr.mxu0 0.0
  %1612 = vmatpush2.msra.mxu0 0.0
  %1613 = vmatprep.subr.mxu0 0.0
  %1614 = vmatpush2.msra.mxu0 0.0
  %1615 = vmatprep.subr.mxu0 0.0
  %1616 = vmatpush2.msra.mxu0 0.0
  %1617 = vmatprep.subr.mxu0 0.0
  %1618 = vmatpush2.msra.mxu0 0.0
  %1619 = vmatprep.subr.mxu0 0.0
  %1620 = vmatpush2.msra.mxu0 0.0
  %1621 = vmatprep.subr.mxu0 0.0
  %1622 = vmatpush2.msra.mxu0 0.0
  %1623 = vmatprep.subr.mxu0 0.0
  %1624 = vmatpush2.msra.mxu0 0.0
  %1625 = vmatprep.subr.mxu0 0.0
  %1626 = vmatpush2.msra.mxu0 0.0
  %1627 = vmatprep.subr.mxu0 0.0
  %1628 = vmatpush2.msra.mxu0 0.0
  %1629 = vmatprep.subr.mxu0 0.0
  %1630 = vmatpush2.msra.mxu0 0.0
  %1631 = vmatprep.subr.mxu0 0.0
  %1632 = vmatpush2.msra.mxu0 0.0
  %1633 = vmatprep.mubr.f32.mxu0 0.0
  %1634 = vmatmul.mubr.f32.gmra.mxu0 %v1567
  %v1635 = vpop.f32.mrf.mxu0
  %v1636 = vadd.f32 %v209, %v1635
  %v1637 = vpop.f32.mrf.mxu0
  %1638 = vdwg.mxu0
  %v1640 = vsel %vm287, %v1636, 0
  %1642 = vmatprep.subr.mxu0 0.0
  %1643 = vmatpush1.msra.mxu0 0.0
  %1644 = vmatprep.subr.mxu0 0.0
  %1645 = vmatpush1.msra.mxu0 0.0
  %1646 = vmatprep.subr.mxu0 0.0
  %1647 = vmatpush1.msra.mxu0 0.0
  %1648 = vmatprep.subr.mxu0 0.0
  %1649 = vmatpush1.msra.mxu0 0.0
  %1650 = vmatprep.subr.mxu0 0.0
  %1651 = vmatpush1.msra.mxu0 0.0
  %1652 = vmatprep.subr.mxu0 0.0
  %1653 = vmatpush1.msra.mxu0 0.0
  %1654 = vmatprep.subr.mxu0 0.0
  %1655 = vmatpush1.msra.mxu0 0.0
  %1656 = vmatprep.subr.mxu0 0.0
  %1657 = vmatpush1.msra.mxu0 0.0
  %1658 = vmatprep.subr.mxu0 0.0
  %1659 = vmatpush1.msra.mxu0 0.0
  %1660 = vmatprep.subr.mxu0 0.0
  %1661 = vmatpush1.msra.mxu0 0.0
  %1662 = vmatprep.subr.mxu0 0.0
  %1663 = vmatpush1.msra.mxu0 0.0
  %1664 = vmatprep.subr.mxu0 0.0
  %1665 = vmatpush1.msra.mxu0 0.0
  %1666 = vmatprep.subr.mxu0 0.0
  %1667 = vmatpush1.msra.mxu0 0.0
  %1668 = vmatprep.subr.mxu0 0.0
  %1669 = vmatpush1.msra.mxu0 0.0
  %1670 = vmatprep.subr.mxu0 0.0
  %1671 = vmatpush1.msra.mxu0 0.0
  %1672 = vmatprep.subr.mxu0 0.0
  %1673 = vmatpush1.msra.mxu0 %v34
  %1674 = vmatprep.subr.mxu0 0.0
  %1675 = vmatpush2.msra.mxu0 0.0
  %1676 = vmatprep.subr.mxu0 0.0
  %1677 = vmatpush2.msra.mxu0 0.0
  %1678 = vmatprep.subr.mxu0 0.0
  %1679 = vmatpush2.msra.mxu0 0.0
  %1680 = vmatprep.subr.mxu0 0.0
  %1681 = vmatpush2.msra.mxu0 0.0
  %1682 = vmatprep.subr.mxu0 0.0
  %1683 = vmatpush2.msra.mxu0 0.0
  %1684 = vmatprep.subr.mxu0 0.0
  %1685 = vmatpush2.msra.mxu0 0.0
  %1686 = vmatprep.subr.mxu0 0.0
  %1687 = vmatpush2.msra.mxu0 0.0
  %1688 = vmatprep.subr.mxu0 0.0
  %1689 = vmatpush2.msra.mxu0 0.0
  %1690 = vmatprep.subr.mxu0 0.0
  %1691 = vmatpush2.msra.mxu0 0.0
  %1692 = vmatprep.subr.mxu0 0.0
  %1693 = vmatpush2.msra.mxu0 0.0
  %1694 = vmatprep.subr.mxu0 0.0
  %1695 = vmatpush2.msra.mxu0 0.0
  %1696 = vmatprep.subr.mxu0 0.0
  %1697 = vmatpush2.msra.mxu0 0.0
  %1698 = vmatprep.subr.mxu0 0.0
  %1699 = vmatpush2.msra.mxu0 0.0
  %1700 = vmatprep.subr.mxu0 0.0
  %1701 = vmatpush2.msra.mxu0 0.0
  %1702 = vmatprep.subr.mxu0 0.0
  %1703 = vmatpush2.msra.mxu0 0.0
  %1704 = vmatprep.subr.mxu0 0.0
  %1705 = vmatpush2.msra.mxu0 0.0
  %1706 = vmatprep.mubr.f32.mxu0 0.0
  %1707 = vmatmul.mubr.f32.gmra.mxu0 %v1640
  %v1708 = vpop.f32.mrf.mxu0
  %v1709 = vadd.f32 %v286, %v1708
  %v1710 = vpop.f32.mrf.mxu0
  %1711 = vdwg.mxu0
  %v1712 = vmax.f32 %v1709, 0.0
  %v1713 = vtanh.pop %v1712
  %v1715 = vsel %vm129, %v1491, 0
  %1717 = vmatprep.subr.mxu0 0.0
  %1718 = vmatpush1.msra.mxu0 0.0
  %1719 = vmatprep.subr.mxu0 0.0
  %1720 = vmatpush1.msra.mxu0 0.0
  %1721 = vmatprep.subr.mxu0 0.0
  %1722 = vmatpush1.msra.mxu0 0.0
  %1723 = vmatprep.subr.mxu0 0.0
  %1724 = vmatpush1.msra.mxu0 0.0
  %1725 = vmatprep.subr.mxu0 0.0
  %1726 = vmatpush1.msra.mxu0 0.0
  %1727 = vmatprep.subr.mxu0 0.0
  %1728 = vmatpush1.msra.mxu0 0.0
  %1729 = vmatprep.subr.mxu0 0.0
  %1730 = vmatpush1.msra.mxu0 0.0
  %1731 = vmatprep.subr.mxu0 0.0
  %1732 = vmatpush1.msra.mxu0 0.0
  %1733 = vmatprep.subr.mxu0 0.0
  %1734 = vmatpush1.msra.mxu0 0.0
  %1735 = vmatprep.subr.mxu0 0.0
  %1736 = vmatpush1.msra.mxu0 0.0
  %1737 = vmatprep.subr.mxu0 0.0
  %1738 = vmatpush1.msra.mxu0 0.0
  %1739 = vmatprep.subr.mxu0 0.0
  %1740 = vmatpush1.msra.mxu0 0.0
  %1741 = vmatprep.subr.mxu0 0.0
  %1742 = vmatpush1.msra.mxu0 %v26
  %1743 = vmatprep.subr.mxu0 0.0
  %1744 = vmatpush1.msra.mxu0 %v25
  %1745 = vmatprep.subr.mxu0 0.0
  %1746 = vmatpush1.msra.mxu0 %v24
  %1747 = vmatprep.subr.mxu0 0.0
  %1748 = vmatpush1.msra.mxu0 %v23
  %1749 = vmatprep.subr.mxu0 0.0
  %1750 = vmatpush2.msra.mxu0 0.0
  %1751 = vmatprep.subr.mxu0 0.0
  %1752 = vmatpush2.msra.mxu0 0.0
  %1753 = vmatprep.subr.mxu0 0.0
  %1754 = vmatpush2.msra.mxu0 0.0
  %1755 = vmatprep.subr.mxu0 0.0
  %1756 = vmatpush2.msra.mxu0 0.0
  %1757 = vmatprep.subr.mxu0 0.0
  %1758 = vmatpush2.msra.mxu0 0.0
  %1759 = vmatprep.subr.mxu0 0.0
  %1760 = vmatpush2.msra.mxu0 0.0
  %1761 = vmatprep.subr.mxu0 0.0
  %1762 = vmatpush2.msra.mxu0 0.0
  %1763 = vmatprep.subr.mxu0 0.0
  %1764 = vmatpush2.msra.mxu0 0.0
  %1765 = vmatprep.subr.mxu0 0.0
  %1766 = vmatpush2.msra.mxu0 0.0
  %1767 = vmatprep.subr.mxu0 0.0
  %1768 = vmatpush2.msra.mxu0 0.0
  %1769 = vmatprep.subr.mxu0 0.0
  %1770 = vmatpush2.msra.mxu0 0.0
  %1771 = vmatprep.subr.mxu0 0.0
  %1772 = vmatpush2.msra.mxu0 0.0
  %1773 = vmatprep.subr.mxu0 0.0
  %1774 = vmatpush2.msra.mxu0 0.0
  %1775 = vmatprep.subr.mxu0 0.0
  %1776 = vmatpush2.msra.mxu0 0.0
  %1777 = vmatprep.subr.mxu0 0.0
  %1778 = vmatpush2.msra.mxu0 0.0
  %1779 = vmatprep.subr.mxu0 0.0
  %1780 = vmatpush2.msra.mxu0 0.0
  %1781 = vmatprep.mubr.f32.mxu0 0.0
  %1782 = vmatmul.mubr.f32.gmra.mxu0 %v1715
  %v1783 = vpop.f32.mrf.mxu0
  %v1784 = vadd.f32 0.0, %v1783
  %v1785 = vpop.f32.mrf.mxu0
  %1786 = vdwg.mxu0
  %v1788 = vsel %vm287, %v1342, 0
  %1790 = vmatprep.subr.mxu0 0.0
  %1791 = vmatpush1.msra.mxu0 0.0
  %1792 = vmatprep.subr.mxu0 0.0
  %1793 = vmatpush1.msra.mxu0 0.0
  %1794 = vmatprep.subr.mxu0 0.0
  %1795 = vmatpush1.msra.mxu0 0.0
  %1796 = vmatprep.subr.mxu0 0.0
  %1797 = vmatpush1.msra.mxu0 0.0
  %1798 = vmatprep.subr.mxu0 0.0
  %1799 = vmatpush1.msra.mxu0 0.0
  %1800 = vmatprep.subr.mxu0 0.0
  %1801 = vmatpush1.msra.mxu0 0.0
  %1802 = vmatprep.subr.mxu0 0.0
  %1803 = vmatpush1.msra.mxu0 0.0
  %1804 = vmatprep.subr.mxu0 0.0
  %1805 = vmatpush1.msra.mxu0 0.0
  %1806 = vmatprep.subr.mxu0 0.0
  %1807 = vmatpush1.msra.mxu0 0.0
  %1808 = vmatprep.subr.mxu0 0.0
  %1809 = vmatpush1.msra.mxu0 0.0
  %1810 = vmatprep.subr.mxu0 0.0
  %1811 = vmatpush1.msra.mxu0 0.0
  %1812 = vmatprep.subr.mxu0 0.0
  %1813 = vmatpush1.msra.mxu0 0.0
  %1814 = vmatprep.subr.mxu0 0.0
  %1815 = vmatpush1.msra.mxu0 0.0
  %1816 = vmatprep.subr.mxu0 0.0
  %1817 = vmatpush1.msra.mxu0 0.0
  %1818 = vmatprep.subr.mxu0 0.0
  %1819 = vmatpush1.msra.mxu0 0.0
  %1820 = vmatprep.subr.mxu0 0.0
  %1821 = vmatpush1.msra.mxu0 %v21
  %1822 = vmatprep.subr.mxu0 0.0
  %1823 = vmatpush2.msra.mxu0 0.0
  %1824 = vmatprep.subr.mxu0 0.0
  %1825 = vmatpush2.msra.mxu0 0.0
  %1826 = vmatprep.subr.mxu0 0.0
  %1827 = vmatpush2.msra.mxu0 0.0
  %1828 = vmatprep.subr.mxu0 0.0
  %1829 = vmatpush2.msra.mxu0 0.0
  %1830 = vmatprep.subr.mxu0 0.0
  %1831 = vmatpush2.msra.mxu0 0.0
  %1832 = vmatprep.subr.mxu0 0.0
  %1833 = vmatpush2.msra.mxu0 0.0
  %1834 = vmatprep.subr.mxu0 0.0
  %1835 = vmatpush2.msra.mxu0 0.0
  %1836 = vmatprep.subr.mxu0 0.0
  %1837 = vmatpush2.msra.mxu0 0.0
  %1838 = vmatprep.subr.mxu0 0.0
  %1839 = vmatpush2.msra.mxu0 0.0
  %1840 = vmatprep.subr.mxu0 0.0
  %1841 = vmatpush2.msra.mxu0 0.0
  %1842 = vmatprep.subr.mxu0 0.0
  %1843 = vmatpush2.msra.mxu0 0.0
  %1844 = vmatprep.subr.mxu0 0.0
  %1845 = vmatpush2.msra.mxu0 0.0
  %1846 = vmatprep.subr.mxu0 0.0
  %1847 = vmatpush2.msra.mxu0 0.0
  %1848 = vmatprep.subr.mxu0 0.0
  %1849 = vmatpush2.msra.mxu0 0.0
  %1850 = vmatprep.subr.mxu0 0.0
  %1851 = vmatpush2.msra.mxu0 0.0
  %1852 = vmatprep.subr.mxu0 0.0
  %1853 = vmatpush2.msra.mxu0 0.0
  %1854 = vmatprep.mubr.f32.mxu0 0.0
  %1855 = vmatmul.mubr.f32.gmra.mxu0 %v1788
  %v1856 = vpop.f32.mrf.mxu0
  %v1857 = vadd.f32 %v1784, %v1856
  %v1858 = vpop.f32.mrf.mxu0
  %1859 = vdwg.mxu0
  %v1860 = vadd.f32 %v1857, %v737
  %v1861 = vmax.f32 %v1860, 0.0
  %v1862 = vtanh.pop %v1861
  %1863 = vst.msk [vmem:[#allocation2 + $0x6] sm:$0x3] %vm741, %v1862
  %1864 = vmatprep.subr.mxu0 0.0
  %1865 = vmatpush1.msra.mxu0 0.0
  %1866 = vmatprep.subr.mxu0 0.0
  %1867 = vmatpush1.msra.mxu0 0.0
  %1868 = vmatprep.subr.mxu0 0.0
  %1869 = vmatpush1.msra.mxu0 0.0
  %1870 = vmatprep.subr.mxu0 0.0
  %1871 = vmatpush1.msra.mxu0 0.0
  %1872 = vmatprep.subr.mxu0 0.0
  %1873 = vmatpush1.msra.mxu0 0.0
  %1874 = vmatprep.subr.mxu0 0.0
  %1875 = vmatpush1.msra.mxu0 0.0
  %1876 = vmatprep.subr.mxu0 0.0
  %1877 = vmatpush1.msra.mxu0 0.0
  %1878 = vmatprep.subr.mxu0 0.0
  %1879 = vmatpush1.msra.mxu0 0.0
  %1880 = vmatprep.subr.mxu0 0.0
  %1881 = vmatpush1.msra.mxu0 0.0
  %1882 = vmatprep.subr.mxu0 0.0
  %1883 = vmatpush1.msra.mxu0 0.0
  %1884 = vmatprep.subr.mxu0 0.0
  %1885 = vmatpush1.msra.mxu0 0.0
  %1886 = vmatprep.subr.mxu0 0.0
  %1887 = vmatpush1.msra.mxu0 0.0
  %1888 = vmatprep.subr.mxu0 0.0
  %1889 = vmatpush1.msra.mxu0 %v20
  %1890 = vmatprep.subr.mxu0 0.0
  %1891 = vmatpush1.msra.mxu0 %v19
  %1892 = vmatprep.subr.mxu0 0.0
  %1893 = vmatpush1.msra.mxu0 %v18
  %1894 = vmatprep.subr.mxu0 0.0
  %1895 = vmatpush1.msra.mxu0 %v17
  %1896 = vmatprep.subr.mxu0 0.0
  %1897 = vmatpush2.msra.mxu0 0.0
  %1898 = vmatprep.subr.mxu0 0.0
  %1899 = vmatpush2.msra.mxu0 0.0
  %1900 = vmatprep.subr.mxu0 0.0
  %1901 = vmatpush2.msra.mxu0 0.0
  %1902 = vmatprep.subr.mxu0 0.0
  %1903 = vmatpush2.msra.mxu0 0.0
  %1904 = vmatprep.subr.mxu0 0.0
  %1905 = vmatpush2.msra.mxu0 0.0
  %1906 = vmatprep.subr.mxu0 0.0
  %1907 = vmatpush2.msra.mxu0 0.0
  %1908 = vmatprep.subr.mxu0 0.0
  %1909 = vmatpush2.msra.mxu0 0.0
  %1910 = vmatprep.subr.mxu0 0.0
  %1911 = vmatpush2.msra.mxu0 0.0
  %1912 = vmatprep.subr.mxu0 0.0
  %1913 = vmatpush2.msra.mxu0 0.0
  %1914 = vmatprep.subr.mxu0 0.0
  %1915 = vmatpush2.msra.mxu0 0.0
  %1916 = vmatprep.subr.mxu0 0.0
  %1917 = vmatpush2.msra.mxu0 0.0
  %1918 = vmatprep.subr.mxu0 0.0
  %1919 = vmatpush2.msra.mxu0 0.0
  %1920 = vmatprep.subr.mxu0 0.0
  %1921 = vmatpush2.msra.mxu0 0.0
  %1922 = vmatprep.subr.mxu0 0.0
  %1923 = vmatpush2.msra.mxu0 0.0
  %1924 = vmatprep.subr.mxu0 0.0
  %1925 = vmatpush2.msra.mxu0 0.0
  %1926 = vmatprep.subr.mxu0 0.0
  %1927 = vmatpush2.msra.mxu0 0.0
  %1928 = vmatprep.mubr.f32.mxu0 0.0
  %1929 = vmatmul.mubr.f32.gmra.mxu0 %v1567
  %v1930 = vpop.f32.mrf.mxu0
  %v1931 = vadd.f32 0.0, %v1930
  %v1932 = vpop.f32.mrf.mxu0
  %1933 = vdwg.mxu0
  %v1935 = vrot.slane %v1931, 6
  %v1937 = vadd.f32 %v126, %v1935
  %v1938 = vmax.f32 %v1937, 0.0
  %v1939 = vtanh.pop %v1938
  %v1941 = vrot.slane %v1939, 2
  %v1942 = vsel %vm129, %v1941, 0
  %1944 = vmatprep.subr.mxu0 0.0
  %1945 = vmatpush1.msra.mxu0 0.0
  %1946 = vmatprep.subr.mxu0 0.0
  %1947 = vmatpush1.msra.mxu0 0.0
  %1948 = vmatprep.subr.mxu0 0.0
  %1949 = vmatpush1.msra.mxu0 0.0
  %1950 = vmatprep.subr.mxu0 0.0
  %1951 = vmatpush1.msra.mxu0 0.0
  %1952 = vmatprep.subr.mxu0 0.0
  %1953 = vmatpush1.msra.mxu0 0.0
  %1954 = vmatprep.subr.mxu0 0.0
  %1955 = vmatpush1.msra.mxu0 0.0
  %1956 = vmatprep.subr.mxu0 0.0
  %1957 = vmatpush1.msra.mxu0 0.0
  %1958 = vmatprep.subr.mxu0 0.0
  %1959 = vmatpush1.msra.mxu0 0.0
  %1960 = vmatprep.subr.mxu0 0.0
  %1961 = vmatpush1.msra.mxu0 0.0
  %1962 = vmatprep.subr.mxu0 0.0
  %1963 = vmatpush1.msra.mxu0 0.0
  %1964 = vmatprep.subr.mxu0 0.0
  %1965 = vmatpush1.msra.mxu0 0.0
  %1966 = vmatprep.subr.mxu0 0.0
  %1967 = vmatpush1.msra.mxu0 0.0
  %1968 = vmatprep.subr.mxu0 0.0
  %1969 = vmatpush1.msra.mxu0 %v32
  %1970 = vmatprep.subr.mxu0 0.0
  %1971 = vmatpush1.msra.mxu0 %v31
  %1972 = vmatprep.subr.mxu0 0.0
  %1973 = vmatpush1.msra.mxu0 %v30
  %1974 = vmatprep.subr.mxu0 0.0
  %1975 = vmatpush1.msra.mxu0 %v29
  %1976 = vmatprep.subr.mxu0 0.0
  %1977 = vmatpush2.msra.mxu0 0.0
  %1978 = vmatprep.subr.mxu0 0.0
  %1979 = vmatpush2.msra.mxu0 0.0
  %1980 = vmatprep.subr.mxu0 0.0
  %1981 = vmatpush2.msra.mxu0 0.0
  %1982 = vmatprep.subr.mxu0 0.0
  %1983 = vmatpush2.msra.mxu0 0.0
  %1984 = vmatprep.subr.mxu0 0.0
  %1985 = vmatpush2.msra.mxu0 0.0
  %1986 = vmatprep.subr.mxu0 0.0
  %1987 = vmatpush2.msra.mxu0 0.0
  %1988 = vmatprep.subr.mxu0 0.0
  %1989 = vmatpush2.msra.mxu0 0.0
  %1990 = vmatprep.subr.mxu0 0.0
  %1991 = vmatpush2.msra.mxu0 0.0
  %1992 = vmatprep.subr.mxu0 0.0
  %1993 = vmatpush2.msra.mxu0 0.0
  %1994 = vmatprep.subr.mxu0 0.0
  %1995 = vmatpush2.msra.mxu0 0.0
  %1996 = vmatprep.subr.mxu0 0.0
  %1997 = vmatpush2.msra.mxu0 0.0
  %1998 = vmatprep.subr.mxu0 0.0
  %1999 = vmatpush2.msra.mxu0 0.0
  %2000 = vmatprep.subr.mxu0 0.0
  %2001 = vmatpush2.msra.mxu0 0.0
  %2002 = vmatprep.subr.mxu0 0.0
  %2003 = vmatpush2.msra.mxu0 0.0
  %2004 = vmatprep.subr.mxu0 0.0
  %2005 = vmatpush2.msra.mxu0 0.0
  %2006 = vmatprep.subr.mxu0 0.0
  %2007 = vmatpush2.msra.mxu0 0.0
  %2008 = vmatprep.mubr.f32.mxu0 0.0
  %2009 = vmatmul.mubr.f32.gmra.mxu0 %v1942
  %v2010 = vpop.f32.mrf.mxu0
  %v2011 = vadd.f32 %v209, %v2010
  %v2012 = vpop.f32.mrf.mxu0
  %2013 = vdwg.mxu0
  %v2015 = vsel %vm287, %v2011, 0
  %2017 = vmatprep.subr.mxu0 0.0
  %2018 = vmatpush1.msra.mxu0 0.0
  %2019 = vmatprep.subr.mxu0 0.0
  %2020 = vmatpush1.msra.mxu0 0.0
  %2021 = vmatprep.subr.mxu0 0.0
  %2022 = vmatpush1.msra.mxu0 0.0
  %2023 = vmatprep.subr.mxu0 0.0
  %2024 = vmatpush1.msra.mxu0 0.0
  %2025 = vmatprep.subr.mxu0 0.0
  %2026 = vmatpush1.msra.mxu0 0.0
  %2027 = vmatprep.subr.mxu0 0.0
  %2028 = vmatpush1.msra.mxu0 0.0
  %2029 = vmatprep.subr.mxu0 0.0
  %2030 = vmatpush1.msra.mxu0 0.0
  %2031 = vmatprep.subr.mxu0 0.0
  %2032 = vmatpush1.msra.mxu0 0.0
  %2033 = vmatprep.subr.mxu0 0.0
  %2034 = vmatpush1.msra.mxu0 0.0
  %2035 = vmatprep.subr.mxu0 0.0
  %2036 = vmatpush1.msra.mxu0 0.0
  %2037 = vmatprep.subr.mxu0 0.0
  %2038 = vmatpush1.msra.mxu0 0.0
  %2039 = vmatprep.subr.mxu0 0.0
  %2040 = vmatpush1.msra.mxu0 0.0
  %2041 = vmatprep.subr.mxu0 0.0
  %2042 = vmatpush1.msra.mxu0 0.0
  %2043 = vmatprep.subr.mxu0 0.0
  %2044 = vmatpush1.msra.mxu0 0.0
  %2045 = vmatprep.subr.mxu0 0.0
  %2046 = vmatpush1.msra.mxu0 0.0
  %2047 = vmatprep.subr.mxu0 0.0
  %2048 = vmatpush1.msra.mxu0 %v34
  %2049 = vmatprep.subr.mxu0 0.0
  %2050 = vmatpush2.msra.mxu0 0.0
  %2051 = vmatprep.subr.mxu0 0.0
  %2052 = vmatpush2.msra.mxu0 0.0
  %2053 = vmatprep.subr.mxu0 0.0
  %2054 = vmatpush2.msra.mxu0 0.0
  %2055 = vmatprep.subr.mxu0 0.0
  %2056 = vmatpush2.msra.mxu0 0.0
  %2057 = vmatprep.subr.mxu0 0.0
  %2058 = vmatpush2.msra.mxu0 0.0
  %2059 = vmatprep.subr.mxu0 0.0
  %2060 = vmatpush2.msra.mxu0 0.0
  %2061 = vmatprep.subr.mxu0 0.0
  %2062 = vmatpush2.msra.mxu0 0.0
  %2063 = vmatprep.subr.mxu0 0.0
  %2064 = vmatpush2.msra.mxu0 0.0
  %2065 = vmatprep.subr.mxu0 0.0
  %2066 = vmatpush2.msra.mxu0 0.0
  %2067 = vmatprep.subr.mxu0 0.0
  %2068 = vmatpush2.msra.mxu0 0.0
  %2069 = vmatprep.subr.mxu0 0.0
  %2070 = vmatpush2.msra.mxu0 0.0
  %2071 = vmatprep.subr.mxu0 0.0
  %2072 = vmatpush2.msra.mxu0 0.0
  %2073 = vmatprep.subr.mxu0 0.0
  %2074 = vmatpush2.msra.mxu0 0.0
  %2075 = vmatprep.subr.mxu0 0.0
  %2076 = vmatpush2.msra.mxu0 0.0
  %2077 = vmatprep.subr.mxu0 0.0
  %2078 = vmatpush2.msra.mxu0 0.0
  %2079 = vmatprep.subr.mxu0 0.0
  %2080 = vmatpush2.msra.mxu0 0.0
  %2081 = vmatprep.mubr.f32.mxu0 0.0
  %2082 = vmatmul.mubr.f32.gmra.mxu0 %v2015
  %v2083 = vpop.f32.mrf.mxu0
  %v2084 = vadd.f32 %v286, %v2083
  %v2085 = vpop.f32.mrf.mxu0
  %2086 = vdwg.mxu0
  %v2087 = vmax.f32 %v2084, 0.0
  %v2088 = vtanh.pop %v2087
  %v2090 = vsel %vm129, %v1862, 0
  %2092 = vmatprep.subr.mxu0 0.0
  %2093 = vmatpush1.msra.mxu0 0.0
  %2094 = vmatprep.subr.mxu0 0.0
  %2095 = vmatpush1.msra.mxu0 0.0
  %2096 = vmatprep.subr.mxu0 0.0
  %2097 = vmatpush1.msra.mxu0 0.0
  %2098 = vmatprep.subr.mxu0 0.0
  %2099 = vmatpush1.msra.mxu0 0.0
  %2100 = vmatprep.subr.mxu0 0.0
  %2101 = vmatpush1.msra.mxu0 0.0
  %2102 = vmatprep.subr.mxu0 0.0
  %2103 = vmatpush1.msra.mxu0 0.0
  %2104 = vmatprep.subr.mxu0 0.0
  %2105 = vmatpush1.msra.mxu0 0.0
  %2106 = vmatprep.subr.mxu0 0.0
  %2107 = vmatpush1.msra.mxu0 0.0
  %2108 = vmatprep.subr.mxu0 0.0
  %2109 = vmatpush1.msra.mxu0 0.0
  %2110 = vmatprep.subr.mxu0 0.0
  %2111 = vmatpush1.msra.mxu0 0.0
  %2112 = vmatprep.subr.mxu0 0.0
  %2113 = vmatpush1.msra.mxu0 0.0
  %2114 = vmatprep.subr.mxu0 0.0
  %2115 = vmatpush1.msra.mxu0 0.0
  %2116 = vmatprep.subr.mxu0 0.0
  %2117 = vmatpush1.msra.mxu0 %v26
  %2118 = vmatprep.subr.mxu0 0.0
  %2119 = vmatpush1.msra.mxu0 %v25
  %2120 = vmatprep.subr.mxu0 0.0
  %2121 = vmatpush1.msra.mxu0 %v24
  %2122 = vmatprep.subr.mxu0 0.0
  %2123 = vmatpush1.msra.mxu0 %v23
  %2124 = vmatprep.subr.mxu0 0.0
  %2125 = vmatpush2.msra.mxu0 0.0
  %2126 = vmatprep.subr.mxu0 0.0
  %2127 = vmatpush2.msra.mxu0 0.0
  %2128 = vmatprep.subr.mxu0 0.0
  %2129 = vmatpush2.msra.mxu0 0.0
  %2130 = vmatprep.subr.mxu0 0.0
  %2131 = vmatpush2.msra.mxu0 0.0
  %2132 = vmatprep.subr.mxu0 0.0
  %2133 = vmatpush2.msra.mxu0 0.0
  %2134 = vmatprep.subr.mxu0 0.0
  %2135 = vmatpush2.msra.mxu0 0.0
  %2136 = vmatprep.subr.mxu0 0.0
  %2137 = vmatpush2.msra.mxu0 0.0
  %2138 = vmatprep.subr.mxu0 0.0
  %2139 = vmatpush2.msra.mxu0 0.0
  %2140 = vmatprep.subr.mxu0 0.0
  %2141 = vmatpush2.msra.mxu0 0.0
  %2142 = vmatprep.subr.mxu0 0.0
  %2143 = vmatpush2.msra.mxu0 0.0
  %2144 = vmatprep.subr.mxu0 0.0
  %2145 = vmatpush2.msra.mxu0 0.0
  %2146 = vmatprep.subr.mxu0 0.0
  %2147 = vmatpush2.msra.mxu0 0.0
  %2148 = vmatprep.subr.mxu0 0.0
  %2149 = vmatpush2.msra.mxu0 0.0
  %2150 = vmatprep.subr.mxu0 0.0
  %2151 = vmatpush2.msra.mxu0 0.0
  %2152 = vmatprep.subr.mxu0 0.0
  %2153 = vmatpush2.msra.mxu0 0.0
  %2154 = vmatprep.subr.mxu0 0.0
  %2155 = vmatpush2.msra.mxu0 0.0
  %2156 = vmatprep.mubr.f32.mxu0 0.0
  %2157 = vmatmul.mubr.f32.gmra.mxu0 %v2090
  %v2158 = vpop.f32.mrf.mxu0
  %v2159 = vadd.f32 0.0, %v2158
  %v2160 = vpop.f32.mrf.mxu0
  %2161 = vdwg.mxu0
  %v2163 = vsel %vm287, %v1713, 0
  %2165 = vmatprep.subr.mxu0 0.0
  %2166 = vmatpush1.msra.mxu0 0.0
  %2167 = vmatprep.subr.mxu0 0.0
  %2168 = vmatpush1.msra.mxu0 0.0
  %2169 = vmatprep.subr.mxu0 0.0
  %2170 = vmatpush1.msra.mxu0 0.0
  %2171 = vmatprep.subr.mxu0 0.0
  %2172 = vmatpush1.msra.mxu0 0.0
  %2173 = vmatprep.subr.mxu0 0.0
  %2174 = vmatpush1.msra.mxu0 0.0
  %2175 = vmatprep.subr.mxu0 0.0
  %2176 = vmatpush1.msra.mxu0 0.0
  %2177 = vmatprep.subr.mxu0 0.0
  %2178 = vmatpush1.msra.mxu0 0.0
  %2179 = vmatprep.subr.mxu0 0.0
  %2180 = vmatpush1.msra.mxu0 0.0
  %2181 = vmatprep.subr.mxu0 0.0
  %2182 = vmatpush1.msra.mxu0 0.0
  %2183 = vmatprep.subr.mxu0 0.0
  %2184 = vmatpush1.msra.mxu0 0.0
  %2185 = vmatprep.subr.mxu0 0.0
  %2186 = vmatpush1.msra.mxu0 0.0
  %2187 = vmatprep.subr.mxu0 0.0
  %2188 = vmatpush1.msra.mxu0 0.0
  %2189 = vmatprep.subr.mxu0 0.0
  %2190 = vmatpush1.msra.mxu0 0.0
  %2191 = vmatprep.subr.mxu0 0.0
  %2192 = vmatpush1.msra.mxu0 0.0
  %2193 = vmatprep.subr.mxu0 0.0
  %2194 = vmatpush1.msra.mxu0 0.0
  %2195 = vmatprep.subr.mxu0 0.0
  %2196 = vmatpush1.msra.mxu0 %v21
  %2197 = vmatprep.subr.mxu0 0.0
  %2198 = vmatpush2.msra.mxu0 0.0
  %2199 = vmatprep.subr.mxu0 0.0
  %2200 = vmatpush2.msra.mxu0 0.0
  %2201 = vmatprep.subr.mxu0 0.0
  %2202 = vmatpush2.msra.mxu0 0.0
  %2203 = vmatprep.subr.mxu0 0.0
  %2204 = vmatpush2.msra.mxu0 0.0
  %2205 = vmatprep.subr.mxu0 0.0
  %2206 = vmatpush2.msra.mxu0 0.0
  %2207 = vmatprep.subr.mxu0 0.0
  %2208 = vmatpush2.msra.mxu0 0.0
  %2209 = vmatprep.subr.mxu0 0.0
  %2210 = vmatpush2.msra.mxu0 0.0
  %2211 = vmatprep.subr.mxu0 0.0
  %2212 = vmatpush2.msra.mxu0 0.0
  %2213 = vmatprep.subr.mxu0 0.0
  %2214 = vmatpush2.msra.mxu0 0.0
  %2215 = vmatprep.subr.mxu0 0.0
  %2216 = vmatpush2.msra.mxu0 0.0
  %2217 = vmatprep.subr.mxu0 0.0
  %2218 = vmatpush2.msra.mxu0 0.0
  %2219 = vmatprep.subr.mxu0 0.0
  %2220 = vmatpush2.msra.mxu0 0.0
  %2221 = vmatprep.subr.mxu0 0.0
  %2222 = vmatpush2.msra.mxu0 0.0
  %2223 = vmatprep.subr.mxu0 0.0
  %2224 = vmatpush2.msra.mxu0 0.0
  %2225 = vmatprep.subr.mxu0 0.0
  %2226 = vmatpush2.msra.mxu0 0.0
  %2227 = vmatprep.subr.mxu0 0.0
  %2228 = vmatpush2.msra.mxu0 0.0
  %2229 = vmatprep.mubr.f32.mxu0 0.0
  %2230 = vmatmul.mubr.f32.gmra.mxu0 %v2163
  %v2231 = vpop.f32.mrf.mxu0
  %v2232 = vadd.f32 %v2159, %v2231
  %v2233 = vpop.f32.mrf.mxu0
  %2234 = vdwg.mxu0
  %v2235 = vadd.f32 %v2232, %v737
  %v2236 = vmax.f32 %v2235, 0.0
  %v2237 = vtanh.pop %v2236
  %2238 = vst.msk [vmem:[#allocation2 + $0x8] sm:$0x3] %vm741, %v2237
  %2239 = vmatprep.subr.mxu0 0.0
  %2240 = vmatpush1.msra.mxu0 0.0
  %2241 = vmatprep.subr.mxu0 0.0
  %2242 = vmatpush1.msra.mxu0 0.0
  %2243 = vmatprep.subr.mxu0 0.0
  %2244 = vmatpush1.msra.mxu0 0.0
  %2245 = vmatprep.subr.mxu0 0.0
  %2246 = vmatpush1.msra.mxu0 0.0
  %2247 = vmatprep.subr.mxu0 0.0
  %2248 = vmatpush1.msra.mxu0 0.0
  %2249 = vmatprep.subr.mxu0 0.0
  %2250 = vmatpush1.msra.mxu0 0.0
  %2251 = vmatprep.subr.mxu0 0.0
  %2252 = vmatpush1.msra.mxu0 0.0
  %2253 = vmatprep.subr.mxu0 0.0
  %2254 = vmatpush1.msra.mxu0 0.0
  %2255 = vmatprep.subr.mxu0 0.0
  %2256 = vmatpush1.msra.mxu0 0.0
  %2257 = vmatprep.subr.mxu0 0.0
  %2258 = vmatpush1.msra.mxu0 0.0
  %2259 = vmatprep.subr.mxu0 0.0
  %2260 = vmatpush1.msra.mxu0 0.0
  %2261 = vmatprep.subr.mxu0 0.0
  %2262 = vmatpush1.msra.mxu0 0.0
  %2263 = vmatprep.subr.mxu0 0.0
  %2264 = vmatpush1.msra.mxu0 %v20
  %2265 = vmatprep.subr.mxu0 0.0
  %2266 = vmatpush1.msra.mxu0 %v19
  %2267 = vmatprep.subr.mxu0 0.0
  %2268 = vmatpush1.msra.mxu0 %v18
  %2269 = vmatprep.subr.mxu0 0.0
  %2270 = vmatpush1.msra.mxu0 %v17
  %2271 = vmatprep.subr.mxu0 0.0
  %2272 = vmatpush2.msra.mxu0 0.0
  %2273 = vmatprep.subr.mxu0 0.0
  %2274 = vmatpush2.msra.mxu0 0.0
  %2275 = vmatprep.subr.mxu0 0.0
  %2276 = vmatpush2.msra.mxu0 0.0
  %2277 = vmatprep.subr.mxu0 0.0
  %2278 = vmatpush2.msra.mxu0 0.0
  %2279 = vmatprep.subr.mxu0 0.0
  %2280 = vmatpush2.msra.mxu0 0.0
  %2281 = vmatprep.subr.mxu0 0.0
  %2282 = vmatpush2.msra.mxu0 0.0
  %2283 = vmatprep.subr.mxu0 0.0
  %2284 = vmatpush2.msra.mxu0 0.0
  %2285 = vmatprep.subr.mxu0 0.0
  %2286 = vmatpush2.msra.mxu0 0.0
  %2287 = vmatprep.subr.mxu0 0.0
  %2288 = vmatpush2.msra.mxu0 0.0
  %2289 = vmatprep.subr.mxu0 0.0
  %2290 = vmatpush2.msra.mxu0 0.0
  %2291 = vmatprep.subr.mxu0 0.0
  %2292 = vmatpush2.msra.mxu0 0.0
  %2293 = vmatprep.subr.mxu0 0.0
  %2294 = vmatpush2.msra.mxu0 0.0
  %2295 = vmatprep.subr.mxu0 0.0
  %2296 = vmatpush2.msra.mxu0 0.0
  %2297 = vmatprep.subr.mxu0 0.0
  %2298 = vmatpush2.msra.mxu0 0.0
  %2299 = vmatprep.subr.mxu0 0.0
  %2300 = vmatpush2.msra.mxu0 0.0
  %2301 = vmatprep.subr.mxu0 0.0
  %2302 = vmatpush2.msra.mxu0 0.0
  %2303 = vmatprep.mubr.f32.mxu0 0.0
  %2304 = vmatmul.mubr.f32.gmra.mxu0 %v1942
  %v2305 = vpop.f32.mrf.mxu0
  %v2306 = vadd.f32 0.0, %v2305
  %v2307 = vpop.f32.mrf.mxu0
  %2308 = vdwg.mxu0
  %v2310 = vrot.slane %v2306, 4
  %v2312 = vadd.f32 %v126, %v2310
  %v2313 = vmax.f32 %v2312, 0.0
  %v2314 = vtanh.pop %v2313
  %v2316 = vrot.slane %v2314, 4
  %v2317 = vsel %vm129, %v2316, 0
  %2319 = vmatprep.subr.mxu0 0.0
  %2320 = vmatpush1.msra.mxu0 0.0
  %2321 = vmatprep.subr.mxu0 0.0
  %2322 = vmatpush1.msra.mxu0 0.0
  %2323 = vmatprep.subr.mxu0 0.0
  %2324 = vmatpush1.msra.mxu0 0.0
  %2325 = vmatprep.subr.mxu0 0.0
  %2326 = vmatpush1.msra.mxu0 0.0
  %2327 = vmatprep.subr.mxu0 0.0
  %2328 = vmatpush1.msra.mxu0 0.0
  %2329 = vmatprep.subr.mxu0 0.0
  %2330 = vmatpush1.msra.mxu0 0.0
  %2331 = vmatprep.subr.mxu0 0.0
  %2332 = vmatpush1.msra.mxu0 0.0
  %2333 = vmatprep.subr.mxu0 0.0
  %2334 = vmatpush1.msra.mxu0 0.0
  %2335 = vmatprep.subr.mxu0 0.0
  %2336 = vmatpush1.msra.mxu0 0.0
  %2337 = vmatprep.subr.mxu0 0.0
  %2338 = vmatpush1.msra.mxu0 0.0
  %2339 = vmatprep.subr.mxu0 0.0
  %2340 = vmatpush1.msra.mxu0 0.0
  %2341 = vmatprep.subr.mxu0 0.0
  %2342 = vmatpush1.msra.mxu0 0.0
  %2343 = vmatprep.subr.mxu0 0.0
  %2344 = vmatpush1.msra.mxu0 %v32
  %2345 = vmatprep.subr.mxu0 0.0
  %2346 = vmatpush1.msra.mxu0 %v31
  %2347 = vmatprep.subr.mxu0 0.0
  %2348 = vmatpush1.msra.mxu0 %v30
  %2349 = vmatprep.subr.mxu0 0.0
  %2350 = vmatpush1.msra.mxu0 %v29
  %2351 = vmatprep.subr.mxu0 0.0
  %2352 = vmatpush2.msra.mxu0 0.0
  %2353 = vmatprep.subr.mxu0 0.0
  %2354 = vmatpush2.msra.mxu0 0.0
  %2355 = vmatprep.subr.mxu0 0.0
  %2356 = vmatpush2.msra.mxu0 0.0
  %2357 = vmatprep.subr.mxu0 0.0
  %2358 = vmatpush2.msra.mxu0 0.0
  %2359 = vmatprep.subr.mxu0 0.0
  %2360 = vmatpush2.msra.mxu0 0.0
  %2361 = vmatprep.subr.mxu0 0.0
  %2362 = vmatpush2.msra.mxu0 0.0
  %2363 = vmatprep.subr.mxu0 0.0
  %2364 = vmatpush2.msra.mxu0 0.0
  %2365 = vmatprep.subr.mxu0 0.0
  %2366 = vmatpush2.msra.mxu0 0.0
  %2367 = vmatprep.subr.mxu0 0.0
  %2368 = vmatpush2.msra.mxu0 0.0
  %2369 = vmatprep.subr.mxu0 0.0
  %2370 = vmatpush2.msra.mxu0 0.0
  %2371 = vmatprep.subr.mxu0 0.0
  %2372 = vmatpush2.msra.mxu0 0.0
  %2373 = vmatprep.subr.mxu0 0.0
  %2374 = vmatpush2.msra.mxu0 0.0
  %2375 = vmatprep.subr.mxu0 0.0
  %2376 = vmatpush2.msra.mxu0 0.0
  %2377 = vmatprep.subr.mxu0 0.0
  %2378 = vmatpush2.msra.mxu0 0.0
  %2379 = vmatprep.subr.mxu0 0.0
  %2380 = vmatpush2.msra.mxu0 0.0
  %2381 = vmatprep.subr.mxu0 0.0
  %2382 = vmatpush2.msra.mxu0 0.0
  %2383 = vmatprep.mubr.f32.mxu0 0.0
  %2384 = vmatmul.mubr.f32.gmra.mxu0 %v2317
  %v2385 = vpop.f32.mrf.mxu0
  %v2386 = vadd.f32 %v209, %v2385
  %v2387 = vpop.f32.mrf.mxu0
  %2388 = vdwg.mxu0
  %v2390 = vsel %vm287, %v2386, 0
  %2392 = vmatprep.subr.mxu0 0.0
  %2393 = vmatpush1.msra.mxu0 0.0
  %2394 = vmatprep.subr.mxu0 0.0
  %2395 = vmatpush1.msra.mxu0 0.0
  %2396 = vmatprep.subr.mxu0 0.0
  %2397 = vmatpush1.msra.mxu0 0.0
  %2398 = vmatprep.subr.mxu0 0.0
  %2399 = vmatpush1.msra.mxu0 0.0
  %2400 = vmatprep.subr.mxu0 0.0
  %2401 = vmatpush1.msra.mxu0 0.0
  %2402 = vmatprep.subr.mxu0 0.0
  %2403 = vmatpush1.msra.mxu0 0.0
  %2404 = vmatprep.subr.mxu0 0.0
  %2405 = vmatpush1.msra.mxu0 0.0
  %2406 = vmatprep.subr.mxu0 0.0
  %2407 = vmatpush1.msra.mxu0 0.0
  %2408 = vmatprep.subr.mxu0 0.0
  %2409 = vmatpush1.msra.mxu0 0.0
  %2410 = vmatprep.subr.mxu0 0.0
  %2411 = vmatpush1.msra.mxu0 0.0
  %2412 = vmatprep.subr.mxu0 0.0
  %2413 = vmatpush1.msra.mxu0 0.0
  %2414 = vmatprep.subr.mxu0 0.0
  %2415 = vmatpush1.msra.mxu0 0.0
  %2416 = vmatprep.subr.mxu0 0.0
  %2417 = vmatpush1.msra.mxu0 0.0
  %2418 = vmatprep.subr.mxu0 0.0
  %2419 = vmatpush1.msra.mxu0 0.0
  %2420 = vmatprep.subr.mxu0 0.0
  %2421 = vmatpush1.msra.mxu0 0.0
  %2422 = vmatprep.subr.mxu0 0.0
  %2423 = vmatpush1.msra.mxu0 %v34
  %2424 = vmatprep.subr.mxu0 0.0
  %2425 = vmatpush2.msra.mxu0 0.0
  %2426 = vmatprep.subr.mxu0 0.0
  %2427 = vmatpush2.msra.mxu0 0.0
  %2428 = vmatprep.subr.mxu0 0.0
  %2429 = vmatpush2.msra.mxu0 0.0
  %2430 = vmatprep.subr.mxu0 0.0
  %2431 = vmatpush2.msra.mxu0 0.0
  %2432 = vmatprep.subr.mxu0 0.0
  %2433 = vmatpush2.msra.mxu0 0.0
  %2434 = vmatprep.subr.mxu0 0.0
  %2435 = vmatpush2.msra.mxu0 0.0
  %2436 = vmatprep.subr.mxu0 0.0
  %2437 = vmatpush2.msra.mxu0 0.0
  %2438 = vmatprep.subr.mxu0 0.0
  %2439 = vmatpush2.msra.mxu0 0.0
  %2440 = vmatprep.subr.mxu0 0.0
  %2441 = vmatpush2.msra.mxu0 0.0
  %2442 = vmatprep.subr.mxu0 0.0
  %2443 = vmatpush2.msra.mxu0 0.0
  %2444 = vmatprep.subr.mxu0 0.0
  %2445 = vmatpush2.msra.mxu0 0.0
  %2446 = vmatprep.subr.mxu0 0.0
  %2447 = vmatpush2.msra.mxu0 0.0
  %2448 = vmatprep.subr.mxu0 0.0
  %2449 = vmatpush2.msra.mxu0 0.0
  %2450 = vmatprep.subr.mxu0 0.0
  %2451 = vmatpush2.msra.mxu0 0.0
  %2452 = vmatprep.subr.mxu0 0.0
  %2453 = vmatpush2.msra.mxu0 0.0
  %2454 = vmatprep.subr.mxu0 0.0
  %2455 = vmatpush2.msra.mxu0 0.0
  %2456 = vmatprep.mubr.f32.mxu0 0.0
  %2457 = vmatmul.mubr.f32.gmra.mxu0 %v2390
  %v2458 = vpop.f32.mrf.mxu0
  %v2459 = vadd.f32 %v286, %v2458
  %v2460 = vpop.f32.mrf.mxu0
  %2461 = vdwg.mxu0
  %v2462 = vmax.f32 %v2459, 0.0
  %v2463 = vtanh.pop %v2462
  %v2465 = vsel %vm129, %v2237, 0
  %2467 = vmatprep.subr.mxu0 0.0
  %2468 = vmatpush1.msra.mxu0 0.0
  %2469 = vmatprep.subr.mxu0 0.0
  %2470 = vmatpush1.msra.mxu0 0.0
  %2471 = vmatprep.subr.mxu0 0.0
  %2472 = vmatpush1.msra.mxu0 0.0
  %2473 = vmatprep.subr.mxu0 0.0
  %2474 = vmatpush1.msra.mxu0 0.0
  %2475 = vmatprep.subr.mxu0 0.0
  %2476 = vmatpush1.msra.mxu0 0.0
  %2477 = vmatprep.subr.mxu0 0.0
  %2478 = vmatpush1.msra.mxu0 0.0
  %2479 = vmatprep.subr.mxu0 0.0
  %2480 = vmatpush1.msra.mxu0 0.0
  %2481 = vmatprep.subr.mxu0 0.0
  %2482 = vmatpush1.msra.mxu0 0.0
  %2483 = vmatprep.subr.mxu0 0.0
  %2484 = vmatpush1.msra.mxu0 0.0
  %2485 = vmatprep.subr.mxu0 0.0
  %2486 = vmatpush1.msra.mxu0 0.0
  %2487 = vmatprep.subr.mxu0 0.0
  %2488 = vmatpush1.msra.mxu0 0.0
  %2489 = vmatprep.subr.mxu0 0.0
  %2490 = vmatpush1.msra.mxu0 0.0
  %2491 = vmatprep.subr.mxu0 0.0
  %2492 = vmatpush1.msra.mxu0 %v26
  %2493 = vmatprep.subr.mxu0 0.0
  %2494 = vmatpush1.msra.mxu0 %v25
  %2495 = vmatprep.subr.mxu0 0.0
  %2496 = vmatpush1.msra.mxu0 %v24
  %2497 = vmatprep.subr.mxu0 0.0
  %2498 = vmatpush1.msra.mxu0 %v23
  %2499 = vmatprep.subr.mxu0 0.0
  %2500 = vmatpush2.msra.mxu0 0.0
  %2501 = vmatprep.subr.mxu0 0.0
  %2502 = vmatpush2.msra.mxu0 0.0
  %2503 = vmatprep.subr.mxu0 0.0
  %2504 = vmatpush2.msra.mxu0 0.0
  %2505 = vmatprep.subr.mxu0 0.0
  %2506 = vmatpush2.msra.mxu0 0.0
  %2507 = vmatprep.subr.mxu0 0.0
  %2508 = vmatpush2.msra.mxu0 0.0
  %2509 = vmatprep.subr.mxu0 0.0
  %2510 = vmatpush2.msra.mxu0 0.0
  %2511 = vmatprep.subr.mxu0 0.0
  %2512 = vmatpush2.msra.mxu0 0.0
  %2513 = vmatprep.subr.mxu0 0.0
  %2514 = vmatpush2.msra.mxu0 0.0
  %2515 = vmatprep.subr.mxu0 0.0
  %2516 = vmatpush2.msra.mxu0 0.0
  %2517 = vmatprep.subr.mxu0 0.0
  %2518 = vmatpush2.msra.mxu0 0.0
  %2519 = vmatprep.subr.mxu0 0.0
  %2520 = vmatpush2.msra.mxu0 0.0
  %2521 = vmatprep.subr.mxu0 0.0
  %2522 = vmatpush2.msra.mxu0 0.0
  %2523 = vmatprep.subr.mxu0 0.0
  %2524 = vmatpush2.msra.mxu0 0.0
  %2525 = vmatprep.subr.mxu0 0.0
  %2526 = vmatpush2.msra.mxu0 0.0
  %2527 = vmatprep.subr.mxu0 0.0
  %2528 = vmatpush2.msra.mxu0 0.0
  %2529 = vmatprep.subr.mxu0 0.0
  %2530 = vmatpush2.msra.mxu0 0.0
  %2531 = vmatprep.mubr.f32.mxu0 0.0
  %2532 = vmatmul.mubr.f32.gmra.mxu0 %v2465
  %v2533 = vpop.f32.mrf.mxu0
  %v2534 = vadd.f32 0.0, %v2533
  %v2535 = vpop.f32.mrf.mxu0
  %2536 = vdwg.mxu0
  %v2538 = vsel %vm287, %v2088, 0
  %2540 = vmatprep.subr.mxu0 0.0
  %2541 = vmatpush1.msra.mxu0 0.0
  %2542 = vmatprep.subr.mxu0 0.0
  %2543 = vmatpush1.msra.mxu0 0.0
  %2544 = vmatprep.subr.mxu0 0.0
  %2545 = vmatpush1.msra.mxu0 0.0
  %2546 = vmatprep.subr.mxu0 0.0
  %2547 = vmatpush1.msra.mxu0 0.0
  %2548 = vmatprep.subr.mxu0 0.0
  %2549 = vmatpush1.msra.mxu0 0.0
  %2550 = vmatprep.subr.mxu0 0.0
  %2551 = vmatpush1.msra.mxu0 0.0
  %2552 = vmatprep.subr.mxu0 0.0
  %2553 = vmatpush1.msra.mxu0 0.0
  %2554 = vmatprep.subr.mxu0 0.0
  %2555 = vmatpush1.msra.mxu0 0.0
  %2556 = vmatprep.subr.mxu0 0.0
  %2557 = vmatpush1.msra.mxu0 0.0
  %2558 = vmatprep.subr.mxu0 0.0
  %2559 = vmatpush1.msra.mxu0 0.0
  %2560 = vmatprep.subr.mxu0 0.0
  %2561 = vmatpush1.msra.mxu0 0.0
  %2562 = vmatprep.subr.mxu0 0.0
  %2563 = vmatpush1.msra.mxu0 0.0
  %2564 = vmatprep.subr.mxu0 0.0
  %2565 = vmatpush1.msra.mxu0 0.0
  %2566 = vmatprep.subr.mxu0 0.0
  %2567 = vmatpush1.msra.mxu0 0.0
  %2568 = vmatprep.subr.mxu0 0.0
  %2569 = vmatpush1.msra.mxu0 0.0
  %2570 = vmatprep.subr.mxu0 0.0
  %2571 = vmatpush1.msra.mxu0 %v21
  %2572 = vmatprep.subr.mxu0 0.0
  %2573 = vmatpush2.msra.mxu0 0.0
  %2574 = vmatprep.subr.mxu0 0.0
  %2575 = vmatpush2.msra.mxu0 0.0
  %2576 = vmatprep.subr.mxu0 0.0
  %2577 = vmatpush2.msra.mxu0 0.0
  %2578 = vmatprep.subr.mxu0 0.0
  %2579 = vmatpush2.msra.mxu0 0.0
  %2580 = vmatprep.subr.mxu0 0.0
  %2581 = vmatpush2.msra.mxu0 0.0
  %2582 = vmatprep.subr.mxu0 0.0
  %2583 = vmatpush2.msra.mxu0 0.0
  %2584 = vmatprep.subr.mxu0 0.0
  %2585 = vmatpush2.msra.mxu0 0.0
  %2586 = vmatprep.subr.mxu0 0.0
  %2587 = vmatpush2.msra.mxu0 0.0
  %2588 = vmatprep.subr.mxu0 0.0
  %2589 = vmatpush2.msra.mxu0 0.0
  %2590 = vmatprep.subr.mxu0 0.0
  %2591 = vmatpush2.msra.mxu0 0.0
  %2592 = vmatprep.subr.mxu0 0.0
  %2593 = vmatpush2.msra.mxu0 0.0
  %2594 = vmatprep.subr.mxu0 0.0
  %2595 = vmatpush2.msra.mxu0 0.0
  %2596 = vmatprep.subr.mxu0 0.0
  %2597 = vmatpush2.msra.mxu0 0.0
  %2598 = vmatprep.subr.mxu0 0.0
  %2599 = vmatpush2.msra.mxu0 0.0
  %2600 = vmatprep.subr.mxu0 0.0
  %2601 = vmatpush2.msra.mxu0 0.0
  %2602 = vmatprep.subr.mxu0 0.0
  %2603 = vmatpush2.msra.mxu0 0.0
  %2604 = vmatprep.mubr.f32.mxu0 0.0
  %2605 = vmatmul.mubr.f32.gmra.mxu0 %v2538
  %v2606 = vpop.f32.mrf.mxu0
  %v2607 = vadd.f32 %v2534, %v2606
  %v2608 = vpop.f32.mrf.mxu0
  %2609 = vdwg.mxu0
  %v2610 = vadd.f32 %v2607, %v737
  %v2611 = vmax.f32 %v2610, 0.0
  %v2612 = vtanh.pop %v2611
  %2613 = vst.msk [vmem:[#allocation2 + $0xa] sm:$0x3] %vm741, %v2612
  %2614 = vmatprep.subr.mxu0 0.0
  %2615 = vmatpush1.msra.mxu0 0.0
  %2616 = vmatprep.subr.mxu0 0.0
  %2617 = vmatpush1.msra.mxu0 0.0
  %2618 = vmatprep.subr.mxu0 0.0
  %2619 = vmatpush1.msra.mxu0 0.0
  %2620 = vmatprep.subr.mxu0 0.0
  %2621 = vmatpush1.msra.mxu0 0.0
  %2622 = vmatprep.subr.mxu0 0.0
  %2623 = vmatpush1.msra.mxu0 0.0
  %2624 = vmatprep.subr.mxu0 0.0
  %2625 = vmatpush1.msra.mxu0 0.0
  %2626 = vmatprep.subr.mxu0 0.0
  %2627 = vmatpush1.msra.mxu0 0.0
  %2628 = vmatprep.subr.mxu0 0.0
  %2629 = vmatpush1.msra.mxu0 0.0
  %2630 = vmatprep.subr.mxu0 0.0
  %2631 = vmatpush1.msra.mxu0 0.0
  %2632 = vmatprep.subr.mxu0 0.0
  %2633 = vmatpush1.msra.mxu0 0.0
  %2634 = vmatprep.subr.mxu0 0.0
  %2635 = vmatpush1.msra.mxu0 0.0
  %2636 = vmatprep.subr.mxu0 0.0
  %2637 = vmatpush1.msra.mxu0 0.0
  %2638 = vmatprep.subr.mxu0 0.0
  %2639 = vmatpush1.msra.mxu0 %v20
  %2640 = vmatprep.subr.mxu0 0.0
  %2641 = vmatpush1.msra.mxu0 %v19
  %2642 = vmatprep.subr.mxu0 0.0
  %2643 = vmatpush1.msra.mxu0 %v18
  %2644 = vmatprep.subr.mxu0 0.0
  %2645 = vmatpush1.msra.mxu0 %v17
  %2646 = vmatprep.subr.mxu0 0.0
  %2647 = vmatpush2.msra.mxu0 0.0
  %2648 = vmatprep.subr.mxu0 0.0
  %2649 = vmatpush2.msra.mxu0 0.0
  %2650 = vmatprep.subr.mxu0 0.0
  %2651 = vmatpush2.msra.mxu0 0.0
  %2652 = vmatprep.subr.mxu0 0.0
  %2653 = vmatpush2.msra.mxu0 0.0
  %2654 = vmatprep.subr.mxu0 0.0
  %2655 = vmatpush2.msra.mxu0 0.0
  %2656 = vmatprep.subr.mxu0 0.0
  %2657 = vmatpush2.msra.mxu0 0.0
  %2658 = vmatprep.subr.mxu0 0.0
  %2659 = vmatpush2.msra.mxu0 0.0
  %2660 = vmatprep.subr.mxu0 0.0
  %2661 = vmatpush2.msra.mxu0 0.0
  %2662 = vmatprep.subr.mxu0 0.0
  %2663 = vmatpush2.msra.mxu0 0.0
  %2664 = vmatprep.subr.mxu0 0.0
  %2665 = vmatpush2.msra.mxu0 0.0
  %2666 = vmatprep.subr.mxu0 0.0
  %2667 = vmatpush2.msra.mxu0 0.0
  %2668 = vmatprep.subr.mxu0 0.0
  %2669 = vmatpush2.msra.mxu0 0.0
  %2670 = vmatprep.subr.mxu0 0.0
  %2671 = vmatpush2.msra.mxu0 0.0
  %2672 = vmatprep.subr.mxu0 0.0
  %2673 = vmatpush2.msra.mxu0 0.0
  %2674 = vmatprep.subr.mxu0 0.0
  %2675 = vmatpush2.msra.mxu0 0.0
  %2676 = vmatprep.subr.mxu0 0.0
  %2677 = vmatpush2.msra.mxu0 0.0
  %2678 = vmatprep.mubr.f32.mxu0 0.0
  %2679 = vmatmul.mubr.f32.gmra.mxu0 %v2317
  %v2680 = vpop.f32.mrf.mxu0
  %v2681 = vadd.f32 0.0, %v2680
  %v2682 = vpop.f32.mrf.mxu0
  %2683 = vdwg.mxu0
  %v2685 = vrot.slane %v2681, 2
  %v2687 = vadd.f32 %v126, %v2685
  %v2688 = vmax.f32 %v2687, 0.0
  %v2689 = vtanh.pop %v2688
  %v2691 = vrot.slane %v2689, 6
  %v2692 = vsel %vm129, %v2691, 0
  %2694 = vmatprep.subr.mxu0 0.0
  %2695 = vmatpush1.msra.mxu0 0.0
  %2696 = vmatprep.subr.mxu0 0.0
  %2697 = vmatpush1.msra.mxu0 0.0
  %2698 = vmatprep.subr.mxu0 0.0
  %2699 = vmatpush1.msra.mxu0 0.0
  %2700 = vmatprep.subr.mxu0 0.0
  %2701 = vmatpush1.msra.mxu0 0.0
  %2702 = vmatprep.subr.mxu0 0.0
  %2703 = vmatpush1.msra.mxu0 0.0
  %2704 = vmatprep.subr.mxu0 0.0
  %2705 = vmatpush1.msra.mxu0 0.0
  %2706 = vmatprep.subr.mxu0 0.0
  %2707 = vmatpush1.msra.mxu0 0.0
  %2708 = vmatprep.subr.mxu0 0.0
  %2709 = vmatpush1.msra.mxu0 0.0
  %2710 = vmatprep.subr.mxu0 0.0
  %2711 = vmatpush1.msra.mxu0 0.0
  %2712 = vmatprep.subr.mxu0 0.0
  %2713 = vmatpush1.msra.mxu0 0.0
  %2714 = vmatprep.subr.mxu0 0.0
  %2715 = vmatpush1.msra.mxu0 0.0
  %2716 = vmatprep.subr.mxu0 0.0
  %2717 = vmatpush1.msra.mxu0 0.0
  %2718 = vmatprep.subr.mxu0 0.0
  %2719 = vmatpush1.msra.mxu0 %v32
  %2720 = vmatprep.subr.mxu0 0.0
  %2721 = vmatpush1.msra.mxu0 %v31
  %2722 = vmatprep.subr.mxu0 0.0
  %2723 = vmatpush1.msra.mxu0 %v30
  %2724 = vmatprep.subr.mxu0 0.0
  %2725 = vmatpush1.msra.mxu0 %v29
  %2726 = vmatprep.subr.mxu0 0.0
  %2727 = vmatpush2.msra.mxu0 0.0
  %2728 = vmatprep.subr.mxu0 0.0
  %2729 = vmatpush2.msra.mxu0 0.0
  %2730 = vmatprep.subr.mxu0 0.0
  %2731 = vmatpush2.msra.mxu0 0.0
  %2732 = vmatprep.subr.mxu0 0.0
  %2733 = vmatpush2.msra.mxu0 0.0
  %2734 = vmatprep.subr.mxu0 0.0
  %2735 = vmatpush2.msra.mxu0 0.0
  %2736 = vmatprep.subr.mxu0 0.0
  %2737 = vmatpush2.msra.mxu0 0.0
  %2738 = vmatprep.subr.mxu0 0.0
  %2739 = vmatpush2.msra.mxu0 0.0
  %2740 = vmatprep.subr.mxu0 0.0
  %2741 = vmatpush2.msra.mxu0 0.0
  %2742 = vmatprep.subr.mxu0 0.0
  %2743 = vmatpush2.msra.mxu0 0.0
  %2744 = vmatprep.subr.mxu0 0.0
  %2745 = vmatpush2.msra.mxu0 0.0
  %2746 = vmatprep.subr.mxu0 0.0
  %2747 = vmatpush2.msra.mxu0 0.0
  %2748 = vmatprep.subr.mxu0 0.0
  %2749 = vmatpush2.msra.mxu0 0.0
  %2750 = vmatprep.subr.mxu0 0.0
  %2751 = vmatpush2.msra.mxu0 0.0
  %2752 = vmatprep.subr.mxu0 0.0
  %2753 = vmatpush2.msra.mxu0 0.0
  %2754 = vmatprep.subr.mxu0 0.0
  %2755 = vmatpush2.msra.mxu0 0.0
  %2756 = vmatprep.subr.mxu0 0.0
  %2757 = vmatpush2.msra.mxu0 0.0
  %2758 = vmatprep.mubr.f32.mxu0 0.0
  %2759 = vmatmul.mubr.f32.gmra.mxu0 %v2692
  %v2760 = vpop.f32.mrf.mxu0
  %v2761 = vadd.f32 %v209, %v2760
  %v2762 = vpop.f32.mrf.mxu0
  %2763 = vdwg.mxu0
  %v2765 = vsel %vm287, %v2761, 0
  %2767 = vmatprep.subr.mxu0 0.0
  %2768 = vmatpush1.msra.mxu0 0.0
  %2769 = vmatprep.subr.mxu0 0.0
  %2770 = vmatpush1.msra.mxu0 0.0
  %2771 = vmatprep.subr.mxu0 0.0
  %2772 = vmatpush1.msra.mxu0 0.0
  %2773 = vmatprep.subr.mxu0 0.0
  %2774 = vmatpush1.msra.mxu0 0.0
  %2775 = vmatprep.subr.mxu0 0.0
  %2776 = vmatpush1.msra.mxu0 0.0
  %2777 = vmatprep.subr.mxu0 0.0
  %2778 = vmatpush1.msra.mxu0 0.0
  %2779 = vmatprep.subr.mxu0 0.0
  %2780 = vmatpush1.msra.mxu0 0.0
  %2781 = vmatprep.subr.mxu0 0.0
  %2782 = vmatpush1.msra.mxu0 0.0
  %2783 = vmatprep.subr.mxu0 0.0
  %2784 = vmatpush1.msra.mxu0 0.0
  %2785 = vmatprep.subr.mxu0 0.0
  %2786 = vmatpush1.msra.mxu0 0.0
  %2787 = vmatprep.subr.mxu0 0.0
  %2788 = vmatpush1.msra.mxu0 0.0
  %2789 = vmatprep.subr.mxu0 0.0
  %2790 = vmatpush1.msra.mxu0 0.0
  %2791 = vmatprep.subr.mxu0 0.0
  %2792 = vmatpush1.msra.mxu0 0.0
  %2793 = vmatprep.subr.mxu0 0.0
  %2794 = vmatpush1.msra.mxu0 0.0
  %2795 = vmatprep.subr.mxu0 0.0
  %2796 = vmatpush1.msra.mxu0 0.0
  %2797 = vmatprep.subr.mxu0 0.0
  %2798 = vmatpush1.msra.mxu0 %v34
  %2799 = vmatprep.subr.mxu0 0.0
  %2800 = vmatpush2.msra.mxu0 0.0
  %2801 = vmatprep.subr.mxu0 0.0
  %2802 = vmatpush2.msra.mxu0 0.0
  %2803 = vmatprep.subr.mxu0 0.0
  %2804 = vmatpush2.msra.mxu0 0.0
  %2805 = vmatprep.subr.mxu0 0.0
  %2806 = vmatpush2.msra.mxu0 0.0
  %2807 = vmatprep.subr.mxu0 0.0
  %2808 = vmatpush2.msra.mxu0 0.0
  %2809 = vmatprep.subr.mxu0 0.0
  %2810 = vmatpush2.msra.mxu0 0.0
  %2811 = vmatprep.subr.mxu0 0.0
  %2812 = vmatpush2.msra.mxu0 0.0
  %2813 = vmatprep.subr.mxu0 0.0
  %2814 = vmatpush2.msra.mxu0 0.0
  %2815 = vmatprep.subr.mxu0 0.0
  %2816 = vmatpush2.msra.mxu0 0.0
  %2817 = vmatprep.subr.mxu0 0.0
  %2818 = vmatpush2.msra.mxu0 0.0
  %2819 = vmatprep.subr.mxu0 0.0
  %2820 = vmatpush2.msra.mxu0 0.0
  %2821 = vmatprep.subr.mxu0 0.0
  %2822 = vmatpush2.msra.mxu0 0.0
  %2823 = vmatprep.subr.mxu0 0.0
  %2824 = vmatpush2.msra.mxu0 0.0
  %2825 = vmatprep.subr.mxu0 0.0
  %2826 = vmatpush2.msra.mxu0 0.0
  %2827 = vmatprep.subr.mxu0 0.0
  %2828 = vmatpush2.msra.mxu0 0.0
  %2829 = vmatprep.subr.mxu0 0.0
  %2830 = vmatpush2.msra.mxu0 0.0
  %2831 = vmatprep.mubr.f32.mxu0 0.0
  %2832 = vmatmul.mubr.f32.gmra.mxu0 %v2765
  %v2833 = vpop.f32.mrf.mxu0
  %v2834 = vadd.f32 %v286, %v2833
  %v2835 = vpop.f32.mrf.mxu0
  %2836 = vdwg.mxu0
  %v2837 = vmax.f32 %v2834, 0.0
  %v2838 = vtanh.pop %v2837
  %v2840 = vsel %vm129, %v2612, 0
  %2842 = vmatprep.subr.mxu0 0.0
  %2843 = vmatpush1.msra.mxu0 0.0
  %2844 = vmatprep.subr.mxu0 0.0
  %2845 = vmatpush1.msra.mxu0 0.0
  %2846 = vmatprep.subr.mxu0 0.0
  %2847 = vmatpush1.msra.mxu0 0.0
  %2848 = vmatprep.subr.mxu0 0.0
  %2849 = vmatpush1.msra.mxu0 0.0
  %2850 = vmatprep.subr.mxu0 0.0
  %2851 = vmatpush1.msra.mxu0 0.0
  %2852 = vmatprep.subr.mxu0 0.0
  %2853 = vmatpush1.msra.mxu0 0.0
  %2854 = vmatprep.subr.mxu0 0.0
  %2855 = vmatpush1.msra.mxu0 0.0
  %2856 = vmatprep.subr.mxu0 0.0
  %2857 = vmatpush1.msra.mxu0 0.0
  %2858 = vmatprep.subr.mxu0 0.0
  %2859 = vmatpush1.msra.mxu0 0.0
  %2860 = vmatprep.subr.mxu0 0.0
  %2861 = vmatpush1.msra.mxu0 0.0
  %2862 = vmatprep.subr.mxu0 0.0
  %2863 = vmatpush1.msra.mxu0 0.0
  %2864 = vmatprep.subr.mxu0 0.0
  %2865 = vmatpush1.msra.mxu0 0.0
  %2866 = vmatprep.subr.mxu0 0.0
  %2867 = vmatpush1.msra.mxu0 %v26
  %2868 = vmatprep.subr.mxu0 0.0
  %2869 = vmatpush1.msra.mxu0 %v25
  %2870 = vmatprep.subr.mxu0 0.0
  %2871 = vmatpush1.msra.mxu0 %v24
  %2872 = vmatprep.subr.mxu0 0.0
  %2873 = vmatpush1.msra.mxu0 %v23
  %2874 = vmatprep.subr.mxu0 0.0
  %2875 = vmatpush2.msra.mxu0 0.0
  %2876 = vmatprep.subr.mxu0 0.0
  %2877 = vmatpush2.msra.mxu0 0.0
  %2878 = vmatprep.subr.mxu0 0.0
  %2879 = vmatpush2.msra.mxu0 0.0
  %2880 = vmatprep.subr.mxu0 0.0
  %2881 = vmatpush2.msra.mxu0 0.0
  %2882 = vmatprep.subr.mxu0 0.0
  %2883 = vmatpush2.msra.mxu0 0.0
  %2884 = vmatprep.subr.mxu0 0.0
  %2885 = vmatpush2.msra.mxu0 0.0
  %2886 = vmatprep.subr.mxu0 0.0
  %2887 = vmatpush2.msra.mxu0 0.0
  %2888 = vmatprep.subr.mxu0 0.0
  %2889 = vmatpush2.msra.mxu0 0.0
  %2890 = vmatprep.subr.mxu0 0.0
  %2891 = vmatpush2.msra.mxu0 0.0
  %2892 = vmatprep.subr.mxu0 0.0
  %2893 = vmatpush2.msra.mxu0 0.0
  %2894 = vmatprep.subr.mxu0 0.0
  %2895 = vmatpush2.msra.mxu0 0.0
  %2896 = vmatprep.subr.mxu0 0.0
  %2897 = vmatpush2.msra.mxu0 0.0
  %2898 = vmatprep.subr.mxu0 0.0
  %2899 = vmatpush2.msra.mxu0 0.0
  %2900 = vmatprep.subr.mxu0 0.0
  %2901 = vmatpush2.msra.mxu0 0.0
  %2902 = vmatprep.subr.mxu0 0.0
  %2903 = vmatpush2.msra.mxu0 0.0
  %2904 = vmatprep.subr.mxu0 0.0
  %2905 = vmatpush2.msra.mxu0 0.0
  %2906 = vmatprep.mubr.f32.mxu0 0.0
  %2907 = vmatmul.mubr.f32.gmra.mxu0 %v2840
  %v2908 = vpop.f32.mrf.mxu0
  %v2909 = vadd.f32 0.0, %v2908
  %v2910 = vpop.f32.mrf.mxu0
  %2911 = vdwg.mxu0
  %v2913 = vsel %vm287, %v2463, 0
  %2915 = vmatprep.subr.mxu0 0.0
  %2916 = vmatpush1.msra.mxu0 0.0
  %2917 = vmatprep.subr.mxu0 0.0
  %2918 = vmatpush1.msra.mxu0 0.0
  %2919 = vmatprep.subr.mxu0 0.0
  %2920 = vmatpush1.msra.mxu0 0.0
  %2921 = vmatprep.subr.mxu0 0.0
  %2922 = vmatpush1.msra.mxu0 0.0
  %2923 = vmatprep.subr.mxu0 0.0
  %2924 = vmatpush1.msra.mxu0 0.0
  %2925 = vmatprep.subr.mxu0 0.0
  %2926 = vmatpush1.msra.mxu0 0.0
  %2927 = vmatprep.subr.mxu0 0.0
  %2928 = vmatpush1.msra.mxu0 0.0
  %2929 = vmatprep.subr.mxu0 0.0
  %2930 = vmatpush1.msra.mxu0 0.0
  %2931 = vmatprep.subr.mxu0 0.0
  %2932 = vmatpush1.msra.mxu0 0.0
  %2933 = vmatprep.subr.mxu0 0.0
  %2934 = vmatpush1.msra.mxu0 0.0
  %2935 = vmatprep.subr.mxu0 0.0
  %2936 = vmatpush1.msra.mxu0 0.0
  %2937 = vmatprep.subr.mxu0 0.0
  %2938 = vmatpush1.msra.mxu0 0.0
  %2939 = vmatprep.subr.mxu0 0.0
  %2940 = vmatpush1.msra.mxu0 0.0
  %2941 = vmatprep.subr.mxu0 0.0
  %2942 = vmatpush1.msra.mxu0 0.0
  %2943 = vmatprep.subr.mxu0 0.0
  %2944 = vmatpush1.msra.mxu0 0.0
  %2945 = vmatprep.subr.mxu0 0.0
  %2946 = vmatpush1.msra.mxu0 %v21
  %2947 = vmatprep.subr.mxu0 0.0
  %2948 = vmatpush2.msra.mxu0 0.0
  %2949 = vmatprep.subr.mxu0 0.0
  %2950 = vmatpush2.msra.mxu0 0.0
  %2951 = vmatprep.subr.mxu0 0.0
  %2952 = vmatpush2.msra.mxu0 0.0
  %2953 = vmatprep.subr.mxu0 0.0
  %2954 = vmatpush2.msra.mxu0 0.0
  %2955 = vmatprep.subr.mxu0 0.0
  %2956 = vmatpush2.msra.mxu0 0.0
  %2957 = vmatprep.subr.mxu0 0.0
  %2958 = vmatpush2.msra.mxu0 0.0
  %2959 = vmatprep.subr.mxu0 0.0
  %2960 = vmatpush2.msra.mxu0 0.0
  %2961 = vmatprep.subr.mxu0 0.0
  %2962 = vmatpush2.msra.mxu0 0.0
  %2963 = vmatprep.subr.mxu0 0.0
  %2964 = vmatpush2.msra.mxu0 0.0
  %2965 = vmatprep.subr.mxu0 0.0
  %2966 = vmatpush2.msra.mxu0 0.0
  %2967 = vmatprep.subr.mxu0 0.0
  %2968 = vmatpush2.msra.mxu0 0.0
  %2969 = vmatprep.subr.mxu0 0.0
  %2970 = vmatpush2.msra.mxu0 0.0
  %2971 = vmatprep.subr.mxu0 0.0
  %2972 = vmatpush2.msra.mxu0 0.0
  %2973 = vmatprep.subr.mxu0 0.0
  %2974 = vmatpush2.msra.mxu0 0.0
  %2975 = vmatprep.subr.mxu0 0.0
  %2976 = vmatpush2.msra.mxu0 0.0
  %2977 = vmatprep.subr.mxu0 0.0
  %2978 = vmatpush2.msra.mxu0 0.0
  %2979 = vmatprep.mubr.f32.mxu0 0.0
  %2980 = vmatmul.mubr.f32.gmra.mxu0 %v2913
  %v2981 = vpop.f32.mrf.mxu0
  %v2982 = vadd.f32 %v2909, %v2981
  %v2983 = vpop.f32.mrf.mxu0
  %2984 = vdwg.mxu0
  %v2985 = vadd.f32 %v2982, %v737
  %v2986 = vmax.f32 %v2985, 0.0
  %v2987 = vtanh.pop %v2986
  %2988 = vst.msk [vmem:[#allocation2 + $0xc] sm:$0x3] %vm741, %v2987
  %v2990 = vsel %vm129, %v2987, 0
  %2992 = vmatprep.subr.mxu0 0.0
  %2993 = vmatpush1.msra.mxu0 0.0
  %2994 = vmatprep.subr.mxu0 0.0
  %2995 = vmatpush1.msra.mxu0 0.0
  %2996 = vmatprep.subr.mxu0 0.0
  %2997 = vmatpush1.msra.mxu0 0.0
  %2998 = vmatprep.subr.mxu0 0.0
  %2999 = vmatpush1.msra.mxu0 0.0
  %3000 = vmatprep.subr.mxu0 0.0
  %3001 = vmatpush1.msra.mxu0 0.0
  %3002 = vmatprep.subr.mxu0 0.0
  %3003 = vmatpush1.msra.mxu0 0.0
  %3004 = vmatprep.subr.mxu0 0.0
  %3005 = vmatpush1.msra.mxu0 0.0
  %3006 = vmatprep.subr.mxu0 0.0
  %3007 = vmatpush1.msra.mxu0 0.0
  %3008 = vmatprep.subr.mxu0 0.0
  %3009 = vmatpush1.msra.mxu0 0.0
  %3010 = vmatprep.subr.mxu0 0.0
  %3011 = vmatpush1.msra.mxu0 0.0
  %3012 = vmatprep.subr.mxu0 0.0
  %3013 = vmatpush1.msra.mxu0 0.0
  %3014 = vmatprep.subr.mxu0 0.0
  %3015 = vmatpush1.msra.mxu0 0.0
  %3016 = vmatprep.subr.mxu0 0.0
  %3017 = vmatpush1.msra.mxu0 %v26
  %3018 = vmatprep.subr.mxu0 0.0
  %3019 = vmatpush1.msra.mxu0 %v25
  %3020 = vmatprep.subr.mxu0 0.0
  %3021 = vmatpush1.msra.mxu0 %v24
  %3022 = vmatprep.subr.mxu0 0.0
  %3023 = vmatpush1.msra.mxu0 %v23
  %3024 = vmatprep.subr.mxu0 0.0
  %3025 = vmatpush2.msra.mxu0 0.0
  %3026 = vmatprep.subr.mxu0 0.0
  %3027 = vmatpush2.msra.mxu0 0.0
  %3028 = vmatprep.subr.mxu0 0.0
  %3029 = vmatpush2.msra.mxu0 0.0
  %3030 = vmatprep.subr.mxu0 0.0
  %3031 = vmatpush2.msra.mxu0 0.0
  %3032 = vmatprep.subr.mxu0 0.0
  %3033 = vmatpush2.msra.mxu0 0.0
  %3034 = vmatprep.subr.mxu0 0.0
  %3035 = vmatpush2.msra.mxu0 0.0
  %3036 = vmatprep.subr.mxu0 0.0
  %3037 = vmatpush2.msra.mxu0 0.0
  %3038 = vmatprep.subr.mxu0 0.0
  %3039 = vmatpush2.msra.mxu0 0.0
  %3040 = vmatprep.subr.mxu0 0.0
  %3041 = vmatpush2.msra.mxu0 0.0
  %3042 = vmatprep.subr.mxu0 0.0
  %3043 = vmatpush2.msra.mxu0 0.0
  %3044 = vmatprep.subr.mxu0 0.0
  %3045 = vmatpush2.msra.mxu0 0.0
  %3046 = vmatprep.subr.mxu0 0.0
  %3047 = vmatpush2.msra.mxu0 0.0
  %3048 = vmatprep.subr.mxu0 0.0
  %3049 = vmatpush2.msra.mxu0 0.0
  %3050 = vmatprep.subr.mxu0 0.0
  %3051 = vmatpush2.msra.mxu0 0.0
  %3052 = vmatprep.subr.mxu0 0.0
  %3053 = vmatpush2.msra.mxu0 0.0
  %3054 = vmatprep.subr.mxu0 0.0
  %3055 = vmatpush2.msra.mxu0 0.0
  %3056 = vmatprep.mubr.f32.mxu0 0.0
  %3057 = vmatmul.mubr.f32.gmra.mxu0 %v2990
  %v3058 = vpop.f32.mrf.mxu0
  %v3059 = vadd.f32 0.0, %v3058
  %v3060 = vpop.f32.mrf.mxu0
  %3061 = vdwg.mxu0
  %v3063 = vsel %vm287, %v2838, 0
  %3065 = vmatprep.subr.mxu0 0.0
  %3066 = vmatpush1.msra.mxu0 0.0
  %3067 = vmatprep.subr.mxu0 0.0
  %3068 = vmatpush1.msra.mxu0 0.0
  %3069 = vmatprep.subr.mxu0 0.0
  %3070 = vmatpush1.msra.mxu0 0.0
  %3071 = vmatprep.subr.mxu0 0.0
  %3072 = vmatpush1.msra.mxu0 0.0
  %3073 = vmatprep.subr.mxu0 0.0
  %3074 = vmatpush1.msra.mxu0 0.0
  %3075 = vmatprep.subr.mxu0 0.0
  %3076 = vmatpush1.msra.mxu0 0.0
  %3077 = vmatprep.subr.mxu0 0.0
  %3078 = vmatpush1.msra.mxu0 0.0
  %3079 = vmatprep.subr.mxu0 0.0
  %3080 = vmatpush1.msra.mxu0 0.0
  %3081 = vmatprep.subr.mxu0 0.0
  %3082 = vmatpush1.msra.mxu0 0.0
  %3083 = vmatprep.subr.mxu0 0.0
  %3084 = vmatpush1.msra.mxu0 0.0
  %3085 = vmatprep.subr.mxu0 0.0
  %3086 = vmatpush1.msra.mxu0 0.0
  %3087 = vmatprep.subr.mxu0 0.0
  %3088 = vmatpush1.msra.mxu0 0.0
  %3089 = vmatprep.subr.mxu0 0.0
  %3090 = vmatpush1.msra.mxu0 0.0
  %3091 = vmatprep.subr.mxu0 0.0
  %3092 = vmatpush1.msra.mxu0 0.0
  %3093 = vmatprep.subr.mxu0 0.0
  %3094 = vmatpush1.msra.mxu0 0.0
  %3095 = vmatprep.subr.mxu0 0.0
  %3096 = vmatpush1.msra.mxu0 %v21
  %3097 = vmatprep.subr.mxu0 0.0
  %3098 = vmatpush2.msra.mxu0 0.0
  %3099 = vmatprep.subr.mxu0 0.0
  %3100 = vmatpush2.msra.mxu0 0.0
  %3101 = vmatprep.subr.mxu0 0.0
  %3102 = vmatpush2.msra.mxu0 0.0
  %3103 = vmatprep.subr.mxu0 0.0
  %3104 = vmatpush2.msra.mxu0 0.0
  %3105 = vmatprep.subr.mxu0 0.0
  %3106 = vmatpush2.msra.mxu0 0.0
  %3107 = vmatprep.subr.mxu0 0.0
  %3108 = vmatpush2.msra.mxu0 0.0
  %3109 = vmatprep.subr.mxu0 0.0
  %3110 = vmatpush2.msra.mxu0 0.0
  %3111 = vmatprep.subr.mxu0 0.0
  %3112 = vmatpush2.msra.mxu0 0.0
  %3113 = vmatprep.subr.mxu0 0.0
  %3114 = vmatpush2.msra.mxu0 0.0
  %3115 = vmatprep.subr.mxu0 0.0
  %3116 = vmatpush2.msra.mxu0 0.0
  %3117 = vmatprep.subr.mxu0 0.0
  %3118 = vmatpush2.msra.mxu0 0.0
  %3119 = vmatprep.subr.mxu0 0.0
  %3120 = vmatpush2.msra.mxu0 0.0
  %3121 = vmatprep.subr.mxu0 0.0
  %3122 = vmatpush2.msra.mxu0 0.0
  %3123 = vmatprep.subr.mxu0 0.0
  %3124 = vmatpush2.msra.mxu0 0.0
  %3125 = vmatprep.subr.mxu0 0.0
  %3126 = vmatpush2.msra.mxu0 0.0
  %3127 = vmatprep.subr.mxu0 0.0
  %3128 = vmatpush2.msra.mxu0 0.0
  %3129 = vmatprep.mubr.f32.mxu0 0.0
  %3130 = vmatmul.mubr.f32.gmra.mxu0 %v3063
  %v3131 = vpop.f32.mrf.mxu0
  %v3132 = vadd.f32 %v3059, %v3131
  %v3133 = vpop.f32.mrf.mxu0
  %3134 = vdwg.mxu0
  %v3135 = vadd.f32 %v3132, %v737
  %v3136 = vmax.f32 %v3135, 0.0
  %v3137 = vtanh.pop %v3136
  %3138 = vst.msk [vmem:[#allocation2 + $0xe] sm:$0x3] %vm741, %v3137
  %v3139 = vld [vmem:[#allocation2] sm:$0xff]
  %v3140 = vld [vmem:[#allocation2 + $0x8] sm:$0xff]
  %v3141 = vlaneseq
  %v3142 = vshrl.u32 %v3141, 7
  %v3143 = vsub.s32 0, %v3142
  %v3144 = vrot.slane %v40, %v3143
  %v3146 = vsel %vm129, %v3139, 0
  %v3149 = vsel %vm129, %v3140, 0
  %3151 = vmatprep.subr.mxu0 0.0
  %3152 = vmatpush1.msra.mxu0 0.0
  %3153 = vmatprep.subr.mxu0 0.0
  %3154 = vmatpush1.msra.mxu0 0.0
  %3155 = vmatprep.subr.mxu0 0.0
  %3156 = vmatpush1.msra.mxu0 0.0
  %3157 = vmatprep.subr.mxu0 0.0
  %3158 = vmatpush1.msra.mxu0 0.0
  %3159 = vmatprep.subr.mxu0 0.0
  %3160 = vmatpush1.msra.mxu0 0.0
  %3161 = vmatprep.subr.mxu0 0.0
  %3162 = vmatpush1.msra.mxu0 0.0
  %3163 = vmatprep.subr.mxu0 0.0
  %3164 = vmatpush1.msra.mxu0 0.0
  %3165 = vmatprep.subr.mxu0 0.0
  %3166 = vmatpush1.msra.mxu0 0.0
  %3167 = vmatprep.subr.mxu0 0.0
  %3168 = vmatpush1.msra.mxu0 0.0
  %3169 = vmatprep.subr.mxu0 0.0
  %3170 = vmatpush1.msra.mxu0 0.0
  %3171 = vmatprep.subr.mxu0 0.0
  %3172 = vmatpush1.msra.mxu0 0.0
  %3173 = vmatprep.subr.mxu0 0.0
  %3174 = vmatpush1.msra.mxu0 0.0
  %3175 = vmatprep.subr.mxu0 0.0
  %3176 = vmatpush1.msra.mxu0 %v39
  %3177 = vmatprep.subr.mxu0 0.0
  %3178 = vmatpush1.msra.mxu0 %v38
  %3179 = vmatprep.subr.mxu0 0.0
  %3180 = vmatpush1.msra.mxu0 %v37
  %3181 = vmatprep.subr.mxu0 0.0
  %3182 = vmatpush1.msra.mxu0 %v36
  %3183 = vmatprep.subr.mxu0 0.0
  %3184 = vmatpush2.msra.mxu0 0.0
  %3185 = vmatprep.subr.mxu0 0.0
  %3186 = vmatpush2.msra.mxu0 0.0
  %3187 = vmatprep.subr.mxu0 0.0
  %3188 = vmatpush2.msra.mxu0 0.0
  %3189 = vmatprep.subr.mxu0 0.0
  %3190 = vmatpush2.msra.mxu0 0.0
  %3191 = vmatprep.subr.mxu0 0.0
  %3192 = vmatpush2.msra.mxu0 0.0
  %3193 = vmatprep.subr.mxu0 0.0
  %3194 = vmatpush2.msra.mxu0 0.0
  %3195 = vmatprep.subr.mxu0 0.0
  %3196 = vmatpush2.msra.mxu0 0.0
  %3197 = vmatprep.subr.mxu0 0.0
  %3198 = vmatpush2.msra.mxu0 0.0
  %3199 = vmatprep.subr.mxu0 0.0
  %3200 = vmatpush2.msra.mxu0 0.0
  %3201 = vmatprep.subr.mxu0 0.0
  %3202 = vmatpush2.msra.mxu0 0.0
  %3203 = vmatprep.subr.mxu0 0.0
  %3204 = vmatpush2.msra.mxu0 0.0
  %3205 = vmatprep.subr.mxu0 0.0
  %3206 = vmatpush2.msra.mxu0 0.0
  %3207 = vmatprep.subr.mxu0 0.0
  %3208 = vmatpush2.msra.mxu0 0.0
  %3209 = vmatprep.subr.mxu0 0.0
  %3210 = vmatpush2.msra.mxu0 0.0
  %3211 = vmatprep.subr.mxu0 0.0
  %3212 = vmatpush2.msra.mxu0 0.0
  %3213 = vmatprep.subr.mxu0 0.0
  %3214 = vmatpush2.msra.mxu0 0.0
  %3215 = vmatprep.mubr.f32.mxu0 0.0
  %3216 = vmatmul.mubr.f32.gmra.mxu0 %v3146
  %v3217 = vpop.f32.mrf.mxu0
  %v3218 = vadd.f32 %v3144, %v3217
  %v3219 = vpop.f32.mrf.mxu0
  %3220 = vmatprep.mubr.f32.mxu0 0.0
  %3221 = vmatmul.mubr.f32.gmra.mxu0 %v3149
  %v3222 = vpop.f32.mrf.mxu0
  %v3223 = vadd.f32 %v3144, %v3222
  %v3224 = vpop.f32.mrf.mxu0
  %3225 = vdwg.mxu0
  %3226 = vst.msk [vmem:[%s3] sm:$0xff] %vm287, %v3218
  %3227 = vst.msk [vmem:[%s3 + $0x8] sm:$0xff] %vm287, %v3223
  // Predicated region
  $region14: #{tpu_custom_call.1} parent=0 // pred_check
    _
  $region15: #{tpu_custom_call.1} parent=0 // pred_check_branch
    %3229 = sbr.rel (0) target = $region17
  $region16: #{tpu_custom_call.1} parent=0 // pred_region
    _
  $region17: #{tpu_custom_call.1} parent=0 // pred_fallthru
    _
  // Predicated region
  $region18: #{tpu_custom_call.1} parent=0 // pred_check
    _
  $region19: #{tpu_custom_call.1} parent=0 // pred_check_branch
    %3231 = sbr.rel (0) target = $region21
  $region20: #{tpu_custom_call.1} parent=0 // pred_region
    _
  $region21: #{tpu_custom_call.1} parent=0 // pred_fallthru
    _

</llo_original>
